<compile_context>
chip_gen: v7x
topology: tpu7x:2x2x1
jax: 0.10.0
libtpu: 0.0.40
codegen_flags: <defaults>
</compile_context>

<pallas_src>
import functools

import jax
import jax.numpy as jnp
from jax.experimental import pallas as pl
from jax.experimental.pallas import tpu as pltpu


def _round_up(x, m):
    return (x + m - 1) // m * m


# ----------------------------------------------------------------------------
# Pallas kernel 1: batched matmul  (B, M, K) @ (B, K, N) -> (B, M, N)
#   bf16 operands, f32 accumulation, M tiled, full-extent K/N blocks.
# ----------------------------------------------------------------------------
def _bmm_kernel(x_ref, w_ref, o_ref):
    o_ref[...] = jnp.dot(
        x_ref[...], w_ref[...], preferred_element_type=jnp.float32
    ).astype(o_ref.dtype)


def batched_matmul(x, w, *, out_dtype=jnp.bfloat16, tm=256):
    """y[b] = x[b] @ w[b];  x:(B,M,K)  w:(B,K,N)  ->  (B,M,N)."""
    B, M, K = x.shape
    Bw, Kw, N = w.shape
    assert B == Bw and K == Kw

    Mp = _round_up(M, 8)
    tm_eff = min(tm, Mp)
    Mp = _round_up(Mp, tm_eff)

    xb = x.astype(jnp.bfloat16)
    wb = w.astype(jnp.bfloat16)
    if Mp != M:
        xb = jnp.pad(xb, ((0, 0), (0, Mp - M), (0, 0)))

    out = pl.pallas_call(
        _bmm_kernel,
        out_shape=jax.ShapeDtypeStruct((B, Mp, N), out_dtype),
        grid=(B, Mp // tm_eff),
        in_specs=[
            pl.BlockSpec((None, tm_eff, K), lambda b, m: (b, m, 0)),
            pl.BlockSpec((None, K, N), lambda b, m: (b, 0, 0)),
        ],
        out_specs=pl.BlockSpec((None, tm_eff, N), lambda b, m: (b, m, 0)),
        compiler_params=pltpu.CompilerParams(
            dimension_semantics=("parallel", "parallel")),
    )(xb, wb)
    return out[:, :M, :]


# ----------------------------------------------------------------------------
# Pallas kernel 2: fused cumulative-add + concat + BatchNorm + PReLU epilogue
#   y_all: (5, M, cpad)  ->  out: (M, nOut)
# ----------------------------------------------------------------------------
def _combine_kernel(y_ref, scale_ref, shift_ref, alpha_ref, o_ref, *, n1, n):
    y = y_ref[...].astype(jnp.float32)            # (5, tm, cpad)
    d1 = y[0, :, :n1]
    a2 = y[1, :, :n]                              # add1 = d2
    a3 = a2 + y[2, :, :n]                         # add2 = add1 + d4
    a4 = a3 + y[3, :, :n]                         # add3 = add2 + d8
    a5 = a4 + y[4, :, :n]                         # add4 = add3 + d16
    comb = jnp.concatenate([d1, a2, a3, a4, a5], axis=-1)   # (tm, nOut)
    z = comb * scale_ref[...] + shift_ref[...]               # BatchNorm (eval)
    o_ref[...] = jnp.where(z >= 0.0, z, z * alpha_ref[...]).astype(o_ref.dtype)


def combine_bn_prelu(y_all, scale, shift, alpha, *, n1, n, tm=256,
                     out_dtype=jnp.float32):
    B5, M, cpad = y_all.shape
    nOut = scale.shape[0]
    Mp = _round_up(M, 8)
    tm_eff = min(tm, Mp)
    Mp = _round_up(Mp, tm_eff)
    if Mp != M:
        y_all = jnp.pad(y_all, ((0, 0), (0, Mp - M), (0, 0)))

    scale2 = scale.reshape(1, nOut).astype(jnp.float32)
    shift2 = shift.reshape(1, nOut).astype(jnp.float32)
    alpha2 = alpha.reshape(1, nOut).astype(jnp.float32)

    out = pl.pallas_call(
        functools.partial(_combine_kernel, n1=n1, n=n),
        out_shape=jax.ShapeDtypeStruct((Mp, nOut), out_dtype),
        grid=(Mp // tm_eff,),
        in_specs=[
            pl.BlockSpec((B5, tm_eff, cpad), lambda m: (0, m, 0)),
            pl.BlockSpec((1, nOut), lambda m: (0, 0)),
            pl.BlockSpec((1, nOut), lambda m: (0, 0)),
            pl.BlockSpec((1, nOut), lambda m: (0, 0)),
        ],
        out_specs=pl.BlockSpec((tm_eff, nOut), lambda m: (m, 0)),
        compiler_params=pltpu.CompilerParams(
            dimension_semantics=("parallel",)),
    )(y_all, scale2, shift2, alpha2)
    return out[:M]


# ----------------------------------------------------------------------------
# Glue: im2col construction (NHWC, channels last -> lane dim)
# ----------------------------------------------------------------------------
def strided_im2col_3x3(x, stride, pad):
    """x: (N,H,W,C) -> cols (N*Ho*Wo, 9*C), Ho, Wo  (3x3 kernel)."""
    N, H, W, C = x.shape
    xp = jnp.pad(x, ((0, 0), (pad, pad), (pad, pad), (0, 0)))
    Ho = (H + 2 * pad - 3) // stride + 1
    Wo = (W + 2 * pad - 3) // stride + 1
    taps = []
    for ki in range(3):
        for kj in range(3):
            taps.append(xp[:, ki:ki + stride * Ho:stride,
                           kj:kj + stride * Wo:stride, :])
    cols = jnp.concatenate(taps, axis=-1)
    return cols.reshape(N * Ho * Wo, 9 * C), Ho, Wo


def dilated_cols_stack(x, dilations):
    """3x3 / stride 1 / padding=d dilated im2col for each d, stacked.
    x: (N,H,W,C) -> (len(dilations), N*H*W, 9*C)."""
    # TODO(synk): for large feature maps, replace this materialized im2col with
    # a tap-as-grid-axis Pallas gather over a once-padded activation.
    N, H, W, C = x.shape
    pm = max(dilations)
    xp = jnp.pad(x, ((0, 0), (pm, pm), (pm, pm), (0, 0)))
    all_cols = []
    for d in dilations:
        taps = []
        for ki in range(3):
            for kj in range(3):
                oh = pm + (ki - 1) * d
                ow = pm + (kj - 1) * d
                taps.append(xp[:, oh:oh + H, ow:ow + W, :])
        all_cols.append(
            jnp.concatenate(taps, axis=-1).reshape(N * H * W, 9 * C))
    return jnp.stack(all_cols, axis=0)


# ----------------------------------------------------------------------------
# Parameters (deterministic, synthetic conv weights; default BN/PReLU state)
# ----------------------------------------------------------------------------
class KeyGen:
    def __init__(self, key):
        self.key = key

    def next(self):
        self.key, sub = jax.random.split(self.key)
        return sub


def make_params(kg, nIn, nOut):
    n = nOut // 5
    n1 = nOut - 4 * n

    def conv_w(cin, cout):
        std = (2.0 / (9 * cin)) ** 0.5
        return jax.random.normal(kg.next(), (3, 3, cin, cout), jnp.float32) * std

    return {
        'n': n, 'n1': n1, 'nOut': nOut,
        'c1': conv_w(nIn, n),
        'd1': conv_w(n, n1),
        'd2': conv_w(n, n),
        'd4': conv_w(n, n),
        'd8': conv_w(n, n),
        'd16': conv_w(n, n),
        # BatchNorm2d(nOut, eps=0.001) default state, inference mode
        'bn': (jnp.ones((nOut,), jnp.float32),    # gamma
               jnp.zeros((nOut,), jnp.float32),   # beta
               jnp.zeros((nOut,), jnp.float32),   # running_mean
               jnp.ones((nOut,), jnp.float32),    # running_var
               1e-3),
        # PReLU(nOut) default slope
        'prelu': jnp.full((nOut,), 0.25, jnp.float32),
    }


# ----------------------------------------------------------------------------
# Forward pass
# ----------------------------------------------------------------------------
def downsampler_b_forward(params, x_nchw):
    n, n1, nOut = params['n'], params['n1'], params['nOut']
    x = jnp.transpose(x_nchw, (0, 2, 3, 1)).astype(jnp.bfloat16)   # -> NHWC
    N = x.shape[0]

    # c1: 3x3 conv, stride 2, padding 1 (nIn -> n)
    cols1, Ho, Wo = strided_im2col_3x3(x, stride=2, pad=1)
    w1 = params['c1'].reshape(-1, n)                                # (9*nIn, n)
    out1 = batched_matmul(cols1[None], w1[None], out_dtype=jnp.bfloat16)[0]
    out1 = out1.reshape(N, Ho, Wo, n)

    # five dilated 3x3 convs (dilation 1,2,4,8,16) in ONE batched matmul
    dilations = (1, 2, 4, 8, 16)
    cols_all = dilated_cols_stack(out1, dilations)                  # (5, M, 9n)
    cpad = max(n1, n)
    w_stack = []
    for name, cout in (('d1', n1), ('d2', n), ('d4', n), ('d8', n), ('d16', n)):
        wmat = params[name].reshape(9 * n, cout)
        if cout < cpad:
            wmat = jnp.pad(wmat, ((0, 0), (0, cpad - cout)))
        w_stack.append(wmat)
    w_all = jnp.stack(w_stack, axis=0)                              # (5, 9n, cpad)
    y_all = batched_matmul(cols_all, w_all, out_dtype=jnp.bfloat16)  # (5, M, cpad)

    # fused cumulative adds + concat + BN + PReLU
    gamma, beta, mean, var, eps = params['bn']
    scale = gamma / jnp.sqrt(var + eps)
    shift = beta - mean * scale
    out = combine_bn_prelu(y_all, scale, shift, params['prelu'], n1=n1, n=n)

    out = out.reshape(N, Ho, Wo, nOut)
    return jnp.transpose(out, (0, 3, 1, 2))                         # -> NCHW


# ----------------------------------------------------------------------------
if __name__ == "__main__":
    nIn, nOut = 16, 40
    kg = KeyGen(jax.random.PRNGKey(0))
    params = make_params(kg, nIn, nOut)

    x = jax.random.normal(jax.random.PRNGKey(0), (2, nIn, 32, 32), jnp.float32)

    fwd = jax.jit(lambda inp: downsampler_b_forward(params, inp))
    out = jax.block_until_ready(fwd(x))

    assert out.shape == (2, nOut, 16, 16), out.shape
    assert bool(jnp.all(jnp.isfinite(out)))
    print("KERNEL_OK")
</pallas_src>

<mosaic_0001>
module attributes {stable_mosaic.version = 11 : i64} {
  func.func @_bmm_kernel(%arg0: i32, %arg1: i32, %arg2: memref<1x256x144xbf16, #tpu.memory_space<vmem>>, %arg3: memref<1x144x8xbf16, #tpu.memory_space<vmem>>, %arg4: memref<1x256x8xbf16, #tpu.memory_space<vmem>>) attributes {dimension_semantics = [#tpu.dimension_semantics<parallel>, #tpu.dimension_semantics<parallel>], iteration_bounds = array<i64: 1, 2>, scalar_prefetch = 0 : i64, scratch_operands = 0 : i64, tpu.core_type = #tpu.core_type<tc>, window_params = [{transform_indices = @transform_0, window_bounds = array<i64: 1, 256, 144>}, {transform_indices = @transform_1, window_bounds = array<i64: 1, 144, 8>}, {transform_indices = @transform_2, window_bounds = array<i64: 1, 256, 8>}]} {
    %c0 = arith.constant 0 : index
    %c0_0 = arith.constant 0 : index
    %c0_1 = arith.constant 0 : index
    %0 = vector.load %arg2[%c0, %c0_0, %c0_1] : memref<1x256x144xbf16, #tpu.memory_space<vmem>>, vector<1x256x144xbf16>
    %1 = vector.shape_cast %0 : vector<1x256x144xbf16> to vector<256x144xbf16>
    %c0_2 = arith.constant 0 : index
    %c0_3 = arith.constant 0 : index
    %c0_4 = arith.constant 0 : index
    %2 = vector.load %arg3[%c0_2, %c0_3, %c0_4] : memref<1x144x8xbf16, #tpu.memory_space<vmem>>, vector<1x144x8xbf16>
    %3 = vector.shape_cast %2 : vector<1x144x8xbf16> to vector<144x8xbf16>
    %cst = arith.constant dense<0.000000e+00> : vector<256x8xf32>
    %4 = tpu.matmul %1, %3, %cst {dimension_numbers = #tpu.dot_dimension_numbers<[1], [0], [0], [1], [0, 0, 1, 1], [], []>} : vector<256x144xbf16>, vector<144x8xbf16>, vector<256x8xf32> -> vector<256x8xf32>
    %5 = arith.truncf %4 : vector<256x8xf32> to vector<256x8xbf16>
    %c0_5 = arith.constant 0 : index
    %c0_6 = arith.constant 0 : index
    %c0_7 = arith.constant 0 : index
    %6 = vector.load %arg4[%c0_5, %c0_6, %c0_7] : memref<1x256x8xbf16, #tpu.memory_space<vmem>>, vector<1x256x8xbf16>
    %7 = vector.shape_cast %6 : vector<1x256x8xbf16> to vector<256x8xbf16>
    %8 = vector.shape_cast %5 : vector<256x8xbf16> to vector<1x256x8xbf16>
    tpu.vector_store %arg4[%c0_5, %c0_6, %c0_7], %8 {strides = array<i32>} : memref<1x256x8xbf16, #tpu.memory_space<vmem>>, vector<1x256x8xbf16>,
    return
  }
  func.func @transform_0(%arg0: i32, %arg1: i32) -> (i32, i32, i32) {
    %c0_i32 = arith.constant 0 : i32
    %c0_i32_0 = arith.constant 0 : i32
    return %arg0, %arg1, %c0_i32 : i32, i32, i32
  }
  func.func @transform_1(%arg0: i32, %arg1: i32) -> (i32, i32, i32) {
    %c0_i32 = arith.constant 0 : i32
    %c0_i32_0 = arith.constant 0 : i32
    %c0_i32_1 = arith.constant 0 : i32
    return %arg0, %c0_i32, %c0_i32_0 : i32, i32, i32
  }
  func.func @transform_2(%arg0: i32, %arg1: i32) -> (i32, i32, i32) {
    %c0_i32 = arith.constant 0 : i32
    %c0_i32_0 = arith.constant 0 : i32
    return %arg0, %arg1, %c0_i32 : i32, i32, i32
  }
}

module attributes {stable_mosaic.version = 11 : i64} {
  func.func @_bmm_kernel(%arg0: i32, %arg1: i32, %arg2: memref<1x256x72xbf16, #tpu.memory_space<vmem>>, %arg3: memref<1x72x8xbf16, #tpu.memory_space<vmem>>, %arg4: memref<1x256x8xbf16, #tpu.memory_space<vmem>>) attributes {dimension_semantics = [#tpu.dimension_semantics<parallel>, #tpu.dimension_semantics<parallel>], iteration_bounds = array<i64: 5, 2>, scalar_prefetch = 0 : i64, scratch_operands = 0 : i64, tpu.core_type = #tpu.core_type<tc>, window_params = [{transform_indices = @transform_0, window_bounds = array<i64: 1, 256, 72>}, {transform_indices = @transform_1, window_bounds = array<i64: 1, 72, 8>}, {transform_indices = @transform_2, window_bounds = array<i64: 1, 256, 8>}]} {
    %c0 = arith.constant 0 : index
    %c0_0 = arith.constant 0 : index
    %c0_1 = arith.constant 0 : index
    %0 = vector.load %arg2[%c0, %c0_0, %c0_1] : memref<1x256x72xbf16, #tpu.memory_space<vmem>>, vector<1x256x72xbf16>
    %1 = vector.shape_cast %0 : vector<1x256x72xbf16> to vector<256x72xbf16>
    %c0_2 = arith.constant 0 : index
    %c0_3 = arith.constant 0 : index
    %c0_4 = arith.constant 0 : index
    %2 = vector.load %arg3[%c0_2, %c0_3, %c0_4] : memref<1x72x8xbf16, #tpu.memory_space<vmem>>, vector<1x72x8xbf16>
    %3 = vector.shape_cast %2 : vector<1x72x8xbf16> to vector<72x8xbf16>
    %cst = arith.constant dense<0.000000e+00> : vector<256x8xf32>
    %4 = tpu.matmul %1, %3, %cst {dimension_numbers = #tpu.dot_dimension_numbers<[1], [0], [0], [1], [0, 0, 1, 1], [], []>} : vector<256x72xbf16>, vector<72x8xbf16>, vector<256x8xf32> -> vector<256x8xf32>
    %5 = arith.truncf %4 : vector<256x8xf32> to vector<256x8xbf16>
    %c0_5 = arith.constant 0 : index
    %c0_6 = arith.constant 0 : index
    %c0_7 = arith.constant 0 : index
    %6 = vector.load %arg4[%c0_5, %c0_6, %c0_7] : memref<1x256x8xbf16, #tpu.memory_space<vmem>>, vector<1x256x8xbf16>
    %7 = vector.shape_cast %6 : vector<1x256x8xbf16> to vector<256x8xbf16>
    %8 = vector.shape_cast %5 : vector<256x8xbf16> to vector<1x256x8xbf16>
    tpu.vector_store %arg4[%c0_5, %c0_6, %c0_7], %8 {strides = array<i32>} : memref<1x256x8xbf16, #tpu.memory_space<vmem>>, vector<1x256x8xbf16>,
    return
  }
  func.func @transform_0(%arg0: i32, %arg1: i32) -> (i32, i32, i32) {
    %c0_i32 = arith.constant 0 : i32
    %c0_i32_0 = arith.constant 0 : i32
    return %arg0, %arg1, %c0_i32 : i32, i32, i32
  }
  func.func @transform_1(%arg0: i32, %arg1: i32) -> (i32, i32, i32) {
    %c0_i32 = arith.constant 0 : i32
    %c0_i32_0 = arith.constant 0 : i32
    %c0_i32_1 = arith.constant 0 : i32
    return %arg0, %c0_i32, %c0_i32_0 : i32, i32, i32
  }
  func.func @transform_2(%arg0: i32, %arg1: i32) -> (i32, i32, i32) {
    %c0_i32 = arith.constant 0 : i32
    %c0_i32_0 = arith.constant 0 : i32
    return %arg0, %arg1, %c0_i32 : i32, i32, i32
  }
}

module attributes {stable_mosaic.version = 11 : i64} {
  func.func @_combine_kernel(%arg0: i32, %arg1: memref<5x256x8xbf16, #tpu.memory_space<vmem>>, %arg2: memref<1x40xf32, #tpu.memory_space<vmem>>, %arg3: memref<1x40xf32, #tpu.memory_space<vmem>>, %arg4: memref<1x40xf32, #tpu.memory_space<vmem>>, %arg5: memref<256x40xf32, #tpu.memory_space<vmem>>) attributes {dimension_semantics = [#tpu.dimension_semantics<parallel>], iteration_bounds = array<i64: 2>, scalar_prefetch = 0 : i64, scratch_operands = 0 : i64, tpu.core_type = #tpu.core_type<tc>, window_params = [{transform_indices = @transform_0, window_bounds = array<i64: 5, 256, 8>}, {pipeline_mode = #tpu.pipeline_mode<synchronous>, transform_indices = @transform_1, window_bounds = array<i64: 1, 40>}, {pipeline_mode = #tpu.pipeline_mode<synchronous>, transform_indices = @transform_2, window_bounds = array<i64: 1, 40>}, {pipeline_mode = #tpu.pipeline_mode<synchronous>, transform_indices = @transform_3, window_bounds = array<i64: 1, 40>}, {transform_indices = @transform_4, window_bounds = array<i64: 256, 40>}]} {
    %c0 = arith.constant 0 : index
    %c0_0 = arith.constant 0 : index
    %c0_1 = arith.constant 0 : index
    %0 = vector.load %arg1[%c0, %c0_0, %c0_1] : memref<5x256x8xbf16, #tpu.memory_space<vmem>>, vector<5x256x8xbf16>
    %1 = arith.extf %0 : vector<5x256x8xbf16> to vector<5x256x8xf32>
    %2 = vector.extract_strided_slice %1 {offsets = [0, 0, 0], sizes = [1, 256, 8], strides = [1, 1, 1]} : vector<5x256x8xf32> to vector<1x256x8xf32>
    %3 = vector.shape_cast %2 : vector<1x256x8xf32> to vector<256x8xf32>
    %4 = vector.extract_strided_slice %1 {offsets = [1, 0, 0], sizes = [1, 256, 8], strides = [1, 1, 1]} : vector<5x256x8xf32> to vector<1x256x8xf32>
    %5 = vector.shape_cast %4 : vector<1x256x8xf32> to vector<256x8xf32>
    %6 = vector.extract_strided_slice %1 {offsets = [2, 0, 0], sizes = [1, 256, 8], strides = [1, 1, 1]} : vector<5x256x8xf32> to vector<1x256x8xf32>
    %7 = vector.shape_cast %6 : vector<1x256x8xf32> to vector<256x8xf32>
    %8 = arith.addf %5, %7 : vector<256x8xf32>
    %9 = vector.extract_strided_slice %1 {offsets = [3, 0, 0], sizes = [1, 256, 8], strides = [1, 1, 1]} : vector<5x256x8xf32> to vector<1x256x8xf32>
    %10 = vector.shape_cast %9 : vector<1x256x8xf32> to vector<256x8xf32>
    %11 = arith.addf %8, %10 : vector<256x8xf32>
    %12 = vector.extract_strided_slice %1 {offsets = [4, 0, 0], sizes = [1, 256, 8], strides = [1, 1, 1]} : vector<5x256x8xf32> to vector<1x256x8xf32>
    %13 = vector.shape_cast %12 : vector<1x256x8xf32> to vector<256x8xf32>
    %14 = arith.addf %11, %13 : vector<256x8xf32>
    %15 = tpu.concatenate %3, %5, %8, %11, %14 in 1 : vector<256x8xf32>, vector<256x8xf32>, vector<256x8xf32>, vector<256x8xf32>, vector<256x8xf32> -> vector<256x40xf32>
    %c0_2 = arith.constant 0 : index
    %c0_3 = arith.constant 0 : index
    %16 = vector.load %arg2[%c0_2, %c0_3] : memref<1x40xf32, #tpu.memory_space<vmem>>, vector<1x40xf32>
    %17 = vector.broadcast %16 : vector<1x40xf32> to vector<256x40xf32>
    %18 = arith.mulf %15, %17 : vector<256x40xf32>
    %c0_4 = arith.constant 0 : index
    %c0_5 = arith.constant 0 : index
    %19 = vector.load %arg3[%c0_4, %c0_5] : memref<1x40xf32, #tpu.memory_space<vmem>>, vector<1x40xf32>
    %20 = vector.broadcast %19 : vector<1x40xf32> to vector<256x40xf32>
    %21 = arith.addf %18, %20 : vector<256x40xf32>
    %cst = arith.constant 0.000000e+00 : f32
    %22 = vector.broadcast %cst : f32 to vector<256x40xf32>
    %23 = arith.cmpf oge, %21, %22 : vector<256x40xf32>
    %c0_6 = arith.constant 0 : index
    %c0_7 = arith.constant 0 : index
    %24 = vector.load %arg4[%c0_6, %c0_7] : memref<1x40xf32, #tpu.memory_space<vmem>>, vector<1x40xf32>
    %25 = vector.broadcast %24 : vector<1x40xf32> to vector<256x40xf32>
    %26 = arith.mulf %21, %25 : vector<256x40xf32>
    %27 = arith.select %23, %21, %26 : vector<256x40xi1>, vector<256x40xf32>
    %c0_8 = arith.constant 0 : index
    %c0_9 = arith.constant 0 : index
    %28 = vector.load %arg5[%c0_8, %c0_9] : memref<256x40xf32, #tpu.memory_space<vmem>>, vector<256x40xf32>
    tpu.vector_store %arg5[%c0_8, %c0_9], %27 {strides = array<i32>} : memref<256x40xf32, #tpu.memory_space<vmem>>, vector<256x40xf32>,
    return
  }
  func.func @transform_0(%arg0: i32) -> (i32, i32, i32) {
    %c0_i32 = arith.constant 0 : i32
    %c0_i32_0 = arith.constant 0 : i32
    %c0_i32_1 = arith.constant 0 : i32
    return %c0_i32, %arg0, %c0_i32_0 : i32, i32, i32
  }
  func.func @transform_1(%arg0: i32) -> (i32, i32) {
    %c0_i32 = arith.constant 0 : i32
    %c0_i32_0 = arith.constant 0 : i32
    %c0_i32_1 = arith.constant 0 : i32
    return %c0_i32, %c0_i32_0 : i32, i32
  }
  func.func @transform_2(%arg0: i32) -> (i32, i32) {
    %c0_i32 = arith.constant 0 : i32
    %c0_i32_0 = arith.constant 0 : i32
    %c0_i32_1 = arith.constant 0 : i32
    return %c0_i32, %c0_i32_0 : i32, i32
  }
  func.func @transform_3(%arg0: i32) -> (i32, i32) {
    %c0_i32 = arith.constant 0 : i32
    %c0_i32_0 = arith.constant 0 : i32
    %c0_i32_1 = arith.constant 0 : i32
    return %c0_i32, %c0_i32_0 : i32, i32
  }
  func.func @transform_4(%arg0: i32) -> (i32, i32) {
    %c0_i32 = arith.constant 0 : i32
    %c0_i32_0 = arith.constant 0 : i32
    return %arg0, %c0_i32 : i32, i32
  }
}

</mosaic_0001>

<llo_original>
// kernel: _lambda_.3
$region0: #{_lambda_.3}
  #allocation0 [shape = 'u32[]', space=smem, size = 0x4, offset = 0x4, fixed_abs, tag = 'smem constant byte address 0x4 - core index']
  #allocation1 [shape = 'u32[144,128]{1,0:T(1,128)}', space=vmem, size = 0x12000, scoped, tag = 'internal scratch']
  %s0 = inlined_call_operand.vmem [shape: bf16[1,512,144], index: 0, kind: input, shape index: {}]
  %s1 = inlined_call_operand.vmem [shape: bf16[1,144,8], index: 1, kind: input, shape index: {}]
  %s2 = inlined_call_operand.vmem [shape: bf16[1,512,8], index: 2, kind: output, shape index: {}]
  %s3 = sld [smem:[#allocation0]]
  $region41: #{_lambda_.3} parent=0
    _
  %s5 = ssub.s32 1, %s3
  %s6 = scalar_select 0, %s5, %s3
  loop: start=0, step=1, limit=4
  $region2: #{_lambda_.3} parent=0 // loop_pre_header
    _
  $region3: #{_lambda_.3} parent=0 // loop_header
    %s8 = sphi 0, %s12
    %p9 = scmp.ge.s32.totalorder %s8, 4
    %s15 = sphi 0, %s27
    %s16 = sphi 0, %s23
    %s17 = sphi 0, %s15
    %s18 = sphi 0, %s16
    %s19 = sphi 0, %s17
    %s20 = sphi 0, %s18
    %s32 = sphi 0, %s34
    %s35 = sphi 0, %s32
    %s36 = sphi 0, %s35
    %s52 = sphi 0, %s36
    %s58 = sphi 0, %s60
    %s61 = sphi 0, %s58
    %s62 = sphi 0, %s61
    %s78 = sphi 0, %s62
    %s86 = sphi 0, %s88
    %s89 = sphi 0, %s86
    %s90 = sphi 0, %s89
    %s106 = sphi 0, %s90
  $region4: #{_lambda_.3} parent=0 // loop_header_branch
    %11 = sbr.rel (%p9) target = $region8
  $region5: #{_lambda_.3} parent=0 // loop_body
    %s13 = ssub.s32 %s8, 1
    %s14 = ssub.s32 %s8, 2
    %s21 = sadd.s32 1, %s16
    %p22 = scmp.ge.s32.totalorder %s21, 2
    %s23 = scalar_select %p22, 0, %s21
    %s24 = sadd.s32 1, %s15
    %s25 = scalar_select %p22, %s24, %s15
    %p26 = scmp.ge.s32.totalorder %s25, 1
    %s27 = scalar_select %p26, 0, %s25
    %s28 = ssub.s32 %s15, %s27
    %s29 = ssub.s32 %s16, %s23
    %s30 = sor.u32 %s28, %s29
    %p31 = scmp.eq.s32.totalorder %s30, 0
    %s33 = sadd.s32 %s32, 1
    %s34 = scalar_select %p31, %s32, %s33
    %p37 = pneg %p31
    %p38 = scmp.eq.s32.totalorder %s8, 1
    %p39 = por %p37, %p38
    %p40 = scmp.ne.s32.totalorder %s32, %s35
    %p41 = scmp.eq.s32.totalorder %s8, 0
    %p42 = por %p40, %p41
    %p43 = scmp.ne.s32.totalorder %s32, %s35
    %p44 = scmp.eq.s32.totalorder %s13, 1
    %p45 = por %p43, %p44
    %p46 = scmp.ne.s32.totalorder %s35, %s36
    %p47 = scmp.eq.s32.totalorder %s13, 0
    %p48 = por %p46, %p47
    %p49 = scmp.ne.s32.totalorder %s35, %s36
    %p50 = scmp.eq.s32.totalorder %s14, 1
    %p51 = por %p49, %p50
    %p53 = scmp.ne.s32.totalorder %s36, %s52
    %p54 = scmp.eq.s32.totalorder %s14, 0
    %p55 = por %p53, %p54
    %s56 = ssub.s32 %s15, %s27
    %p57 = scmp.eq.s32.totalorder %s56, 0
    %s59 = sadd.s32 %s58, 1
    %s60 = scalar_select %p57, %s58, %s59
    %p63 = pneg %p57
    %p64 = scmp.eq.s32.totalorder %s8, 1
    %p65 = por %p63, %p64
    %p66 = scmp.ne.s32.totalorder %s58, %s61
    %p67 = scmp.eq.s32.totalorder %s8, 0
    %p68 = por %p66, %p67
    %p69 = scmp.ne.s32.totalorder %s58, %s61
    %p70 = scmp.eq.s32.totalorder %s13, 1
    %p71 = por %p69, %p70
    %p72 = scmp.ne.s32.totalorder %s61, %s62
    %p73 = scmp.eq.s32.totalorder %s13, 0
    %p74 = por %p72, %p73
    %p75 = scmp.ne.s32.totalorder %s61, %s62
    %p76 = scmp.eq.s32.totalorder %s14, 1
    %p77 = por %p75, %p76
    %p79 = scmp.ne.s32.totalorder %s62, %s78
    %p80 = scmp.eq.s32.totalorder %s14, 0
    %p81 = por %p79, %p80
    %s82 = ssub.s32 %s15, %s27
    %s83 = ssub.s32 %s16, %s23
    %s84 = sor.u32 %s82, %s83
    %p85 = scmp.eq.s32.totalorder %s84, 0
    %s87 = sadd.s32 %s86, 1
    %s88 = scalar_select %p85, %s86, %s87
    %p91 = pneg %p85
    %p92 = scmp.eq.s32.totalorder %s8, 1
    %p93 = por %p91, %p92
    %p94 = scmp.ne.s32.totalorder %s86, %s89
    %p95 = scmp.eq.s32.totalorder %s8, 0
    %p96 = por %p94, %p95
    %p97 = scmp.ne.s32.totalorder %s86, %s89
    %p98 = scmp.eq.s32.totalorder %s13, 1
    %p99 = por %p97, %p98
    %p100 = scmp.ne.s32.totalorder %s89, %s90
    %p101 = scmp.eq.s32.totalorder %s13, 0
    %p102 = por %p100, %p101
    %p103 = scmp.ne.s32.totalorder %s89, %s90
    %p104 = scmp.eq.s32.totalorder %s14, 1
    %p105 = por %p103, %p104
    %p107 = scmp.ne.s32.totalorder %s90, %s106
    %p108 = scmp.eq.s32.totalorder %s14, 0
    %p109 = por %p107, %p108
    %p110 = scmp.le.s32.totalorder 1, %s8
    %p111 = scmp.lt.s32.totalorder %s8, 3
    %p112 = pnand %p110, %p111
    %p113 = pneg %p112
    // Predicated region
    $region9: #{_lambda_.3} parent=5 // pred_check
      _
    $region10: #{_lambda_.3} parent=5 // pred_check_branch
      %115 = sbr.rel (%p112) target = $region12
    $region11: #{_lambda_.3} parent=5 // pred_region
      %s116 = ssub.s32 %s8, 1
      // Predicated region
      $region13: #{_lambda_.3} parent=11 // pred_check
        %p117 = pneg %p74
      $region14: #{_lambda_.3} parent=11 // pred_check_branch
        %119 = sbr.rel (%p117) target = $region16
      $region15: #{_lambda_.3} parent=11 // pred_region
        %p120 = scmp.lt.s32.totalorder %s17, 0
        %s121 = scalar_select %p120, %s17, 0
        %s122 = smul.addr %s121, 18
        %s123 = smul.addr %s122, 4
        %s124 = scalar_lea.vmem %s1, %s123
      $region16: #{_lambda_.3} parent=11 // pred_fallthru
        _
    $region12: #{_lambda_.3} parent=5 // pred_fallthru
      _
    %p125 = scmp.lt.s32.totalorder %s8, 2
    // Predicated region
    $region17: #{_lambda_.3} parent=5 // pred_check
      %p126 = pneg %p125
    $region18: #{_lambda_.3} parent=5 // pred_check_branch
      %128 = sbr.rel (%p126) target = $region20
    $region19: #{_lambda_.3} parent=5 // pred_region
      // Predicated region
      $region21: #{_lambda_.3} parent=19 // pred_check
        %p129 = pneg %p42
      $region22: #{_lambda_.3} parent=19 // pred_check_branch
        %131 = sbr.rel (%p129) target = $region24
      $region23: #{_lambda_.3} parent=19 // pred_region
        %s132 = smul.u32 32, %s16
        %p133 = scmp.lt.s32.totalorder %s15, 0
        %s134 = scalar_select %p133, %s15, 0
        %p135 = scmp.lt.s32.totalorder %s132, 63
        %s136 = scalar_select %p135, %s132, 63
        %s137 = smul.addr %s136, 2
        %s138 = smul.addr %s134, 128
        %s139 = sadd.s32 %s137, %s138
        %s140 = smul.addr %s139, 4
        %s141 = scalar_lea.vmem %s0, %s140
        %s142 = smul.u32 32, %s16
      $region24: #{_lambda_.3} parent=19 // pred_fallthru
        _
    $region20: #{_lambda_.3} parent=5 // pred_fallthru
      _
    %p143 = scmp.le.s32.totalorder 1, %s8
    %p144 = scmp.lt.s32.totalorder %s8, 3
    %p145 = pnand %p143, %p144
    %p146 = pneg %p145
    // Predicated region
    $region25: #{_lambda_.3} parent=5 // pred_check
      _
    $region26: #{_lambda_.3} parent=5 // pred_check_branch
      %148 = sbr.rel (%p145) target = $region28
    $region27: #{_lambda_.3} parent=5 // pred_region
      %s149 = ssub.s32 %s8, 1
      %s150 = smul.u32 32, %s18
      %p151 = scmp.lt.s32.totalorder %s17, 0
      %s152 = scalar_select %p151, %s17, 0
      %p153 = scmp.lt.s32.totalorder %s150, 63
      %s154 = scalar_select %p153, %s150, 63
      %s155 = smul.addr %s154, 2
      %s156 = smul.addr %s152, 128
      %s157 = sadd.s32 %s155, %s156
      %s158 = smul.addr %s157, 4
      %s159 = scalar_lea.vmem %s0, %s158
      %p160 = pneg %p48
      %p161 = pneg %p45
      %p162 = scmp.lt.s32.totalorder %s17, 0
      %s163 = scalar_select %p162, %s17, 0
      %s164 = smul.addr %s163, 18
      %s165 = smul.addr %s164, 4
      %s166 = scalar_lea.vmem %s1, %s165
      %p167 = pneg %p74
      %p168 = pneg %p71
      %p169 = pneg %p102
      %p170 = pneg %p99
      %s171 = smul.u32 32, %s18
      %p172 = scmp.lt.s32.totalorder %s17, 0
      %s173 = scalar_select %p172, %s17, 0
      %p174 = scmp.lt.s32.totalorder %s171, 63
      %s175 = scalar_select %p174, %s171, 63
      %s176 = smul.addr %s173, 64
      %s177 = sadd.s32 %s175, %s176
      %s178 = smul.addr %s177, 4
      %s179 = scalar_lea.vmem %s2, %s178
      %s180 = smul.u32 32, %s18
      %p181 = scmp.lt.s32.totalorder %s17, 0
      %s182 = scalar_select %p181, %s17, 0
      %p183 = scmp.lt.s32.totalorder %s180, 63
      %s184 = scalar_select %p183, %s180, 63
      %s185 = smul.addr %s184, 2
      %s186 = smul.addr %s182, 128
      %s187 = sadd.s32 %s185, %s186
      %s188 = smul.addr %s187, 4
      %s189 = scalar_lea.vmem %s0, %s188
      %s190 = smul.u32 32, %s18
      %p191 = scmp.lt.s32.totalorder %s17, 0
      %s192 = scalar_select %p191, %s17, 0
      %s193 = smul.addr %s192, 18
      %s194 = smul.addr %s193, 4
      %s195 = scalar_lea.vmem %s1, %s194
      %s196 = smul.u32 32, %s18
      %p197 = scmp.lt.s32.totalorder %s17, 0
      %s198 = scalar_select %p197, %s17, 0
      %p199 = scmp.lt.s32.totalorder %s196, 63
      %s200 = scalar_select %p199, %s196, 63
      %s201 = smul.addr %s198, 64
      %s202 = sadd.s32 %s200, %s201
      %s203 = smul.addr %s202, 4
      %s204 = scalar_lea.vmem %s2, %s203
      %s205 = smul.u32 32, %s18
      %v207 = vld [vmem:[%s189] sm:$0xff]
      %v208 = vld [vmem:[%s189 + $0x8] sm:$0xff]
      %v209 = vld [vmem:[%s189 + $0x10] sm:$0xff]
      %v210 = vld [vmem:[%s189 + $0x18] sm:$0xff]
      %v211 = vld [vmem:[%s189 + $0x20] sm:$0xff]
      %v212 = vld [vmem:[%s189 + $0x28] sm:$0xff]
      %v213 = vld [vmem:[%s189 + $0x30] sm:$0xff]
      %v214 = vld [vmem:[%s189 + $0x38] sm:$0xff]
      %v215 = vld [vmem:[%s189 + $0x40] sm:$0xff]
      %v216 = vld [vmem:[%s189 + $0x48] sm:$0xff]
      %v217 = vld [vmem:[%s189 + $0x50] sm:$0xff]
      %v218 = vld [vmem:[%s189 + $0x58] sm:$0xff]
      %v219 = vld [vmem:[%s189 + $0x60] sm:$0xff]
      %v220 = vld [vmem:[%s189 + $0x68] sm:$0xff]
      %v221 = vld [vmem:[%s189 + $0x70] sm:$0xff]
      %v222 = vld [vmem:[%s189 + $0x78] sm:$0xff]
      %v223 = vld [vmem:[%s189 + $0x80] sm:$0xff]
      %v224 = vld [vmem:[%s189 + $0x88] sm:$0xff]
      %v225 = vld [vmem:[%s189 + $0x90] sm:$0xff]
      %v226 = vld [vmem:[%s189 + $0x98] sm:$0xff]
      %v227 = vld [vmem:[%s189 + $0xa0] sm:$0xff]
      %v228 = vld [vmem:[%s189 + $0xa8] sm:$0xff]
      %v229 = vld [vmem:[%s189 + $0xb0] sm:$0xff]
      %v230 = vld [vmem:[%s189 + $0xb8] sm:$0xff]
      %v231 = vld [vmem:[%s189 + $0xc0] sm:$0xff]
      %v232 = vld [vmem:[%s189 + $0xc8] sm:$0xff]
      %v233 = vld [vmem:[%s189 + $0xd0] sm:$0xff]
      %v234 = vld [vmem:[%s189 + $0xd8] sm:$0xff]
      %v235 = vld [vmem:[%s189 + $0xe0] sm:$0xff]
      %v236 = vld [vmem:[%s189 + $0xe8] sm:$0xff]
      %v237 = vld [vmem:[%s189 + $0xf0] sm:$0xff]
      %v238 = vld [vmem:[%s189 + $0xf8] sm:$0xff]
      %v239 = vld [vmem:[%s195] sm:$0xf]
      %v240 = vld [vmem:[%s195 + $0x4] sm:$0xf]
      %v241 = vld [vmem:[%s195 + $0x8] sm:$0xf]
      %v242 = vld [vmem:[%s195 + $0xc] sm:$0xf]
      %v243 = vld [vmem:[%s195 + $0x10] sm:$0xf]
      %v244 = vld [vmem:[%s195 + $0x14] sm:$0xf]
      %v245 = vld [vmem:[%s195 + $0x18] sm:$0xf]
      %v246 = vld [vmem:[%s195 + $0x1c] sm:$0xf]
      %v247 = vld [vmem:[%s195 + $0x20] sm:$0xf]
      %v248 = vld [vmem:[%s195 + $0x24] sm:$0xf]
      %v249 = vld [vmem:[%s195 + $0x28] sm:$0xf]
      %v250 = vld [vmem:[%s195 + $0x2c] sm:$0xf]
      %v251 = vld [vmem:[%s195 + $0x30] sm:$0xf]
      %v252 = vld [vmem:[%s195 + $0x34] sm:$0xf]
      %v253 = vld [vmem:[%s195 + $0x38] sm:$0xf]
      %v254 = vld [vmem:[%s195 + $0x3c] sm:$0xf]
      %v255 = vld [vmem:[%s195 + $0x40] sm:$0xf]
      %v256 = vld [vmem:[%s195 + $0x44] sm:$0xf]
      %v289 = vunpack.c.l.b16 %v207
      %v290 = vunpack.c.h.b16 %v207
      %v291 = vunpack.c.l.b16 %v208
      %v292 = vunpack.c.h.b16 %v208
      %v293 = vunpack.c.l.b16 %v209
      %v294 = vunpack.c.h.b16 %v209
      %v295 = vunpack.c.l.b16 %v210
      %v296 = vunpack.c.h.b16 %v210
      %v297 = vunpack.c.l.b16 %v211
      %v298 = vunpack.c.h.b16 %v211
      %v299 = vunpack.c.l.b16 %v212
      %v300 = vunpack.c.h.b16 %v212
      %v301 = vunpack.c.l.b16 %v213
      %v302 = vunpack.c.h.b16 %v213
      %v303 = vunpack.c.l.b16 %v214
      %v304 = vunpack.c.h.b16 %v214
      %v305 = vunpack.c.l.b16 %v215
      %v306 = vunpack.c.h.b16 %v215
      %v307 = vunpack.c.l.b16 %v216
      %v308 = vunpack.c.h.b16 %v216
      %v309 = vunpack.c.l.b16 %v217
      %v310 = vunpack.c.h.b16 %v217
      %v311 = vunpack.c.l.b16 %v218
      %v312 = vunpack.c.h.b16 %v218
      %v313 = vunpack.c.l.b16 %v219
      %v314 = vunpack.c.h.b16 %v219
      %v315 = vunpack.c.l.b16 %v220
      %v316 = vunpack.c.h.b16 %v220
      %v317 = vunpack.c.l.b16 %v221
      %v318 = vunpack.c.h.b16 %v221
      %v319 = vunpack.c.l.b16 %v222
      %v320 = vunpack.c.h.b16 %v222
      %v321 = vunpack.c.l.b16 %v223
      %v322 = vunpack.c.h.b16 %v223
      %v323 = vunpack.c.l.b16 %v224
      %v324 = vunpack.c.h.b16 %v224
      %v325 = vunpack.c.l.b16 %v225
      %v326 = vunpack.c.h.b16 %v225
      %v327 = vunpack.c.l.b16 %v226
      %v328 = vunpack.c.h.b16 %v226
      %v329 = vunpack.c.l.b16 %v227
      %v330 = vunpack.c.h.b16 %v227
      %v331 = vunpack.c.l.b16 %v228
      %v332 = vunpack.c.h.b16 %v228
      %v333 = vunpack.c.l.b16 %v229
      %v334 = vunpack.c.h.b16 %v229
      %v335 = vunpack.c.l.b16 %v230
      %v336 = vunpack.c.h.b16 %v230
      %v337 = vunpack.c.l.b16 %v231
      %v338 = vunpack.c.h.b16 %v231
      %v339 = vunpack.c.l.b16 %v232
      %v340 = vunpack.c.h.b16 %v232
      %v341 = vunpack.c.l.b16 %v233
      %v342 = vunpack.c.h.b16 %v233
      %v343 = vunpack.c.l.b16 %v234
      %v344 = vunpack.c.h.b16 %v234
      %v345 = vunpack.c.l.b16 %v235
      %v346 = vunpack.c.h.b16 %v235
      %v347 = vunpack.c.l.b16 %v236
      %v348 = vunpack.c.h.b16 %v236
      %v349 = vunpack.c.l.b16 %v237
      %v350 = vunpack.c.h.b16 %v237
      %v351 = vunpack.c.l.b16 %v238
      %v352 = vunpack.c.h.b16 %v238
      %v353 = vpack.c.b16 %v291, %v289
      %v354 = vpack.c.b16 %v292, %v290
      %v355 = vpack.c.b16 %v295, %v293
      %v356 = vpack.c.b16 %v296, %v294
      %v357 = vpack.c.b16 %v299, %v297
      %v358 = vpack.c.b16 %v300, %v298
      %v359 = vpack.c.b16 %v303, %v301
      %v360 = vpack.c.b16 %v304, %v302
      %v361 = vpack.c.b16 %v307, %v305
      %v362 = vpack.c.b16 %v308, %v306
      %v363 = vpack.c.b16 %v311, %v309
      %v364 = vpack.c.b16 %v312, %v310
      %v365 = vpack.c.b16 %v315, %v313
      %v366 = vpack.c.b16 %v316, %v314
      %v367 = vpack.c.b16 %v319, %v317
      %v368 = vpack.c.b16 %v320, %v318
      %v369 = vpack.c.b16 %v323, %v321
      %v370 = vpack.c.b16 %v324, %v322
      %v371 = vpack.c.b16 %v327, %v325
      %v372 = vpack.c.b16 %v328, %v326
      %v373 = vpack.c.b16 %v331, %v329
      %v374 = vpack.c.b16 %v332, %v330
      %v375 = vpack.c.b16 %v335, %v333
      %v376 = vpack.c.b16 %v336, %v334
      %v377 = vpack.c.b16 %v339, %v337
      %v378 = vpack.c.b16 %v340, %v338
      %v379 = vpack.c.b16 %v343, %v341
      %v380 = vpack.c.b16 %v344, %v342
      %v381 = vpack.c.b16 %v347, %v345
      %v382 = vpack.c.b16 %v348, %v346
      %v383 = vpack.c.b16 %v351, %v349
      %v384 = vpack.c.b16 %v352, %v350
      %v419 = vunpack.c.l.b16 %v239
      %v420 = vunpack.c.l.b16 %v240
      %v421 = vunpack.c.l.b16 %v241
      %v422 = vunpack.c.l.b16 %v242
      %v423 = vunpack.c.l.b16 %v243
      %v424 = vunpack.c.l.b16 %v244
      %v425 = vunpack.c.l.b16 %v245
      %v426 = vunpack.c.l.b16 %v246
      %v427 = vunpack.c.l.b16 %v247
      %v428 = vunpack.c.l.b16 %v248
      %v429 = vunpack.c.l.b16 %v249
      %v430 = vunpack.c.l.b16 %v250
      %v431 = vunpack.c.l.b16 %v251
      %v432 = vunpack.c.l.b16 %v252
      %v433 = vunpack.c.l.b16 %v253
      %v434 = vunpack.c.l.b16 %v254
      %v435 = vunpack.c.l.b16 %v255
      %v436 = vunpack.c.l.b16 %v256
      %v437 = vpack.c.b16 %v420, %v419
      %v438 = vpack.c.b16 %v422, %v421
      %v439 = vpack.c.b16 %v424, %v423
      %v440 = vpack.c.b16 %v426, %v425
      %v441 = vpack.c.b16 %v428, %v427
      %v442 = vpack.c.b16 %v430, %v429
      %v443 = vpack.c.b16 %v432, %v431
      %v444 = vpack.c.b16 %v434, %v433
      %v445 = vpack.c.b16 %v436, %v435
      %vm455 = vcmask 130048
      %v457 = vsel %vm455, %v354, 0
      %v460 = vsel %vm455, %v356, 0
      %v463 = vsel %vm455, %v358, 0
      %v466 = vsel %vm455, %v360, 0
      %v469 = vsel %vm455, %v362, 0
      %v472 = vsel %vm455, %v364, 0
      %v475 = vsel %vm455, %v366, 0
      %v478 = vsel %vm455, %v368, 0
      %v481 = vsel %vm455, %v370, 0
      %v484 = vsel %vm455, %v372, 0
      %v487 = vsel %vm455, %v374, 0
      %v490 = vsel %vm455, %v376, 0
      %v493 = vsel %vm455, %v378, 0
      %v496 = vsel %vm455, %v380, 0
      %v499 = vsel %vm455, %v382, 0
      %v502 = vsel %vm455, %v384, 0
      %504 = vmatprep.subr.bf16.mxu0 0
      %505 = vmatpush1.bf16.msra.mxu0 %v437
      %506 = vmatprep.subr.bf16.mxu0 0
      %507 = vmatpush1.bf16.msra.mxu0 %v438
      %508 = vmatprep.subr.bf16.mxu0 0
      %509 = vmatpush1.bf16.msra.mxu0 %v439
      %510 = vmatprep.subr.bf16.mxu0 0
      %511 = vmatpush1.bf16.msra.mxu0 %v440
      %512 = vmatprep.subr.bf16.mxu0 0
      %513 = vmatpush1.bf16.msra.mxu0 %v441
      %514 = vmatprep.subr.bf16.mxu0 0
      %515 = vmatpush1.bf16.msra.mxu0 %v442
      %516 = vmatprep.subr.bf16.mxu0 0
      %517 = vmatpush1.bf16.msra.mxu0 %v443
      %518 = vmatprep.subr.bf16.mxu0 0
      %519 = vmatpush1.bf16.msra.mxu0 %v444
      %520 = vmatprep.subr.bf16.mxu0 0
      %521 = vmatpush1.bf16.msra.mxu0 %v445
      %522 = vmatprep.subr.bf16.mxu0 0
      %523 = vmatpush1.bf16.msra.mxu0 0
      %524 = vmatprep.subr.bf16.mxu0 0
      %525 = vmatpush1.bf16.msra.mxu0 0
      %526 = vmatprep.subr.bf16.mxu0 0
      %527 = vmatpush1.bf16.msra.mxu0 0
      %528 = vmatprep.subr.bf16.mxu0 0
      %529 = vmatpush1.bf16.msra.mxu0 0
      %530 = vmatprep.subr.bf16.mxu0 0
      %531 = vmatpush1.bf16.msra.mxu0 0
      %532 = vmatprep.subr.bf16.mxu0 0
      %533 = vmatpush1.bf16.msra.mxu0 0
      %534 = vmatprep.subr.bf16.mxu0 0
      %535 = vmatpush1.bf16.msra.mxu0 0
      %536 = vmatprep.mubr.bf16.mxu0 %v457
      %537 = vmatmul.mubr.bf16.gmra.mrb[0].mxu0 %v353
      %v538 = vpop.f32.mrb[0].mxu0
      %v539 = vadd.f32 0.0, %v538
      %v540 = vpop.f32.mrb[0].mxu0
      %v541 = vpop.f32.mrb[0].mxu0
      %v542 = vadd.f32 0.0, %v541
      %v543 = vpop.f32.mrb[0].mxu0
      %544 = vmatprep.mubr.bf16.mxu0 %v460
      %545 = vmatmul.mubr.bf16.gmra.mrb[0].mxu0 %v355
      %v546 = vpop.f32.mrb[0].mxu0
      %v547 = vadd.f32 0.0, %v546
      %v548 = vpop.f32.mrb[0].mxu0
      %v549 = vpop.f32.mrb[0].mxu0
      %v550 = vadd.f32 0.0, %v549
      %v551 = vpop.f32.mrb[0].mxu0
      %552 = vmatprep.mubr.bf16.mxu0 %v463
      %553 = vmatmul.mubr.bf16.gmra.mrb[0].mxu0 %v357
      %v554 = vpop.f32.mrb[0].mxu0
      %v555 = vadd.f32 0.0, %v554
      %v556 = vpop.f32.mrb[0].mxu0
      %v557 = vpop.f32.mrb[0].mxu0
      %v558 = vadd.f32 0.0, %v557
      %v559 = vpop.f32.mrb[0].mxu0
      %560 = vmatprep.mubr.bf16.mxu0 %v466
      %561 = vmatmul.mubr.bf16.gmra.mrb[0].mxu0 %v359
      %v562 = vpop.f32.mrb[0].mxu0
      %v563 = vadd.f32 0.0, %v562
      %v564 = vpop.f32.mrb[0].mxu0
      %v565 = vpop.f32.mrb[0].mxu0
      %v566 = vadd.f32 0.0, %v565
      %v567 = vpop.f32.mrb[0].mxu0
      %568 = vmatprep.mubr.bf16.mxu0 %v469
      %569 = vmatmul.mubr.bf16.gmra.mrb[0].mxu0 %v361
      %v570 = vpop.f32.mrb[0].mxu0
      %v571 = vadd.f32 0.0, %v570
      %v572 = vpop.f32.mrb[0].mxu0
      %v573 = vpop.f32.mrb[0].mxu0
      %v574 = vadd.f32 0.0, %v573
      %v575 = vpop.f32.mrb[0].mxu0
      %576 = vmatprep.mubr.bf16.mxu0 %v472
      %577 = vmatmul.mubr.bf16.gmra.mrb[0].mxu0 %v363
      %v578 = vpop.f32.mrb[0].mxu0
      %v579 = vadd.f32 0.0, %v578
      %v580 = vpop.f32.mrb[0].mxu0
      %v581 = vpop.f32.mrb[0].mxu0
      %v582 = vadd.f32 0.0, %v581
      %v583 = vpop.f32.mrb[0].mxu0
      %584 = vmatprep.mubr.bf16.mxu0 %v475
      %585 = vmatmul.mubr.bf16.gmra.mrb[0].mxu0 %v365
      %v586 = vpop.f32.mrb[0].mxu0
      %v587 = vadd.f32 0.0, %v586
      %v588 = vpop.f32.mrb[0].mxu0
      %v589 = vpop.f32.mrb[0].mxu0
      %v590 = vadd.f32 0.0, %v589
      %v591 = vpop.f32.mrb[0].mxu0
      %592 = vmatprep.mubr.bf16.mxu0 %v478
      %593 = vmatmul.mubr.bf16.gmra.mrb[0].mxu0 %v367
      %v594 = vpop.f32.mrb[0].mxu0
      %v595 = vadd.f32 0.0, %v594
      %v596 = vpop.f32.mrb[0].mxu0
      %v597 = vpop.f32.mrb[0].mxu0
      %v598 = vadd.f32 0.0, %v597
      %v599 = vpop.f32.mrb[0].mxu0
      %600 = vmatprep.mubr.bf16.mxu0 %v481
      %601 = vmatmul.mubr.bf16.gmra.mrb[0].mxu0 %v369
      %v602 = vpop.f32.mrb[0].mxu0
      %v603 = vadd.f32 0.0, %v602
      %v604 = vpop.f32.mrb[0].mxu0
      %v605 = vpop.f32.mrb[0].mxu0
      %v606 = vadd.f32 0.0, %v605
      %v607 = vpop.f32.mrb[0].mxu0
      %608 = vmatprep.mubr.bf16.mxu0 %v484
      %609 = vmatmul.mubr.bf16.gmra.mrb[0].mxu0 %v371
      %v610 = vpop.f32.mrb[0].mxu0
      %v611 = vadd.f32 0.0, %v610
      %v612 = vpop.f32.mrb[0].mxu0
      %v613 = vpop.f32.mrb[0].mxu0
      %v614 = vadd.f32 0.0, %v613
      %v615 = vpop.f32.mrb[0].mxu0
      %616 = vmatprep.mubr.bf16.mxu0 %v487
      %617 = vmatmul.mubr.bf16.gmra.mrb[0].mxu0 %v373
      %v618 = vpop.f32.mrb[0].mxu0
      %v619 = vadd.f32 0.0, %v618
      %v620 = vpop.f32.mrb[0].mxu0
      %v621 = vpop.f32.mrb[0].mxu0
      %v622 = vadd.f32 0.0, %v621
      %v623 = vpop.f32.mrb[0].mxu0
      %624 = vmatprep.mubr.bf16.mxu0 %v490
      %625 = vmatmul.mubr.bf16.gmra.mrb[0].mxu0 %v375
      %v626 = vpop.f32.mrb[0].mxu0
      %v627 = vadd.f32 0.0, %v626
      %v628 = vpop.f32.mrb[0].mxu0
      %v629 = vpop.f32.mrb[0].mxu0
      %v630 = vadd.f32 0.0, %v629
      %v631 = vpop.f32.mrb[0].mxu0
      %632 = vmatprep.mubr.bf16.mxu0 %v493
      %633 = vmatmul.mubr.bf16.gmra.mrb[0].mxu0 %v377
      %v634 = vpop.f32.mrb[0].mxu0
      %v635 = vadd.f32 0.0, %v634
      %v636 = vpop.f32.mrb[0].mxu0
      %v637 = vpop.f32.mrb[0].mxu0
      %v638 = vadd.f32 0.0, %v637
      %v639 = vpop.f32.mrb[0].mxu0
      %640 = vmatprep.mubr.bf16.mxu0 %v496
      %641 = vmatmul.mubr.bf16.gmra.mrb[0].mxu0 %v379
      %v642 = vpop.f32.mrb[0].mxu0
      %v643 = vadd.f32 0.0, %v642
      %v644 = vpop.f32.mrb[0].mxu0
      %v645 = vpop.f32.mrb[0].mxu0
      %v646 = vadd.f32 0.0, %v645
      %v647 = vpop.f32.mrb[0].mxu0
      %648 = vmatprep.mubr.bf16.mxu0 %v499
      %649 = vmatmul.mubr.bf16.gmra.mrb[0].mxu0 %v381
      %v650 = vpop.f32.mrb[0].mxu0
      %v651 = vadd.f32 0.0, %v650
      %v652 = vpop.f32.mrb[0].mxu0
      %v653 = vpop.f32.mrb[0].mxu0
      %v654 = vadd.f32 0.0, %v653
      %v655 = vpop.f32.mrb[0].mxu0
      %656 = vmatprep.mubr.bf16.mxu0 %v502
      %657 = vmatmul.mubr.bf16.gmra.mrb[0].mxu0 %v383
      %v658 = vpop.f32.mrb[0].mxu0
      %v659 = vadd.f32 0.0, %v658
      %v660 = vpop.f32.mrb[0].mxu0
      %v661 = vpop.f32.mrb[0].mxu0
      %v662 = vadd.f32 0.0, %v661
      %v663 = vpop.f32.mrb[0].mxu0
      %664 = vdwg.mxu0
      %v665 = vpack.c.bf16 %v542, %v539
      %v666 = vpack.c.bf16 %v550, %v547
      %v667 = vpack.c.bf16 %v558, %v555
      %v668 = vpack.c.bf16 %v566, %v563
      %v669 = vpack.c.bf16 %v574, %v571
      %v670 = vpack.c.bf16 %v582, %v579
      %v671 = vpack.c.bf16 %v590, %v587
      %v672 = vpack.c.bf16 %v598, %v595
      %v673 = vpack.c.bf16 %v606, %v603
      %v674 = vpack.c.bf16 %v614, %v611
      %v675 = vpack.c.bf16 %v622, %v619
      %v676 = vpack.c.bf16 %v630, %v627
      %v677 = vpack.c.bf16 %v638, %v635
      %v678 = vpack.c.bf16 %v646, %v643
      %v679 = vpack.c.bf16 %v654, %v651
      %v680 = vpack.c.bf16 %v662, %v659
      %v697 = vunpack.c.l.b16 %v665
      %v698 = vunpack.c.h.b16 %v665
      %v699 = vunpack.c.l.b16 %v666
      %v700 = vunpack.c.h.b16 %v666
      %v701 = vunpack.c.l.b16 %v667
      %v702 = vunpack.c.h.b16 %v667
      %v703 = vunpack.c.l.b16 %v668
      %v704 = vunpack.c.h.b16 %v668
      %v705 = vunpack.c.l.b16 %v669
      %v706 = vunpack.c.h.b16 %v669
      %v707 = vunpack.c.l.b16 %v670
      %v708 = vunpack.c.h.b16 %v670
      %v709 = vunpack.c.l.b16 %v671
      %v710 = vunpack.c.h.b16 %v671
      %v711 = vunpack.c.l.b16 %v672
      %v712 = vunpack.c.h.b16 %v672
      %v713 = vunpack.c.l.b16 %v673
      %v714 = vunpack.c.h.b16 %v673
      %v715 = vunpack.c.l.b16 %v674
      %v716 = vunpack.c.h.b16 %v674
      %v717 = vunpack.c.l.b16 %v675
      %v718 = vunpack.c.h.b16 %v675
      %v719 = vunpack.c.l.b16 %v676
      %v720 = vunpack.c.h.b16 %v676
      %v721 = vunpack.c.l.b16 %v677
      %v722 = vunpack.c.h.b16 %v677
      %v723 = vunpack.c.l.b16 %v678
      %v724 = vunpack.c.h.b16 %v678
      %v725 = vunpack.c.l.b16 %v679
      %v726 = vunpack.c.h.b16 %v679
      %v727 = vunpack.c.l.b16 %v680
      %v728 = vunpack.c.h.b16 %v680
      %v729 = vpack.c.b16 %v697, %v697
      %v730 = vpack.c.b16 %v698, %v698
      %v731 = vpack.c.b16 %v699, %v699
      %v732 = vpack.c.b16 %v700, %v700
      %v733 = vpack.c.b16 %v701, %v701
      %v734 = vpack.c.b16 %v702, %v702
      %v735 = vpack.c.b16 %v703, %v703
      %v736 = vpack.c.b16 %v704, %v704
      %v737 = vpack.c.b16 %v705, %v705
      %v738 = vpack.c.b16 %v706, %v706
      %v739 = vpack.c.b16 %v707, %v707
      %v740 = vpack.c.b16 %v708, %v708
      %v741 = vpack.c.b16 %v709, %v709
      %v742 = vpack.c.b16 %v710, %v710
      %v743 = vpack.c.b16 %v711, %v711
      %v744 = vpack.c.b16 %v712, %v712
      %v745 = vpack.c.b16 %v713, %v713
      %v746 = vpack.c.b16 %v714, %v714
      %v747 = vpack.c.b16 %v715, %v715
      %v748 = vpack.c.b16 %v716, %v716
      %v749 = vpack.c.b16 %v717, %v717
      %v750 = vpack.c.b16 %v718, %v718
      %v751 = vpack.c.b16 %v719, %v719
      %v752 = vpack.c.b16 %v720, %v720
      %v753 = vpack.c.b16 %v721, %v721
      %v754 = vpack.c.b16 %v722, %v722
      %v755 = vpack.c.b16 %v723, %v723
      %v756 = vpack.c.b16 %v724, %v724
      %v757 = vpack.c.b16 %v725, %v725
      %v758 = vpack.c.b16 %v726, %v726
      %v759 = vpack.c.b16 %v727, %v727
      %v760 = vpack.c.b16 %v728, %v728
      %vm793 = vcmask 60416
      %794 = vst.msk [vmem:[%s204] sm:$0xf] %vm793, %v729
      %795 = vst.msk [vmem:[%s204 + $0x4] sm:$0xf] %vm793, %v730
      %796 = vst.msk [vmem:[%s204 + $0x8] sm:$0xf] %vm793, %v731
      %797 = vst.msk [vmem:[%s204 + $0xc] sm:$0xf] %vm793, %v732
      %798 = vst.msk [vmem:[%s204 + $0x10] sm:$0xf] %vm793, %v733
      %799 = vst.msk [vmem:[%s204 + $0x14] sm:$0xf] %vm793, %v734
      %800 = vst.msk [vmem:[%s204 + $0x18] sm:$0xf] %vm793, %v735
      %801 = vst.msk [vmem:[%s204 + $0x1c] sm:$0xf] %vm793, %v736
      %802 = vst.msk [vmem:[%s204 + $0x20] sm:$0xf] %vm793, %v737
      %803 = vst.msk [vmem:[%s204 + $0x24] sm:$0xf] %vm793, %v738
      %804 = vst.msk [vmem:[%s204 + $0x28] sm:$0xf] %vm793, %v739
      %805 = vst.msk [vmem:[%s204 + $0x2c] sm:$0xf] %vm793, %v740
      %806 = vst.msk [vmem:[%s204 + $0x30] sm:$0xf] %vm793, %v741
      %807 = vst.msk [vmem:[%s204 + $0x34] sm:$0xf] %vm793, %v742
      %808 = vst.msk [vmem:[%s204 + $0x38] sm:$0xf] %vm793, %v743
      %809 = vst.msk [vmem:[%s204 + $0x3c] sm:$0xf] %vm793, %v744
      %810 = vst.msk [vmem:[%s204 + $0x40] sm:$0xf] %vm793, %v745
      %811 = vst.msk [vmem:[%s204 + $0x44] sm:$0xf] %vm793, %v746
      %812 = vst.msk [vmem:[%s204 + $0x48] sm:$0xf] %vm793, %v747
      %813 = vst.msk [vmem:[%s204 + $0x4c] sm:$0xf] %vm793, %v748
      %814 = vst.msk [vmem:[%s204 + $0x50] sm:$0xf] %vm793, %v749
      %815 = vst.msk [vmem:[%s204 + $0x54] sm:$0xf] %vm793, %v750
      %816 = vst.msk [vmem:[%s204 + $0x58] sm:$0xf] %vm793, %v751
      %817 = vst.msk [vmem:[%s204 + $0x5c] sm:$0xf] %vm793, %v752
      %818 = vst.msk [vmem:[%s204 + $0x60] sm:$0xf] %vm793, %v753
      %819 = vst.msk [vmem:[%s204 + $0x64] sm:$0xf] %vm793, %v754
      %820 = vst.msk [vmem:[%s204 + $0x68] sm:$0xf] %vm793, %v755
      %821 = vst.msk [vmem:[%s204 + $0x6c] sm:$0xf] %vm793, %v756
      %822 = vst.msk [vmem:[%s204 + $0x70] sm:$0xf] %vm793, %v757
      %823 = vst.msk [vmem:[%s204 + $0x74] sm:$0xf] %vm793, %v758
      %824 = vst.msk [vmem:[%s204 + $0x78] sm:$0xf] %vm793, %v759
      %825 = vst.msk [vmem:[%s204 + $0x7c] sm:$0xf] %vm793, %v760
      %s826 = smul.u32 32, %s18
      %p827 = scmp.lt.s32.totalorder %s17, 0
      %s828 = scalar_select %p827, %s17, 0
      %p829 = scmp.lt.s32.totalorder %s826, 63
      %s830 = scalar_select %p829, %s826, 63
      %s831 = smul.addr %s828, 64
      %s832 = sadd.s32 %s830, %s831
      %s833 = smul.addr %s832, 4
      %s834 = scalar_lea.vmem %s2, %s833
      // Predicated region
      $region29: #{_lambda_.3} parent=27 // pred_check
        %p835 = pneg %p99
      $region30: #{_lambda_.3} parent=27 // pred_check_branch
        %837 = sbr.rel (%p835) target = $region32
      $region31: #{_lambda_.3} parent=27 // pred_region
        %s838 = smul.u32 32, %s18
      $region32: #{_lambda_.3} parent=27 // pred_fallthru
        _
    $region28: #{_lambda_.3} parent=5 // pred_fallthru
      _
    %p839 = scmp.le.s32.totalorder 2, %s8
    // Predicated region
    $region33: #{_lambda_.3} parent=5 // pred_check
      %p840 = pneg %p839
    $region34: #{_lambda_.3} parent=5 // pred_check_branch
      %842 = sbr.rel (%p840) target = $region36
    $region35: #{_lambda_.3} parent=5 // pred_region
      %s843 = ssub.s32 %s8, 2
      // Predicated region
      $region37: #{_lambda_.3} parent=35 // pred_check
        %p844 = pneg %p105
      $region38: #{_lambda_.3} parent=35 // pred_check_branch
        %846 = sbr.rel (%p844) target = $region40
      $region39: #{_lambda_.3} parent=35 // pred_region
        %s847 = smul.u32 32, %s20
        %p848 = scmp.lt.s32.totalorder %s19, 0
        %s849 = scalar_select %p848, %s19, 0
        %p850 = scmp.lt.s32.totalorder %s847, 63
        %s851 = scalar_select %p850, %s847, 63
        %s852 = smul.addr %s849, 64
        %s853 = sadd.s32 %s851, %s852
        %s854 = smul.addr %s853, 4
        %s855 = scalar_lea.vmem %s2, %s854
      $region40: #{_lambda_.3} parent=35 // pred_fallthru
        _
    $region36: #{_lambda_.3} parent=5 // pred_fallthru
      _
  $region6: #{_lambda_.3} parent=0 // loop_footer
    %s12 = sadd.s32 1, %s8
  $region7: #{_lambda_.3} parent=0 // loop_footer_branch
    %7 = sbr.rel target = $region3
  $region8: #{_lambda_.3} parent=0 // loop_exit
    _

// kernel: _lambda_.4
$region0: #{_lambda_.4}
  #allocation0 [shape = 'u32[]', space=smem, size = 0x4, offset = 0x4, fixed_abs, tag = 'smem constant byte address 0x4 - core index']
  #allocation1 [shape = 'u32[144,128]{1,0:T(1,128)}', space=vmem, size = 0x12000, scoped, tag = 'internal scratch']
  %s0 = inlined_call_operand.vmem [shape: bf16[5,512,72], index: 0, kind: input, shape index: {}]
  %s1 = inlined_call_operand.vmem [shape: bf16[5,72,8], index: 1, kind: input, shape index: {}]
  %s2 = inlined_call_operand.vmem [shape: bf16[5,512,8], index: 2, kind: output, shape index: {}]
  %s3 = sld [smem:[#allocation0]]
  $region41: #{_lambda_.4} parent=0
    _
  %s5 = ssub.s32 1, %s3
  %s6 = scalar_select 0, %s5, %s3
  loop: start=0, step=1, limit=12
  $region2: #{_lambda_.4} parent=0 // loop_pre_header
    _
  $region3: #{_lambda_.4} parent=0 // loop_header
    %s8 = sphi 0, %s12
    %p9 = scmp.ge.s32.totalorder %s8, 12
    %s15 = sphi 0, %s27
    %s16 = sphi 0, %s23
    %s17 = sphi 0, %s15
    %s18 = sphi 0, %s16
    %s19 = sphi 0, %s17
    %s20 = sphi 0, %s18
    %s32 = sphi 0, %s34
    %s35 = sphi 0, %s32
    %s36 = sphi 0, %s35
    %s52 = sphi 0, %s36
    %s58 = sphi 0, %s60
    %s61 = sphi 0, %s58
    %s62 = sphi 0, %s61
    %s78 = sphi 0, %s62
    %s86 = sphi 0, %s88
    %s89 = sphi 0, %s86
    %s90 = sphi 0, %s89
    %s106 = sphi 0, %s90
  $region4: #{_lambda_.4} parent=0 // loop_header_branch
    %11 = sbr.rel (%p9) target = $region8
  $region5: #{_lambda_.4} parent=0 // loop_body
    %s13 = ssub.s32 %s8, 1
    %s14 = ssub.s32 %s8, 2
    %s21 = sadd.s32 1, %s16
    %p22 = scmp.ge.s32.totalorder %s21, 2
    %s23 = scalar_select %p22, 0, %s21
    %s24 = sadd.s32 1, %s15
    %s25 = scalar_select %p22, %s24, %s15
    %p26 = scmp.ge.s32.totalorder %s25, 5
    %s27 = scalar_select %p26, 0, %s25
    %s28 = ssub.s32 %s15, %s27
    %s29 = ssub.s32 %s16, %s23
    %s30 = sor.u32 %s28, %s29
    %p31 = scmp.eq.s32.totalorder %s30, 0
    %s33 = sadd.s32 %s32, 1
    %s34 = scalar_select %p31, %s32, %s33
    %p37 = pneg %p31
    %p38 = scmp.eq.s32.totalorder %s8, 9
    %p39 = por %p37, %p38
    %p40 = scmp.ne.s32.totalorder %s32, %s35
    %p41 = scmp.eq.s32.totalorder %s8, 0
    %p42 = por %p40, %p41
    %p43 = scmp.ne.s32.totalorder %s32, %s35
    %p44 = scmp.eq.s32.totalorder %s13, 9
    %p45 = por %p43, %p44
    %p46 = scmp.ne.s32.totalorder %s35, %s36
    %p47 = scmp.eq.s32.totalorder %s13, 0
    %p48 = por %p46, %p47
    %p49 = scmp.ne.s32.totalorder %s35, %s36
    %p50 = scmp.eq.s32.totalorder %s14, 9
    %p51 = por %p49, %p50
    %p53 = scmp.ne.s32.totalorder %s36, %s52
    %p54 = scmp.eq.s32.totalorder %s14, 0
    %p55 = por %p53, %p54
    %s56 = ssub.s32 %s15, %s27
    %p57 = scmp.eq.s32.totalorder %s56, 0
    %s59 = sadd.s32 %s58, 1
    %s60 = scalar_select %p57, %s58, %s59
    %p63 = pneg %p57
    %p64 = scmp.eq.s32.totalorder %s8, 9
    %p65 = por %p63, %p64
    %p66 = scmp.ne.s32.totalorder %s58, %s61
    %p67 = scmp.eq.s32.totalorder %s8, 0
    %p68 = por %p66, %p67
    %p69 = scmp.ne.s32.totalorder %s58, %s61
    %p70 = scmp.eq.s32.totalorder %s13, 9
    %p71 = por %p69, %p70
    %p72 = scmp.ne.s32.totalorder %s61, %s62
    %p73 = scmp.eq.s32.totalorder %s13, 0
    %p74 = por %p72, %p73
    %p75 = scmp.ne.s32.totalorder %s61, %s62
    %p76 = scmp.eq.s32.totalorder %s14, 9
    %p77 = por %p75, %p76
    %p79 = scmp.ne.s32.totalorder %s62, %s78
    %p80 = scmp.eq.s32.totalorder %s14, 0
    %p81 = por %p79, %p80
    %s82 = ssub.s32 %s15, %s27
    %s83 = ssub.s32 %s16, %s23
    %s84 = sor.u32 %s82, %s83
    %p85 = scmp.eq.s32.totalorder %s84, 0
    %s87 = sadd.s32 %s86, 1
    %s88 = scalar_select %p85, %s86, %s87
    %p91 = pneg %p85
    %p92 = scmp.eq.s32.totalorder %s8, 9
    %p93 = por %p91, %p92
    %p94 = scmp.ne.s32.totalorder %s86, %s89
    %p95 = scmp.eq.s32.totalorder %s8, 0
    %p96 = por %p94, %p95
    %p97 = scmp.ne.s32.totalorder %s86, %s89
    %p98 = scmp.eq.s32.totalorder %s13, 9
    %p99 = por %p97, %p98
    %p100 = scmp.ne.s32.totalorder %s89, %s90
    %p101 = scmp.eq.s32.totalorder %s13, 0
    %p102 = por %p100, %p101
    %p103 = scmp.ne.s32.totalorder %s89, %s90
    %p104 = scmp.eq.s32.totalorder %s14, 9
    %p105 = por %p103, %p104
    %p107 = scmp.ne.s32.totalorder %s90, %s106
    %p108 = scmp.eq.s32.totalorder %s14, 0
    %p109 = por %p107, %p108
    %p110 = scmp.le.s32.totalorder 1, %s8
    %p111 = scmp.lt.s32.totalorder %s8, 11
    %p112 = pnand %p110, %p111
    %p113 = pneg %p112
    // Predicated region
    $region9: #{_lambda_.4} parent=5 // pred_check
      _
    $region10: #{_lambda_.4} parent=5 // pred_check_branch
      %115 = sbr.rel (%p112) target = $region12
    $region11: #{_lambda_.4} parent=5 // pred_region
      %s116 = ssub.s32 %s8, 1
    $region12: #{_lambda_.4} parent=5 // pred_fallthru
      _
    %p117 = scmp.lt.s32.totalorder %s8, 10
    // Predicated region
    $region13: #{_lambda_.4} parent=5 // pred_check
      %p118 = pneg %p117
    $region14: #{_lambda_.4} parent=5 // pred_check_branch
      %120 = sbr.rel (%p118) target = $region16
    $region15: #{_lambda_.4} parent=5 // pred_region
      // Predicated region
      $region17: #{_lambda_.4} parent=15 // pred_check
        %p121 = pneg %p42
      $region18: #{_lambda_.4} parent=15 // pred_check_branch
        %123 = sbr.rel (%p121) target = $region20
      $region19: #{_lambda_.4} parent=15 // pred_region
        %s124 = smul.u32 32, %s16
        %p125 = scmp.lt.s32.totalorder %s15, 4
        %s126 = scalar_select %p125, %s15, 4
        %p127 = scmp.lt.s32.totalorder %s124, 63
        %s128 = scalar_select %p127, %s124, 63
        %s129 = smul.addr %s126, 64
        %s130 = sadd.s32 %s128, %s129
        %s131 = smul.addr %s130, 4
        %s132 = scalar_lea.vmem %s0, %s131
        %s133 = smul.u32 32, %s16
      $region20: #{_lambda_.4} parent=15 // pred_fallthru
        _
      // Predicated region
      $region21: #{_lambda_.4} parent=15 // pred_check
        %p134 = pneg %p68
      $region22: #{_lambda_.4} parent=15 // pred_check_branch
        %136 = sbr.rel (%p134) target = $region24
      $region23: #{_lambda_.4} parent=15 // pred_region
        %p137 = scmp.lt.s32.totalorder %s15, 4
        %s138 = scalar_select %p137, %s15, 4
        %s139 = smul.addr %s138, 9
        %s140 = smul.addr %s139, 4
        %s141 = scalar_lea.vmem %s1, %s140
      $region24: #{_lambda_.4} parent=15 // pred_fallthru
        _
    $region16: #{_lambda_.4} parent=5 // pred_fallthru
      _
    %p142 = scmp.le.s32.totalorder 1, %s8
    %p143 = scmp.lt.s32.totalorder %s8, 11
    %p144 = pnand %p142, %p143
    %p145 = pneg %p144
    // Predicated region
    $region25: #{_lambda_.4} parent=5 // pred_check
      _
    $region26: #{_lambda_.4} parent=5 // pred_check_branch
      %147 = sbr.rel (%p144) target = $region28
    $region27: #{_lambda_.4} parent=5 // pred_region
      %s148 = ssub.s32 %s8, 1
      %s149 = smul.u32 32, %s18
      %p150 = scmp.lt.s32.totalorder %s17, 4
      %s151 = scalar_select %p150, %s17, 4
      %p152 = scmp.lt.s32.totalorder %s149, 63
      %s153 = scalar_select %p152, %s149, 63
      %s154 = smul.addr %s151, 64
      %s155 = sadd.s32 %s153, %s154
      %s156 = smul.addr %s155, 4
      %s157 = scalar_lea.vmem %s0, %s156
      %p158 = pneg %p48
      %p159 = pneg %p45
      %p160 = scmp.lt.s32.totalorder %s17, 4
      %s161 = scalar_select %p160, %s17, 4
      %s162 = smul.addr %s161, 9
      %s163 = smul.addr %s162, 4
      %s164 = scalar_lea.vmem %s1, %s163
      %p165 = pneg %p74
      %p166 = pneg %p71
      %p167 = pneg %p102
      %p168 = pneg %p99
      %s169 = smul.u32 32, %s18
      %p170 = scmp.lt.s32.totalorder %s17, 4
      %s171 = scalar_select %p170, %s17, 4
      %p172 = scmp.lt.s32.totalorder %s169, 63
      %s173 = scalar_select %p172, %s169, 63
      %s174 = smul.addr %s171, 64
      %s175 = sadd.s32 %s173, %s174
      %s176 = smul.addr %s175, 4
      %s177 = scalar_lea.vmem %s2, %s176
      %s178 = smul.u32 32, %s18
      %p179 = scmp.lt.s32.totalorder %s17, 4
      %s180 = scalar_select %p179, %s17, 4
      %p181 = scmp.lt.s32.totalorder %s178, 63
      %s182 = scalar_select %p181, %s178, 63
      %s183 = smul.addr %s180, 64
      %s184 = sadd.s32 %s182, %s183
      %s185 = smul.addr %s184, 4
      %s186 = scalar_lea.vmem %s0, %s185
      %s187 = smul.u32 32, %s18
      %p188 = scmp.lt.s32.totalorder %s17, 4
      %s189 = scalar_select %p188, %s17, 4
      %s190 = smul.addr %s189, 9
      %s191 = smul.addr %s190, 4
      %s192 = scalar_lea.vmem %s1, %s191
      %s193 = smul.u32 32, %s18
      %p194 = scmp.lt.s32.totalorder %s17, 4
      %s195 = scalar_select %p194, %s17, 4
      %p196 = scmp.lt.s32.totalorder %s193, 63
      %s197 = scalar_select %p196, %s193, 63
      %s198 = smul.addr %s195, 64
      %s199 = sadd.s32 %s197, %s198
      %s200 = smul.addr %s199, 4
      %s201 = scalar_lea.vmem %s2, %s200
      %s202 = smul.u32 32, %s18
      %v204 = vld [vmem:[%s186] sm:$0xf]
      %v205 = vld [vmem:[%s186 + $0x4] sm:$0xf]
      %v206 = vld [vmem:[%s186 + $0x8] sm:$0xf]
      %v207 = vld [vmem:[%s186 + $0xc] sm:$0xf]
      %v208 = vld [vmem:[%s186 + $0x10] sm:$0xf]
      %v209 = vld [vmem:[%s186 + $0x14] sm:$0xf]
      %v210 = vld [vmem:[%s186 + $0x18] sm:$0xf]
      %v211 = vld [vmem:[%s186 + $0x1c] sm:$0xf]
      %v212 = vld [vmem:[%s186 + $0x20] sm:$0xf]
      %v213 = vld [vmem:[%s186 + $0x24] sm:$0xf]
      %v214 = vld [vmem:[%s186 + $0x28] sm:$0xf]
      %v215 = vld [vmem:[%s186 + $0x2c] sm:$0xf]
      %v216 = vld [vmem:[%s186 + $0x30] sm:$0xf]
      %v217 = vld [vmem:[%s186 + $0x34] sm:$0xf]
      %v218 = vld [vmem:[%s186 + $0x38] sm:$0xf]
      %v219 = vld [vmem:[%s186 + $0x3c] sm:$0xf]
      %v220 = vld [vmem:[%s186 + $0x40] sm:$0xf]
      %v221 = vld [vmem:[%s186 + $0x44] sm:$0xf]
      %v222 = vld [vmem:[%s186 + $0x48] sm:$0xf]
      %v223 = vld [vmem:[%s186 + $0x4c] sm:$0xf]
      %v224 = vld [vmem:[%s186 + $0x50] sm:$0xf]
      %v225 = vld [vmem:[%s186 + $0x54] sm:$0xf]
      %v226 = vld [vmem:[%s186 + $0x58] sm:$0xf]
      %v227 = vld [vmem:[%s186 + $0x5c] sm:$0xf]
      %v228 = vld [vmem:[%s186 + $0x60] sm:$0xf]
      %v229 = vld [vmem:[%s186 + $0x64] sm:$0xf]
      %v230 = vld [vmem:[%s186 + $0x68] sm:$0xf]
      %v231 = vld [vmem:[%s186 + $0x6c] sm:$0xf]
      %v232 = vld [vmem:[%s186 + $0x70] sm:$0xf]
      %v233 = vld [vmem:[%s186 + $0x74] sm:$0xf]
      %v234 = vld [vmem:[%s186 + $0x78] sm:$0xf]
      %v235 = vld [vmem:[%s186 + $0x7c] sm:$0xf]
      %v236 = vld [vmem:[%s192] sm:$0xf]
      %v237 = vld [vmem:[%s192 + $0x4] sm:$0xf]
      %v238 = vld [vmem:[%s192 + $0x8] sm:$0xf]
      %v239 = vld [vmem:[%s192 + $0xc] sm:$0xf]
      %v240 = vld [vmem:[%s192 + $0x10] sm:$0xf]
      %v241 = vld [vmem:[%s192 + $0x14] sm:$0xf]
      %v242 = vld [vmem:[%s192 + $0x18] sm:$0xf]
      %v243 = vld [vmem:[%s192 + $0x1c] sm:$0xf]
      %v244 = vld [vmem:[%s192 + $0x20] sm:$0xf]
      %v277 = vunpack.c.l.b16 %v204
      %v278 = vunpack.c.l.b16 %v205
      %v279 = vunpack.c.l.b16 %v206
      %v280 = vunpack.c.l.b16 %v207
      %v281 = vunpack.c.l.b16 %v208
      %v282 = vunpack.c.l.b16 %v209
      %v283 = vunpack.c.l.b16 %v210
      %v284 = vunpack.c.l.b16 %v211
      %v285 = vunpack.c.l.b16 %v212
      %v286 = vunpack.c.l.b16 %v213
      %v287 = vunpack.c.l.b16 %v214
      %v288 = vunpack.c.l.b16 %v215
      %v289 = vunpack.c.l.b16 %v216
      %v290 = vunpack.c.l.b16 %v217
      %v291 = vunpack.c.l.b16 %v218
      %v292 = vunpack.c.l.b16 %v219
      %v293 = vunpack.c.l.b16 %v220
      %v294 = vunpack.c.l.b16 %v221
      %v295 = vunpack.c.l.b16 %v222
      %v296 = vunpack.c.l.b16 %v223
      %v297 = vunpack.c.l.b16 %v224
      %v298 = vunpack.c.l.b16 %v225
      %v299 = vunpack.c.l.b16 %v226
      %v300 = vunpack.c.l.b16 %v227
      %v301 = vunpack.c.l.b16 %v228
      %v302 = vunpack.c.l.b16 %v229
      %v303 = vunpack.c.l.b16 %v230
      %v304 = vunpack.c.l.b16 %v231
      %v305 = vunpack.c.l.b16 %v232
      %v306 = vunpack.c.l.b16 %v233
      %v307 = vunpack.c.l.b16 %v234
      %v308 = vunpack.c.l.b16 %v235
      %v309 = vpack.c.b16 %v278, %v277
      %v310 = vpack.c.b16 %v280, %v279
      %v311 = vpack.c.b16 %v282, %v281
      %v312 = vpack.c.b16 %v284, %v283
      %v313 = vpack.c.b16 %v286, %v285
      %v314 = vpack.c.b16 %v288, %v287
      %v315 = vpack.c.b16 %v290, %v289
      %v316 = vpack.c.b16 %v292, %v291
      %v317 = vpack.c.b16 %v294, %v293
      %v318 = vpack.c.b16 %v296, %v295
      %v319 = vpack.c.b16 %v298, %v297
      %v320 = vpack.c.b16 %v300, %v299
      %v321 = vpack.c.b16 %v302, %v301
      %v322 = vpack.c.b16 %v304, %v303
      %v323 = vpack.c.b16 %v306, %v305
      %v324 = vpack.c.b16 %v308, %v307
      %v334 = vunpack.c.l.b16 %v236
      %v335 = vunpack.c.l.b16 %v237
      %v336 = vunpack.c.l.b16 %v238
      %v337 = vunpack.c.l.b16 %v239
      %v338 = vunpack.c.l.b16 %v240
      %v339 = vunpack.c.l.b16 %v241
      %v340 = vunpack.c.l.b16 %v242
      %v341 = vunpack.c.l.b16 %v243
      %v342 = vunpack.c.l.b16 %v244
      %v343 = vpack.c.b16 %v335, %v334
      %v344 = vpack.c.b16 %v337, %v336
      %v345 = vpack.c.b16 %v339, %v338
      %v346 = vpack.c.b16 %v341, %v340
      %v347 = vpack.c.b16 %v342, %v342
      %vm352 = vcmask 588800
      %v354 = vsel %vm352, %v309, 0
      %v357 = vsel %vm352, %v310, 0
      %v360 = vsel %vm352, %v311, 0
      %v363 = vsel %vm352, %v312, 0
      %v366 = vsel %vm352, %v313, 0
      %v369 = vsel %vm352, %v314, 0
      %v372 = vsel %vm352, %v315, 0
      %v375 = vsel %vm352, %v316, 0
      %v378 = vsel %vm352, %v317, 0
      %v381 = vsel %vm352, %v318, 0
      %v384 = vsel %vm352, %v319, 0
      %v387 = vsel %vm352, %v320, 0
      %v390 = vsel %vm352, %v321, 0
      %v393 = vsel %vm352, %v322, 0
      %v396 = vsel %vm352, %v323, 0
      %v399 = vsel %vm352, %v324, 0
      %vm401 = vcmask 1043456
      %v403 = vsel %vm401, %v347, 0
      %405 = vmatprep.subr.bf16.mxu0 0
      %406 = vmatpush1.bf16.msra.mxu0 %v343
      %407 = vmatprep.subr.bf16.mxu0 0
      %408 = vmatpush1.bf16.msra.mxu0 %v344
      %409 = vmatprep.subr.bf16.mxu0 0
      %410 = vmatpush1.bf16.msra.mxu0 %v345
      %411 = vmatprep.subr.bf16.mxu0 0
      %412 = vmatpush1.bf16.msra.mxu0 %v346
      %413 = vmatprep.subr.bf16.mxu0 0
      %414 = vmatpush1.bf16.msra.mxu0 %v403
      %415 = vmatprep.subr.bf16.mxu0 0
      %416 = vmatpush1.bf16.msra.mxu0 0
      %417 = vmatprep.subr.bf16.mxu0 0
      %418 = vmatpush1.bf16.msra.mxu0 0
      %419 = vmatprep.subr.bf16.mxu0 0
      %420 = vmatpush1.bf16.msra.mxu0 0
      %421 = vmatprep.subr.bf16.mxu0 0
      %422 = vmatpush1.bf16.msra.mxu0 0
      %423 = vmatprep.subr.bf16.mxu0 0
      %424 = vmatpush1.bf16.msra.mxu0 0
      %425 = vmatprep.subr.bf16.mxu0 0
      %426 = vmatpush1.bf16.msra.mxu0 0
      %427 = vmatprep.subr.bf16.mxu0 0
      %428 = vmatpush1.bf16.msra.mxu0 0
      %429 = vmatprep.subr.bf16.mxu0 0
      %430 = vmatpush1.bf16.msra.mxu0 0
      %431 = vmatprep.subr.bf16.mxu0 0
      %432 = vmatpush1.bf16.msra.mxu0 0
      %433 = vmatprep.subr.bf16.mxu0 0
      %434 = vmatpush1.bf16.msra.mxu0 0
      %435 = vmatprep.subr.bf16.mxu0 0
      %436 = vmatpush1.bf16.msra.mxu0 0
      %437 = vmatprep.mubr.bf16.mxu0 0
      %438 = vmatmul.mubr.bf16.gmra.mrb[0].mxu0 %v354
      %v439 = vpop.f32.mrb[0].mxu0
      %v440 = vadd.f32 0.0, %v439
      %v441 = vpop.f32.mrb[0].mxu0
      %v442 = vpop.f32.mrb[0].mxu0
      %v443 = vadd.f32 0.0, %v442
      %v444 = vpop.f32.mrb[0].mxu0
      %445 = vmatprep.mubr.bf16.mxu0 0
      %446 = vmatmul.mubr.bf16.gmra.mrb[0].mxu0 %v357
      %v447 = vpop.f32.mrb[0].mxu0
      %v448 = vadd.f32 0.0, %v447
      %v449 = vpop.f32.mrb[0].mxu0
      %v450 = vpop.f32.mrb[0].mxu0
      %v451 = vadd.f32 0.0, %v450
      %v452 = vpop.f32.mrb[0].mxu0
      %453 = vmatprep.mubr.bf16.mxu0 0
      %454 = vmatmul.mubr.bf16.gmra.mrb[0].mxu0 %v360
      %v455 = vpop.f32.mrb[0].mxu0
      %v456 = vadd.f32 0.0, %v455
      %v457 = vpop.f32.mrb[0].mxu0
      %v458 = vpop.f32.mrb[0].mxu0
      %v459 = vadd.f32 0.0, %v458
      %v460 = vpop.f32.mrb[0].mxu0
      %461 = vmatprep.mubr.bf16.mxu0 0
      %462 = vmatmul.mubr.bf16.gmra.mrb[0].mxu0 %v363
      %v463 = vpop.f32.mrb[0].mxu0
      %v464 = vadd.f32 0.0, %v463
      %v465 = vpop.f32.mrb[0].mxu0
      %v466 = vpop.f32.mrb[0].mxu0
      %v467 = vadd.f32 0.0, %v466
      %v468 = vpop.f32.mrb[0].mxu0
      %469 = vmatprep.mubr.bf16.mxu0 0
      %470 = vmatmul.mubr.bf16.gmra.mrb[0].mxu0 %v366
      %v471 = vpop.f32.mrb[0].mxu0
      %v472 = vadd.f32 0.0, %v471
      %v473 = vpop.f32.mrb[0].mxu0
      %v474 = vpop.f32.mrb[0].mxu0
      %v475 = vadd.f32 0.0, %v474
      %v476 = vpop.f32.mrb[0].mxu0
      %477 = vmatprep.mubr.bf16.mxu0 0
      %478 = vmatmul.mubr.bf16.gmra.mrb[0].mxu0 %v369
      %v479 = vpop.f32.mrb[0].mxu0
      %v480 = vadd.f32 0.0, %v479
      %v481 = vpop.f32.mrb[0].mxu0
      %v482 = vpop.f32.mrb[0].mxu0
      %v483 = vadd.f32 0.0, %v482
      %v484 = vpop.f32.mrb[0].mxu0
      %485 = vmatprep.mubr.bf16.mxu0 0
      %486 = vmatmul.mubr.bf16.gmra.mrb[0].mxu0 %v372
      %v487 = vpop.f32.mrb[0].mxu0
      %v488 = vadd.f32 0.0, %v487
      %v489 = vpop.f32.mrb[0].mxu0
      %v490 = vpop.f32.mrb[0].mxu0
      %v491 = vadd.f32 0.0, %v490
      %v492 = vpop.f32.mrb[0].mxu0
      %493 = vmatprep.mubr.bf16.mxu0 0
      %494 = vmatmul.mubr.bf16.gmra.mrb[0].mxu0 %v375
      %v495 = vpop.f32.mrb[0].mxu0
      %v496 = vadd.f32 0.0, %v495
      %v497 = vpop.f32.mrb[0].mxu0
      %v498 = vpop.f32.mrb[0].mxu0
      %v499 = vadd.f32 0.0, %v498
      %v500 = vpop.f32.mrb[0].mxu0
      %501 = vmatprep.mubr.bf16.mxu0 0
      %502 = vmatmul.mubr.bf16.gmra.mrb[0].mxu0 %v378
      %v503 = vpop.f32.mrb[0].mxu0
      %v504 = vadd.f32 0.0, %v503
      %v505 = vpop.f32.mrb[0].mxu0
      %v506 = vpop.f32.mrb[0].mxu0
      %v507 = vadd.f32 0.0, %v506
      %v508 = vpop.f32.mrb[0].mxu0
      %509 = vmatprep.mubr.bf16.mxu0 0
      %510 = vmatmul.mubr.bf16.gmra.mrb[0].mxu0 %v381
      %v511 = vpop.f32.mrb[0].mxu0
      %v512 = vadd.f32 0.0, %v511
      %v513 = vpop.f32.mrb[0].mxu0
      %v514 = vpop.f32.mrb[0].mxu0
      %v515 = vadd.f32 0.0, %v514
      %v516 = vpop.f32.mrb[0].mxu0
      %517 = vmatprep.mubr.bf16.mxu0 0
      %518 = vmatmul.mubr.bf16.gmra.mrb[0].mxu0 %v384
      %v519 = vpop.f32.mrb[0].mxu0
      %v520 = vadd.f32 0.0, %v519
      %v521 = vpop.f32.mrb[0].mxu0
      %v522 = vpop.f32.mrb[0].mxu0
      %v523 = vadd.f32 0.0, %v522
      %v524 = vpop.f32.mrb[0].mxu0
      %525 = vmatprep.mubr.bf16.mxu0 0
      %526 = vmatmul.mubr.bf16.gmra.mrb[0].mxu0 %v387
      %v527 = vpop.f32.mrb[0].mxu0
      %v528 = vadd.f32 0.0, %v527
      %v529 = vpop.f32.mrb[0].mxu0
      %v530 = vpop.f32.mrb[0].mxu0
      %v531 = vadd.f32 0.0, %v530
      %v532 = vpop.f32.mrb[0].mxu0
      %533 = vmatprep.mubr.bf16.mxu0 0
      %534 = vmatmul.mubr.bf16.gmra.mrb[0].mxu0 %v390
      %v535 = vpop.f32.mrb[0].mxu0
      %v536 = vadd.f32 0.0, %v535
      %v537 = vpop.f32.mrb[0].mxu0
      %v538 = vpop.f32.mrb[0].mxu0
      %v539 = vadd.f32 0.0, %v538
      %v540 = vpop.f32.mrb[0].mxu0
      %541 = vmatprep.mubr.bf16.mxu0 0
      %542 = vmatmul.mubr.bf16.gmra.mrb[0].mxu0 %v393
      %v543 = vpop.f32.mrb[0].mxu0
      %v544 = vadd.f32 0.0, %v543
      %v545 = vpop.f32.mrb[0].mxu0
      %v546 = vpop.f32.mrb[0].mxu0
      %v547 = vadd.f32 0.0, %v546
      %v548 = vpop.f32.mrb[0].mxu0
      %549 = vmatprep.mubr.bf16.mxu0 0
      %550 = vmatmul.mubr.bf16.gmra.mrb[0].mxu0 %v396
      %v551 = vpop.f32.mrb[0].mxu0
      %v552 = vadd.f32 0.0, %v551
      %v553 = vpop.f32.mrb[0].mxu0
      %v554 = vpop.f32.mrb[0].mxu0
      %v555 = vadd.f32 0.0, %v554
      %v556 = vpop.f32.mrb[0].mxu0
      %557 = vmatprep.mubr.bf16.mxu0 0
      %558 = vmatmul.mubr.bf16.gmra.mrb[0].mxu0 %v399
      %v559 = vpop.f32.mrb[0].mxu0
      %v560 = vadd.f32 0.0, %v559
      %v561 = vpop.f32.mrb[0].mxu0
      %v562 = vpop.f32.mrb[0].mxu0
      %v563 = vadd.f32 0.0, %v562
      %v564 = vpop.f32.mrb[0].mxu0
      %565 = vdwg.mxu0
      %v566 = vpack.c.bf16 %v443, %v440
      %v567 = vpack.c.bf16 %v451, %v448
      %v568 = vpack.c.bf16 %v459, %v456
      %v569 = vpack.c.bf16 %v467, %v464
      %v570 = vpack.c.bf16 %v475, %v472
      %v571 = vpack.c.bf16 %v483, %v480
      %v572 = vpack.c.bf16 %v491, %v488
      %v573 = vpack.c.bf16 %v499, %v496
      %v574 = vpack.c.bf16 %v507, %v504
      %v575 = vpack.c.bf16 %v515, %v512
      %v576 = vpack.c.bf16 %v523, %v520
      %v577 = vpack.c.bf16 %v531, %v528
      %v578 = vpack.c.bf16 %v539, %v536
      %v579 = vpack.c.bf16 %v547, %v544
      %v580 = vpack.c.bf16 %v555, %v552
      %v581 = vpack.c.bf16 %v563, %v560
      %v598 = vunpack.c.l.b16 %v566
      %v599 = vunpack.c.h.b16 %v566
      %v600 = vunpack.c.l.b16 %v567
      %v601 = vunpack.c.h.b16 %v567
      %v602 = vunpack.c.l.b16 %v568
      %v603 = vunpack.c.h.b16 %v568
      %v604 = vunpack.c.l.b16 %v569
      %v605 = vunpack.c.h.b16 %v569
      %v606 = vunpack.c.l.b16 %v570
      %v607 = vunpack.c.h.b16 %v570
      %v608 = vunpack.c.l.b16 %v571
      %v609 = vunpack.c.h.b16 %v571
      %v610 = vunpack.c.l.b16 %v572
      %v611 = vunpack.c.h.b16 %v572
      %v612 = vunpack.c.l.b16 %v573
      %v613 = vunpack.c.h.b16 %v573
      %v614 = vunpack.c.l.b16 %v574
      %v615 = vunpack.c.h.b16 %v574
      %v616 = vunpack.c.l.b16 %v575
      %v617 = vunpack.c.h.b16 %v575
      %v618 = vunpack.c.l.b16 %v576
      %v619 = vunpack.c.h.b16 %v576
      %v620 = vunpack.c.l.b16 %v577
      %v621 = vunpack.c.h.b16 %v577
      %v622 = vunpack.c.l.b16 %v578
      %v623 = vunpack.c.h.b16 %v578
      %v624 = vunpack.c.l.b16 %v579
      %v625 = vunpack.c.h.b16 %v579
      %v626 = vunpack.c.l.b16 %v580
      %v627 = vunpack.c.h.b16 %v580
      %v628 = vunpack.c.l.b16 %v581
      %v629 = vunpack.c.h.b16 %v581
      %v630 = vpack.c.b16 %v598, %v598
      %v631 = vpack.c.b16 %v599, %v599
      %v632 = vpack.c.b16 %v600, %v600
      %v633 = vpack.c.b16 %v601, %v601
      %v634 = vpack.c.b16 %v602, %v602
      %v635 = vpack.c.b16 %v603, %v603
      %v636 = vpack.c.b16 %v604, %v604
      %v637 = vpack.c.b16 %v605, %v605
      %v638 = vpack.c.b16 %v606, %v606
      %v639 = vpack.c.b16 %v607, %v607
      %v640 = vpack.c.b16 %v608, %v608
      %v641 = vpack.c.b16 %v609, %v609
      %v642 = vpack.c.b16 %v610, %v610
      %v643 = vpack.c.b16 %v611, %v611
      %v644 = vpack.c.b16 %v612, %v612
      %v645 = vpack.c.b16 %v613, %v613
      %v646 = vpack.c.b16 %v614, %v614
      %v647 = vpack.c.b16 %v615, %v615
      %v648 = vpack.c.b16 %v616, %v616
      %v649 = vpack.c.b16 %v617, %v617
      %v650 = vpack.c.b16 %v618, %v618
      %v651 = vpack.c.b16 %v619, %v619
      %v652 = vpack.c.b16 %v620, %v620
      %v653 = vpack.c.b16 %v621, %v621
      %v654 = vpack.c.b16 %v622, %v622
      %v655 = vpack.c.b16 %v623, %v623
      %v656 = vpack.c.b16 %v624, %v624
      %v657 = vpack.c.b16 %v625, %v625
      %v658 = vpack.c.b16 %v626, %v626
      %v659 = vpack.c.b16 %v627, %v627
      %v660 = vpack.c.b16 %v628, %v628
      %v661 = vpack.c.b16 %v629, %v629
      %vm694 = vcmask 60416
      %695 = vst.msk [vmem:[%s201] sm:$0xf] %vm694, %v630
      %696 = vst.msk [vmem:[%s201 + $0x4] sm:$0xf] %vm694, %v631
      %697 = vst.msk [vmem:[%s201 + $0x8] sm:$0xf] %vm694, %v632
      %698 = vst.msk [vmem:[%s201 + $0xc] sm:$0xf] %vm694, %v633
      %699 = vst.msk [vmem:[%s201 + $0x10] sm:$0xf] %vm694, %v634
      %700 = vst.msk [vmem:[%s201 + $0x14] sm:$0xf] %vm694, %v635
      %701 = vst.msk [vmem:[%s201 + $0x18] sm:$0xf] %vm694, %v636
      %702 = vst.msk [vmem:[%s201 + $0x1c] sm:$0xf] %vm694, %v637
      %703 = vst.msk [vmem:[%s201 + $0x20] sm:$0xf] %vm694, %v638
      %704 = vst.msk [vmem:[%s201 + $0x24] sm:$0xf] %vm694, %v639
      %705 = vst.msk [vmem:[%s201 + $0x28] sm:$0xf] %vm694, %v640
      %706 = vst.msk [vmem:[%s201 + $0x2c] sm:$0xf] %vm694, %v641
      %707 = vst.msk [vmem:[%s201 + $0x30] sm:$0xf] %vm694, %v642
      %708 = vst.msk [vmem:[%s201 + $0x34] sm:$0xf] %vm694, %v643
      %709 = vst.msk [vmem:[%s201 + $0x38] sm:$0xf] %vm694, %v644
      %710 = vst.msk [vmem:[%s201 + $0x3c] sm:$0xf] %vm694, %v645
      %711 = vst.msk [vmem:[%s201 + $0x40] sm:$0xf] %vm694, %v646
      %712 = vst.msk [vmem:[%s201 + $0x44] sm:$0xf] %vm694, %v647
      %713 = vst.msk [vmem:[%s201 + $0x48] sm:$0xf] %vm694, %v648
      %714 = vst.msk [vmem:[%s201 + $0x4c] sm:$0xf] %vm694, %v649
      %715 = vst.msk [vmem:[%s201 + $0x50] sm:$0xf] %vm694, %v650
      %716 = vst.msk [vmem:[%s201 + $0x54] sm:$0xf] %vm694, %v651
      %717 = vst.msk [vmem:[%s201 + $0x58] sm:$0xf] %vm694, %v652
      %718 = vst.msk [vmem:[%s201 + $0x5c] sm:$0xf] %vm694, %v653
      %719 = vst.msk [vmem:[%s201 + $0x60] sm:$0xf] %vm694, %v654
      %720 = vst.msk [vmem:[%s201 + $0x64] sm:$0xf] %vm694, %v655
      %721 = vst.msk [vmem:[%s201 + $0x68] sm:$0xf] %vm694, %v656
      %722 = vst.msk [vmem:[%s201 + $0x6c] sm:$0xf] %vm694, %v657
      %723 = vst.msk [vmem:[%s201 + $0x70] sm:$0xf] %vm694, %v658
      %724 = vst.msk [vmem:[%s201 + $0x74] sm:$0xf] %vm694, %v659
      %725 = vst.msk [vmem:[%s201 + $0x78] sm:$0xf] %vm694, %v660
      %726 = vst.msk [vmem:[%s201 + $0x7c] sm:$0xf] %vm694, %v661
      %s727 = smul.u32 32, %s18
      %p728 = scmp.lt.s32.totalorder %s17, 4
      %s729 = scalar_select %p728, %s17, 4
      %p730 = scmp.lt.s32.totalorder %s727, 63
      %s731 = scalar_select %p730, %s727, 63
      %s732 = smul.addr %s729, 64
      %s733 = sadd.s32 %s731, %s732
      %s734 = smul.addr %s733, 4
      %s735 = scalar_lea.vmem %s2, %s734
      // Predicated region
      $region29: #{_lambda_.4} parent=27 // pred_check
        %p736 = pneg %p99
      $region30: #{_lambda_.4} parent=27 // pred_check_branch
        %738 = sbr.rel (%p736) target = $region32
      $region31: #{_lambda_.4} parent=27 // pred_region
        %s739 = smul.u32 32, %s18
      $region32: #{_lambda_.4} parent=27 // pred_fallthru
        _
    $region28: #{_lambda_.4} parent=5 // pred_fallthru
      _
    %p740 = scmp.le.s32.totalorder 2, %s8
    // Predicated region
    $region33: #{_lambda_.4} parent=5 // pred_check
      %p741 = pneg %p740
    $region34: #{_lambda_.4} parent=5 // pred_check_branch
      %743 = sbr.rel (%p741) target = $region36
    $region35: #{_lambda_.4} parent=5 // pred_region
      %s744 = ssub.s32 %s8, 2
      // Predicated region
      $region37: #{_lambda_.4} parent=35 // pred_check
        %p745 = pneg %p105
      $region38: #{_lambda_.4} parent=35 // pred_check_branch
        %747 = sbr.rel (%p745) target = $region40
      $region39: #{_lambda_.4} parent=35 // pred_region
        %s748 = smul.u32 32, %s20
        %p749 = scmp.lt.s32.totalorder %s19, 4
        %s750 = scalar_select %p749, %s19, 4
        %p751 = scmp.lt.s32.totalorder %s748, 63
        %s752 = scalar_select %p751, %s748, 63
        %s753 = smul.addr %s750, 64
        %s754 = sadd.s32 %s752, %s753
        %s755 = smul.addr %s754, 4
        %s756 = scalar_lea.vmem %s2, %s755
      $region40: #{_lambda_.4} parent=35 // pred_fallthru
        _
    $region36: #{_lambda_.4} parent=5 // pred_fallthru
      _
  $region6: #{_lambda_.4} parent=0 // loop_footer
    %s12 = sadd.s32 1, %s8
  $region7: #{_lambda_.4} parent=0 // loop_footer_branch
    %7 = sbr.rel target = $region3
  $region8: #{_lambda_.4} parent=0 // loop_exit
    _

// kernel: _lambda_.5
$region0: #{_lambda_.5}
  #allocation0 [shape = 'u32[]', space=smem, size = 0x4, offset = 0x4, fixed_abs, tag = 'smem constant byte address 0x4 - core index']
  #allocation1 [shape = 'u32[144,128]{1,0:T(1,128)}', space=vmem, size = 0x12000, scoped, tag = 'internal scratch']
  %s0 = inlined_call_operand.vmem [shape: bf16[5,512,8], index: 0, kind: input, shape index: {}]
  %s1 = inlined_call_operand.vmem [shape: f32[1,40], index: 1, kind: input, shape index: {}]
  %s2 = inlined_call_operand.vmem [shape: f32[1,40], index: 2, kind: input, shape index: {}]
  %s3 = inlined_call_operand.vmem [shape: f32[1,40], index: 3, kind: input, shape index: {}]
  %s4 = inlined_call_operand.hbm [shape: f32[512,40], index: 4, kind: output, shape index: {}]
  %s5 = sld [smem:[#allocation0]]
  $region90: #{_lambda_.5} parent=0
    _
  %s7 = ssub.s32 1, %s5
  %s8 = scalar_select 0, %s7, %s5
  $region1: #{_lambda_.5} parent=0
    #allocation2 [shape = 'u8[655360]{0}', space=vmem, size = 0xa0000, scoped, tag = 'input window, operand 0']
    #allocation3 [shape = 'u8[262144]{0}', space=vmem, size = 0x40000, scoped, tag = 'output window, operand 0']
    #allocation4 [shape = 's32[2]{0}', space=sflag, size = 0x8, scoped, tag = 'scoped memory for _lambda_.5']
    %9 = vsyncpa [#allocation4], 0
    %s10 = scalar_lea.sflag [#allocation4], 1
    %11 = vsyncpa %s10, 0
    loop: start=0, step=1, limit=4
    $region2: #{_lambda_.5} parent=1 // loop_pre_header
      _
    $region3: #{_lambda_.5} parent=1 // loop_header
      %s13 = sphi 0, %s17
      %p14 = scmp.ge.s32.totalorder %s13, 4
      %s23 = sphi 0, %s25
      %s26 = sphi 0, %s23
      %s27 = sphi 0, %s26
      %s43 = sphi 0, %s27
      %s47 = sphi 0, %s47
      %s49 = sphi 0, %s47
      %s50 = sphi 0, %s49
      %s64 = sphi 0, %s50
      %s68 = sphi 0, %s68
      %s70 = sphi 0, %s68
      %s71 = sphi 0, %s70
      %s85 = sphi 0, %s71
      %s89 = sphi 0, %s89
      %s91 = sphi 0, %s89
      %s92 = sphi 0, %s91
      %s106 = sphi 0, %s92
      %s112 = sphi 0, %s114
      %s115 = sphi 0, %s112
      %s116 = sphi 0, %s115
      %s132 = sphi 0, %s116
    $region4: #{_lambda_.5} parent=1 // loop_header_branch
      %16 = sbr.rel (%p14) target = $region8
    $region5: #{_lambda_.5} parent=1 // loop_body
      %s18 = ssub.s32 %s13, 1
      %s19 = ssub.s32 %s13, 2
      %s20 = sadd.s32 %s13, 1
      %s21 = ssub.s32 %s13, %s20
      %p22 = scmp.eq.s32.totalorder %s21, 0
      %s24 = sadd.s32 %s23, 1
      %s25 = scalar_select %p22, %s23, %s24
      %p28 = pneg %p22
      %p29 = scmp.eq.s32.totalorder %s13, 1
      %p30 = por %p28, %p29
      %p31 = scmp.ne.s32.totalorder %s23, %s26
      %p32 = scmp.eq.s32.totalorder %s13, 0
      %p33 = por %p31, %p32
      %p34 = scmp.ne.s32.totalorder %s23, %s26
      %p35 = scmp.eq.s32.totalorder %s18, 1
      %p36 = por %p34, %p35
      %p37 = scmp.ne.s32.totalorder %s26, %s27
      %p38 = scmp.eq.s32.totalorder %s18, 0
      %p39 = por %p37, %p38
      %p40 = scmp.ne.s32.totalorder %s26, %s27
      %p41 = scmp.eq.s32.totalorder %s19, 1
      %p42 = por %p40, %p41
      %p44 = scmp.ne.s32.totalorder %s27, %s43
      %p45 = scmp.eq.s32.totalorder %s19, 0
      %p46 = por %p44, %p45
      %s48 = sadd.s32 %s47, 1
      %p51 = scmp.eq.s32.totalorder %s13, 1
      %p52 = scmp.ne.s32.totalorder %s47, %s49
      %p53 = scmp.eq.s32.totalorder %s13, 0
      %p54 = por %p52, %p53
      %p55 = scmp.ne.s32.totalorder %s47, %s49
      %p56 = scmp.eq.s32.totalorder %s18, 1
      %p57 = por %p55, %p56
      %p58 = scmp.ne.s32.totalorder %s49, %s50
      %p59 = scmp.eq.s32.totalorder %s18, 0
      %p60 = por %p58, %p59
      %p61 = scmp.ne.s32.totalorder %s49, %s50
      %p62 = scmp.eq.s32.totalorder %s19, 1
      %p63 = por %p61, %p62
      %p65 = scmp.ne.s32.totalorder %s50, %s64
      %p66 = scmp.eq.s32.totalorder %s19, 0
      %p67 = por %p65, %p66
      %s69 = sadd.s32 %s68, 1
      %p72 = scmp.eq.s32.totalorder %s13, 1
      %p73 = scmp.ne.s32.totalorder %s68, %s70
      %p74 = scmp.eq.s32.totalorder %s13, 0
      %p75 = por %p73, %p74
      %p76 = scmp.ne.s32.totalorder %s68, %s70
      %p77 = scmp.eq.s32.totalorder %s18, 1
      %p78 = por %p76, %p77
      %p79 = scmp.ne.s32.totalorder %s70, %s71
      %p80 = scmp.eq.s32.totalorder %s18, 0
      %p81 = por %p79, %p80
      %p82 = scmp.ne.s32.totalorder %s70, %s71
      %p83 = scmp.eq.s32.totalorder %s19, 1
      %p84 = por %p82, %p83
      %p86 = scmp.ne.s32.totalorder %s71, %s85
      %p87 = scmp.eq.s32.totalorder %s19, 0
      %p88 = por %p86, %p87
      %s90 = sadd.s32 %s89, 1
      %p93 = scmp.eq.s32.totalorder %s13, 1
      %p94 = scmp.ne.s32.totalorder %s89, %s91
      %p95 = scmp.eq.s32.totalorder %s13, 0
      %p96 = por %p94, %p95
      %p97 = scmp.ne.s32.totalorder %s89, %s91
      %p98 = scmp.eq.s32.totalorder %s18, 1
      %p99 = por %p97, %p98
      %p100 = scmp.ne.s32.totalorder %s91, %s92
      %p101 = scmp.eq.s32.totalorder %s18, 0
      %p102 = por %p100, %p101
      %p103 = scmp.ne.s32.totalorder %s91, %s92
      %p104 = scmp.eq.s32.totalorder %s19, 1
      %p105 = por %p103, %p104
      %p107 = scmp.ne.s32.totalorder %s92, %s106
      %p108 = scmp.eq.s32.totalorder %s19, 0
      %p109 = por %p107, %p108
      %s110 = ssub.s32 %s13, %s20
      %p111 = scmp.eq.s32.totalorder %s110, 0
      %s113 = sadd.s32 %s112, 1
      %s114 = scalar_select %p111, %s112, %s113
      %p117 = pneg %p111
      %p118 = scmp.eq.s32.totalorder %s13, 1
      %p119 = por %p117, %p118
      %p120 = scmp.ne.s32.totalorder %s112, %s115
      %p121 = scmp.eq.s32.totalorder %s13, 0
      %p122 = por %p120, %p121
      %p123 = scmp.ne.s32.totalorder %s112, %s115
      %p124 = scmp.eq.s32.totalorder %s18, 1
      %p125 = por %p123, %p124
      %p126 = scmp.ne.s32.totalorder %s115, %s116
      %p127 = scmp.eq.s32.totalorder %s18, 0
      %p128 = por %p126, %p127
      %p129 = scmp.ne.s32.totalorder %s115, %s116
      %p130 = scmp.eq.s32.totalorder %s19, 1
      %p131 = por %p129, %p130
      %p133 = scmp.ne.s32.totalorder %s116, %s132
      %p134 = scmp.eq.s32.totalorder %s19, 0
      %p135 = por %p133, %p134
      %p136 = scmp.le.s32.totalorder 1, %s13
      %p137 = scmp.lt.s32.totalorder %s13, 3
      %p138 = pnand %p136, %p137
      %p139 = pneg %p138
      // Predicated region
      $region9: #{_lambda_.5} parent=5 // pred_check
        _
      $region10: #{_lambda_.5} parent=5 // pred_check_branch
        %141 = sbr.rel (%p138) target = $region12
      $region11: #{_lambda_.5} parent=5 // pred_region
        %s142 = ssub.s32 %s13, 1
        // Predicated region
        $region13: #{_lambda_.5} parent=11 // pred_check
          %p143 = pneg %p60
        $region14: #{_lambda_.5} parent=11 // pred_check_branch
          %145 = sbr.rel (%p143) target = $region16
        $region15: #{_lambda_.5} parent=11 // pred_region
          _
        $region16: #{_lambda_.5} parent=11 // pred_fallthru
          _
        // Predicated region
        $region17: #{_lambda_.5} parent=11 // pred_check
          %p146 = pneg %p81
        $region18: #{_lambda_.5} parent=11 // pred_check_branch
          %148 = sbr.rel (%p146) target = $region20
        $region19: #{_lambda_.5} parent=11 // pred_region
          _
        $region20: #{_lambda_.5} parent=11 // pred_fallthru
          _
        // Predicated region
        $region21: #{_lambda_.5} parent=11 // pred_check
          %p149 = pneg %p102
        $region22: #{_lambda_.5} parent=11 // pred_check_branch
          %151 = sbr.rel (%p149) target = $region24
        $region23: #{_lambda_.5} parent=11 // pred_region
          _
        $region24: #{_lambda_.5} parent=11 // pred_fallthru
          _
      $region12: #{_lambda_.5} parent=5 // pred_fallthru
        _
      %p152 = scmp.lt.s32.totalorder %s13, 2
      // Predicated region
      $region25: #{_lambda_.5} parent=5 // pred_check
        %p153 = pneg %p152
      $region26: #{_lambda_.5} parent=5 // pred_check_branch
        %155 = sbr.rel (%p153) target = $region28
      $region27: #{_lambda_.5} parent=5 // pred_region
        // Predicated region
        $region29: #{_lambda_.5} parent=27 // pred_check
          %p156 = pneg %p33
        $region30: #{_lambda_.5} parent=27 // pred_check_branch
          %158 = sbr.rel (%p156) target = $region32
        $region31: #{_lambda_.5} parent=27 // pred_region
          %s159 = sand.u32 %s23, 1
          %s160 = sand.u32 %s23, 1
          %s161 = smul.addr %s160, 640
          %s162 = scalar_lea.vmem [#allocation2], %s161
          %s163 = smul.u32 32, %s13
          %s164 = smul.addr %s163, 4
          %s165 = scalar_lea.vmem %s0, %s164
          // Predicated region
          $region33: #{_lambda_.5} parent=31 // pred_check
            _
          $region34: #{_lambda_.5} parent=31 // pred_check_branch
            %167 = sbr.rel (0) target = $region36
          $region35: #{_lambda_.5} parent=31 // pred_region
            // Predicated region
            $region37: #{_lambda_.5} parent=35 // pred_check
              _
            $region38: #{_lambda_.5} parent=35 // pred_check_branch
              %169 = sbr.rel target = $region40
            $region39: #{_lambda_.5} parent=35 // pred_region
              // Predicated region
              $region52: #{_lambda_.5} parent=39 // pred_check
                _
              $region53: #{_lambda_.5} parent=39 // pred_check_branch
                %502 = sbr.rel (0) target = $region55
              $region54: #{_lambda_.5} parent=39 // pred_region
                loop: start=0, step=1, limit=1
                $region56: #{_lambda_.5} parent=54 // loop_pre_header
                  _
                $region57: #{_lambda_.5} parent=54 // loop_header
                  %s504 = sphi 0, %s508
                  %p505 = scmp.ge.s32.totalorder %s504, 1
                  %s509 = sphi %s165, %s165
                  %s510 = sphi %s162, %s162
                $region58: #{_lambda_.5} parent=54 // loop_header_branch
                  %507 = sbr.rel (%p505) target = $region62
                $region59: #{_lambda_.5} parent=54 // loop_body
                  _
                $region60: #{_lambda_.5} parent=54 // loop_footer
                  %s508 = sadd.s32 1, %s504
                $region61: #{_lambda_.5} parent=54 // loop_footer_branch
                  %503 = sbr.rel target = $region57
                $region62: #{_lambda_.5} parent=54 // loop_exit
                  _
                loop: start=0, step=1, limit=1
                $region63: #{_lambda_.5} parent=54 // loop_pre_header
                  _
                $region64: #{_lambda_.5} parent=54 // loop_header
                  %s513 = sphi 0, %s517
                  %p514 = scmp.ge.s32.totalorder %s513, 1
                  %s518 = sphi %s165, %s165
                  %s519 = sphi %s162, %s162
                $region65: #{_lambda_.5} parent=54 // loop_header_branch
                  %516 = sbr.rel (%p514) target = $region69
                $region66: #{_lambda_.5} parent=54 // loop_body
                  %v520 = vld [vmem:[%s518] sm:$0xf]
                  %521 = vst [vmem:[%s519] sm:$0xf] %v520
                  %v522 = vld [vmem:[%s518 + $0x4] sm:$0xf]
                  %523 = vst [vmem:[%s519 + $0x4] sm:$0xf] %v522
                  %v524 = vld [vmem:[%s518 + $0x8] sm:$0xf]
                  %525 = vst [vmem:[%s519 + $0x8] sm:$0xf] %v524
                  %v526 = vld [vmem:[%s518 + $0xc] sm:$0xf]
                  %527 = vst [vmem:[%s519 + $0xc] sm:$0xf] %v526
                  %v528 = vld [vmem:[%s518 + $0x10] sm:$0xf]
                  %529 = vst [vmem:[%s519 + $0x10] sm:$0xf] %v528
                  %v530 = vld [vmem:[%s518 + $0x14] sm:$0xf]
                  %531 = vst [vmem:[%s519 + $0x14] sm:$0xf] %v530
                  %v532 = vld [vmem:[%s518 + $0x18] sm:$0xf]
                  %533 = vst [vmem:[%s519 + $0x18] sm:$0xf] %v532
                  %v534 = vld [vmem:[%s518 + $0x1c] sm:$0xf]
                  %535 = vst [vmem:[%s519 + $0x1c] sm:$0xf] %v534
                  %v536 = vld [vmem:[%s518 + $0x20] sm:$0xf]
                  %537 = vst [vmem:[%s519 + $0x20] sm:$0xf] %v536
                  %v538 = vld [vmem:[%s518 + $0x24] sm:$0xf]
                  %539 = vst [vmem:[%s519 + $0x24] sm:$0xf] %v538
                  %v540 = vld [vmem:[%s518 + $0x28] sm:$0xf]
                  %541 = vst [vmem:[%s519 + $0x28] sm:$0xf] %v540
                  %v542 = vld [vmem:[%s518 + $0x2c] sm:$0xf]
                  %543 = vst [vmem:[%s519 + $0x2c] sm:$0xf] %v542
                  %v544 = vld [vmem:[%s518 + $0x30] sm:$0xf]
                  %545 = vst [vmem:[%s519 + $0x30] sm:$0xf] %v544
                  %v546 = vld [vmem:[%s518 + $0x34] sm:$0xf]
                  %547 = vst [vmem:[%s519 + $0x34] sm:$0xf] %v546
                  %v548 = vld [vmem:[%s518 + $0x38] sm:$0xf]
                  %549 = vst [vmem:[%s519 + $0x38] sm:$0xf] %v548
                  %v550 = vld [vmem:[%s518 + $0x3c] sm:$0xf]
                  %551 = vst [vmem:[%s519 + $0x3c] sm:$0xf] %v550
                  %v552 = vld [vmem:[%s518 + $0x40] sm:$0xf]
                  %553 = vst [vmem:[%s519 + $0x40] sm:$0xf] %v552
                  %v554 = vld [vmem:[%s518 + $0x44] sm:$0xf]
                  %555 = vst [vmem:[%s519 + $0x44] sm:$0xf] %v554
                  %v556 = vld [vmem:[%s518 + $0x48] sm:$0xf]
                  %557 = vst [vmem:[%s519 + $0x48] sm:$0xf] %v556
                  %v558 = vld [vmem:[%s518 + $0x4c] sm:$0xf]
                  %559 = vst [vmem:[%s519 + $0x4c] sm:$0xf] %v558
                  %v560 = vld [vmem:[%s518 + $0x50] sm:$0xf]
                  %561 = vst [vmem:[%s519 + $0x50] sm:$0xf] %v560
                  %v562 = vld [vmem:[%s518 + $0x54] sm:$0xf]
                  %563 = vst [vmem:[%s519 + $0x54] sm:$0xf] %v562
                  %v564 = vld [vmem:[%s518 + $0x58] sm:$0xf]
                  %565 = vst [vmem:[%s519 + $0x58] sm:$0xf] %v564
                  %v566 = vld [vmem:[%s518 + $0x5c] sm:$0xf]
                  %567 = vst [vmem:[%s519 + $0x5c] sm:$0xf] %v566
                  %v568 = vld [vmem:[%s518 + $0x60] sm:$0xf]
                  %569 = vst [vmem:[%s519 + $0x60] sm:$0xf] %v568
                  %v570 = vld [vmem:[%s518 + $0x64] sm:$0xf]
                  %571 = vst [vmem:[%s519 + $0x64] sm:$0xf] %v570
                  %v572 = vld [vmem:[%s518 + $0x68] sm:$0xf]
                  %573 = vst [vmem:[%s519 + $0x68] sm:$0xf] %v572
                  %v574 = vld [vmem:[%s518 + $0x6c] sm:$0xf]
                  %575 = vst [vmem:[%s519 + $0x6c] sm:$0xf] %v574
                  %v576 = vld [vmem:[%s518 + $0x70] sm:$0xf]
                  %577 = vst [vmem:[%s519 + $0x70] sm:$0xf] %v576
                  %v578 = vld [vmem:[%s518 + $0x74] sm:$0xf]
                  %579 = vst [vmem:[%s519 + $0x74] sm:$0xf] %v578
                  %v580 = vld [vmem:[%s518 + $0x78] sm:$0xf]
                  %581 = vst [vmem:[%s519 + $0x78] sm:$0xf] %v580
                  %v582 = vld [vmem:[%s518 + $0x7c] sm:$0xf]
                  %583 = vst [vmem:[%s519 + $0x7c] sm:$0xf] %v582
                  %v584 = vld [vmem:[%s518 + $0x100] sm:$0xf]
                  %585 = vst [vmem:[%s519 + $0x80] sm:$0xf] %v584
                  %v586 = vld [vmem:[%s518 + $0x104] sm:$0xf]
                  %587 = vst [vmem:[%s519 + $0x84] sm:$0xf] %v586
                  %v588 = vld [vmem:[%s518 + $0x108] sm:$0xf]
                  %589 = vst [vmem:[%s519 + $0x88] sm:$0xf] %v588
                  %v590 = vld [vmem:[%s518 + $0x10c] sm:$0xf]
                  %591 = vst [vmem:[%s519 + $0x8c] sm:$0xf] %v590
                  %v592 = vld [vmem:[%s518 + $0x110] sm:$0xf]
                  %593 = vst [vmem:[%s519 + $0x90] sm:$0xf] %v592
                  %v594 = vld [vmem:[%s518 + $0x114] sm:$0xf]
                  %595 = vst [vmem:[%s519 + $0x94] sm:$0xf] %v594
                  %v596 = vld [vmem:[%s518 + $0x118] sm:$0xf]
                  %597 = vst [vmem:[%s519 + $0x98] sm:$0xf] %v596
                  %v598 = vld [vmem:[%s518 + $0x11c] sm:$0xf]
                  %599 = vst [vmem:[%s519 + $0x9c] sm:$0xf] %v598
                  %v600 = vld [vmem:[%s518 + $0x120] sm:$0xf]
                  %601 = vst [vmem:[%s519 + $0xa0] sm:$0xf] %v600
                  %v602 = vld [vmem:[%s518 + $0x124] sm:$0xf]
                  %603 = vst [vmem:[%s519 + $0xa4] sm:$0xf] %v602
                  %v604 = vld [vmem:[%s518 + $0x128] sm:$0xf]
                  %605 = vst [vmem:[%s519 + $0xa8] sm:$0xf] %v604
                  %v606 = vld [vmem:[%s518 + $0x12c] sm:$0xf]
                  %607 = vst [vmem:[%s519 + $0xac] sm:$0xf] %v606
                  %v608 = vld [vmem:[%s518 + $0x130] sm:$0xf]
                  %609 = vst [vmem:[%s519 + $0xb0] sm:$0xf] %v608
                  %v610 = vld [vmem:[%s518 + $0x134] sm:$0xf]
                  %611 = vst [vmem:[%s519 + $0xb4] sm:$0xf] %v610
                  %v612 = vld [vmem:[%s518 + $0x138] sm:$0xf]
                  %613 = vst [vmem:[%s519 + $0xb8] sm:$0xf] %v612
                  %v614 = vld [vmem:[%s518 + $0x13c] sm:$0xf]
                  %615 = vst [vmem:[%s519 + $0xbc] sm:$0xf] %v614
                  %v616 = vld [vmem:[%s518 + $0x140] sm:$0xf]
                  %617 = vst [vmem:[%s519 + $0xc0] sm:$0xf] %v616
                  %v618 = vld [vmem:[%s518 + $0x144] sm:$0xf]
                  %619 = vst [vmem:[%s519 + $0xc4] sm:$0xf] %v618
                  %v620 = vld [vmem:[%s518 + $0x148] sm:$0xf]
                  %621 = vst [vmem:[%s519 + $0xc8] sm:$0xf] %v620
                  %v622 = vld [vmem:[%s518 + $0x14c] sm:$0xf]
                  %623 = vst [vmem:[%s519 + $0xcc] sm:$0xf] %v622
                  %v624 = vld [vmem:[%s518 + $0x150] sm:$0xf]
                  %625 = vst [vmem:[%s519 + $0xd0] sm:$0xf] %v624
                  %v626 = vld [vmem:[%s518 + $0x154] sm:$0xf]
                  %627 = vst [vmem:[%s519 + $0xd4] sm:$0xf] %v626
                  %v628 = vld [vmem:[%s518 + $0x158] sm:$0xf]
                  %629 = vst [vmem:[%s519 + $0xd8] sm:$0xf] %v628
                  %v630 = vld [vmem:[%s518 + $0x15c] sm:$0xf]
                  %631 = vst [vmem:[%s519 + $0xdc] sm:$0xf] %v630
                  %v632 = vld [vmem:[%s518 + $0x160] sm:$0xf]
                  %633 = vst [vmem:[%s519 + $0xe0] sm:$0xf] %v632
                  %v634 = vld [vmem:[%s518 + $0x164] sm:$0xf]
                  %635 = vst [vmem:[%s519 + $0xe4] sm:$0xf] %v634
                  %v636 = vld [vmem:[%s518 + $0x168] sm:$0xf]
                  %637 = vst [vmem:[%s519 + $0xe8] sm:$0xf] %v636
                  %v638 = vld [vmem:[%s518 + $0x16c] sm:$0xf]
                  %639 = vst [vmem:[%s519 + $0xec] sm:$0xf] %v638
                  %v640 = vld [vmem:[%s518 + $0x170] sm:$0xf]
                  %641 = vst [vmem:[%s519 + $0xf0] sm:$0xf] %v640
                  %v642 = vld [vmem:[%s518 + $0x174] sm:$0xf]
                  %643 = vst [vmem:[%s519 + $0xf4] sm:$0xf] %v642
                  %v644 = vld [vmem:[%s518 + $0x178] sm:$0xf]
                  %645 = vst [vmem:[%s519 + $0xf8] sm:$0xf] %v644
                  %v646 = vld [vmem:[%s518 + $0x17c] sm:$0xf]
                  %647 = vst [vmem:[%s519 + $0xfc] sm:$0xf] %v646
                  %v648 = vld [vmem:[%s518 + $0x200] sm:$0xf]
                  %649 = vst [vmem:[%s519 + $0x100] sm:$0xf] %v648
                  %v650 = vld [vmem:[%s518 + $0x204] sm:$0xf]
                  %651 = vst [vmem:[%s519 + $0x104] sm:$0xf] %v650
                  %v652 = vld [vmem:[%s518 + $0x208] sm:$0xf]
                  %653 = vst [vmem:[%s519 + $0x108] sm:$0xf] %v652
                  %v654 = vld [vmem:[%s518 + $0x20c] sm:$0xf]
                  %655 = vst [vmem:[%s519 + $0x10c] sm:$0xf] %v654
                  %v656 = vld [vmem:[%s518 + $0x210] sm:$0xf]
                  %657 = vst [vmem:[%s519 + $0x110] sm:$0xf] %v656
                  %v658 = vld [vmem:[%s518 + $0x214] sm:$0xf]
                  %659 = vst [vmem:[%s519 + $0x114] sm:$0xf] %v658
                  %v660 = vld [vmem:[%s518 + $0x218] sm:$0xf]
                  %661 = vst [vmem:[%s519 + $0x118] sm:$0xf] %v660
                  %v662 = vld [vmem:[%s518 + $0x21c] sm:$0xf]
                  %663 = vst [vmem:[%s519 + $0x11c] sm:$0xf] %v662
                  %v664 = vld [vmem:[%s518 + $0x220] sm:$0xf]
                  %665 = vst [vmem:[%s519 + $0x120] sm:$0xf] %v664
                  %v666 = vld [vmem:[%s518 + $0x224] sm:$0xf]
                  %667 = vst [vmem:[%s519 + $0x124] sm:$0xf] %v666
                  %v668 = vld [vmem:[%s518 + $0x228] sm:$0xf]
                  %669 = vst [vmem:[%s519 + $0x128] sm:$0xf] %v668
                  %v670 = vld [vmem:[%s518 + $0x22c] sm:$0xf]
                  %671 = vst [vmem:[%s519 + $0x12c] sm:$0xf] %v670
                  %v672 = vld [vmem:[%s518 + $0x230] sm:$0xf]
                  %673 = vst [vmem:[%s519 + $0x130] sm:$0xf] %v672
                  %v674 = vld [vmem:[%s518 + $0x234] sm:$0xf]
                  %675 = vst [vmem:[%s519 + $0x134] sm:$0xf] %v674
                  %v676 = vld [vmem:[%s518 + $0x238] sm:$0xf]
                  %677 = vst [vmem:[%s519 + $0x138] sm:$0xf] %v676
                  %v678 = vld [vmem:[%s518 + $0x23c] sm:$0xf]
                  %679 = vst [vmem:[%s519 + $0x13c] sm:$0xf] %v678
                  %v680 = vld [vmem:[%s518 + $0x240] sm:$0xf]
                  %681 = vst [vmem:[%s519 + $0x140] sm:$0xf] %v680
                  %v682 = vld [vmem:[%s518 + $0x244] sm:$0xf]
                  %683 = vst [vmem:[%s519 + $0x144] sm:$0xf] %v682
                  %v684 = vld [vmem:[%s518 + $0x248] sm:$0xf]
                  %685 = vst [vmem:[%s519 + $0x148] sm:$0xf] %v684
                  %v686 = vld [vmem:[%s518 + $0x24c] sm:$0xf]
                  %687 = vst [vmem:[%s519 + $0x14c] sm:$0xf] %v686
                  %v688 = vld [vmem:[%s518 + $0x250] sm:$0xf]
                  %689 = vst [vmem:[%s519 + $0x150] sm:$0xf] %v688
                  %v690 = vld [vmem:[%s518 + $0x254] sm:$0xf]
                  %691 = vst [vmem:[%s519 + $0x154] sm:$0xf] %v690
                  %v692 = vld [vmem:[%s518 + $0x258] sm:$0xf]
                  %693 = vst [vmem:[%s519 + $0x158] sm:$0xf] %v692
                  %v694 = vld [vmem:[%s518 + $0x25c] sm:$0xf]
                  %695 = vst [vmem:[%s519 + $0x15c] sm:$0xf] %v694
                  %v696 = vld [vmem:[%s518 + $0x260] sm:$0xf]
                  %697 = vst [vmem:[%s519 + $0x160] sm:$0xf] %v696
                  %v698 = vld [vmem:[%s518 + $0x264] sm:$0xf]
                  %699 = vst [vmem:[%s519 + $0x164] sm:$0xf] %v698
                  %v700 = vld [vmem:[%s518 + $0x268] sm:$0xf]
                  %701 = vst [vmem:[%s519 + $0x168] sm:$0xf] %v700
                  %v702 = vld [vmem:[%s518 + $0x26c] sm:$0xf]
                  %703 = vst [vmem:[%s519 + $0x16c] sm:$0xf] %v702
                  %v704 = vld [vmem:[%s518 + $0x270] sm:$0xf]
                  %705 = vst [vmem:[%s519 + $0x170] sm:$0xf] %v704
                  %v706 = vld [vmem:[%s518 + $0x274] sm:$0xf]
                  %707 = vst [vmem:[%s519 + $0x174] sm:$0xf] %v706
                  %v708 = vld [vmem:[%s518 + $0x278] sm:$0xf]
                  %709 = vst [vmem:[%s519 + $0x178] sm:$0xf] %v708
                  %v710 = vld [vmem:[%s518 + $0x27c] sm:$0xf]
                  %711 = vst [vmem:[%s519 + $0x17c] sm:$0xf] %v710
                  %v712 = vld [vmem:[%s518 + $0x300] sm:$0xf]
                  %713 = vst [vmem:[%s519 + $0x180] sm:$0xf] %v712
                  %v714 = vld [vmem:[%s518 + $0x304] sm:$0xf]
                  %715 = vst [vmem:[%s519 + $0x184] sm:$0xf] %v714
                  %v716 = vld [vmem:[%s518 + $0x308] sm:$0xf]
                  %717 = vst [vmem:[%s519 + $0x188] sm:$0xf] %v716
                  %v718 = vld [vmem:[%s518 + $0x30c] sm:$0xf]
                  %719 = vst [vmem:[%s519 + $0x18c] sm:$0xf] %v718
                  %v720 = vld [vmem:[%s518 + $0x310] sm:$0xf]
                  %721 = vst [vmem:[%s519 + $0x190] sm:$0xf] %v720
                  %v722 = vld [vmem:[%s518 + $0x314] sm:$0xf]
                  %723 = vst [vmem:[%s519 + $0x194] sm:$0xf] %v722
                  %v724 = vld [vmem:[%s518 + $0x318] sm:$0xf]
                  %725 = vst [vmem:[%s519 + $0x198] sm:$0xf] %v724
                  %v726 = vld [vmem:[%s518 + $0x31c] sm:$0xf]
                  %727 = vst [vmem:[%s519 + $0x19c] sm:$0xf] %v726
                  %v728 = vld [vmem:[%s518 + $0x320] sm:$0xf]
                  %729 = vst [vmem:[%s519 + $0x1a0] sm:$0xf] %v728
                  %v730 = vld [vmem:[%s518 + $0x324] sm:$0xf]
                  %731 = vst [vmem:[%s519 + $0x1a4] sm:$0xf] %v730
                  %v732 = vld [vmem:[%s518 + $0x328] sm:$0xf]
                  %733 = vst [vmem:[%s519 + $0x1a8] sm:$0xf] %v732
                  %v734 = vld [vmem:[%s518 + $0x32c] sm:$0xf]
                  %735 = vst [vmem:[%s519 + $0x1ac] sm:$0xf] %v734
                  %v736 = vld [vmem:[%s518 + $0x330] sm:$0xf]
                  %737 = vst [vmem:[%s519 + $0x1b0] sm:$0xf] %v736
                  %v738 = vld [vmem:[%s518 + $0x334] sm:$0xf]
                  %739 = vst [vmem:[%s519 + $0x1b4] sm:$0xf] %v738
                  %v740 = vld [vmem:[%s518 + $0x338] sm:$0xf]
                  %741 = vst [vmem:[%s519 + $0x1b8] sm:$0xf] %v740
                  %v742 = vld [vmem:[%s518 + $0x33c] sm:$0xf]
                  %743 = vst [vmem:[%s519 + $0x1bc] sm:$0xf] %v742
                  %v744 = vld [vmem:[%s518 + $0x340] sm:$0xf]
                  %745 = vst [vmem:[%s519 + $0x1c0] sm:$0xf] %v744
                  %v746 = vld [vmem:[%s518 + $0x344] sm:$0xf]
                  %747 = vst [vmem:[%s519 + $0x1c4] sm:$0xf] %v746
                  %v748 = vld [vmem:[%s518 + $0x348] sm:$0xf]
                  %749 = vst [vmem:[%s519 + $0x1c8] sm:$0xf] %v748
                  %v750 = vld [vmem:[%s518 + $0x34c] sm:$0xf]
                  %751 = vst [vmem:[%s519 + $0x1cc] sm:$0xf] %v750
                  %v752 = vld [vmem:[%s518 + $0x350] sm:$0xf]
                  %753 = vst [vmem:[%s519 + $0x1d0] sm:$0xf] %v752
                  %v754 = vld [vmem:[%s518 + $0x354] sm:$0xf]
                  %755 = vst [vmem:[%s519 + $0x1d4] sm:$0xf] %v754
                  %v756 = vld [vmem:[%s518 + $0x358] sm:$0xf]
                  %757 = vst [vmem:[%s519 + $0x1d8] sm:$0xf] %v756
                  %v758 = vld [vmem:[%s518 + $0x35c] sm:$0xf]
                  %759 = vst [vmem:[%s519 + $0x1dc] sm:$0xf] %v758
                  %v760 = vld [vmem:[%s518 + $0x360] sm:$0xf]
                  %761 = vst [vmem:[%s519 + $0x1e0] sm:$0xf] %v760
                  %v762 = vld [vmem:[%s518 + $0x364] sm:$0xf]
                  %763 = vst [vmem:[%s519 + $0x1e4] sm:$0xf] %v762
                  %v764 = vld [vmem:[%s518 + $0x368] sm:$0xf]
                  %765 = vst [vmem:[%s519 + $0x1e8] sm:$0xf] %v764
                  %v766 = vld [vmem:[%s518 + $0x36c] sm:$0xf]
                  %767 = vst [vmem:[%s519 + $0x1ec] sm:$0xf] %v766
                  %v768 = vld [vmem:[%s518 + $0x370] sm:$0xf]
                  %769 = vst [vmem:[%s519 + $0x1f0] sm:$0xf] %v768
                  %v770 = vld [vmem:[%s518 + $0x374] sm:$0xf]
                  %771 = vst [vmem:[%s519 + $0x1f4] sm:$0xf] %v770
                  %v772 = vld [vmem:[%s518 + $0x378] sm:$0xf]
                  %773 = vst [vmem:[%s519 + $0x1f8] sm:$0xf] %v772
                  %v774 = vld [vmem:[%s518 + $0x37c] sm:$0xf]
                  %775 = vst [vmem:[%s519 + $0x1fc] sm:$0xf] %v774
                  %v776 = vld [vmem:[%s518 + $0x400] sm:$0xf]
                  %777 = vst [vmem:[%s519 + $0x200] sm:$0xf] %v776
                  %v778 = vld [vmem:[%s518 + $0x404] sm:$0xf]
                  %779 = vst [vmem:[%s519 + $0x204] sm:$0xf] %v778
                  %v780 = vld [vmem:[%s518 + $0x408] sm:$0xf]
                  %781 = vst [vmem:[%s519 + $0x208] sm:$0xf] %v780
                  %v782 = vld [vmem:[%s518 + $0x40c] sm:$0xf]
                  %783 = vst [vmem:[%s519 + $0x20c] sm:$0xf] %v782
                  %v784 = vld [vmem:[%s518 + $0x410] sm:$0xf]
                  %785 = vst [vmem:[%s519 + $0x210] sm:$0xf] %v784
                  %v786 = vld [vmem:[%s518 + $0x414] sm:$0xf]
                  %787 = vst [vmem:[%s519 + $0x214] sm:$0xf] %v786
                  %v788 = vld [vmem:[%s518 + $0x418] sm:$0xf]
                  %789 = vst [vmem:[%s519 + $0x218] sm:$0xf] %v788
                  %v790 = vld [vmem:[%s518 + $0x41c] sm:$0xf]
                  %791 = vst [vmem:[%s519 + $0x21c] sm:$0xf] %v790
                  %v792 = vld [vmem:[%s518 + $0x420] sm:$0xf]
                  %793 = vst [vmem:[%s519 + $0x220] sm:$0xf] %v792
                  %v794 = vld [vmem:[%s518 + $0x424] sm:$0xf]
                  %795 = vst [vmem:[%s519 + $0x224] sm:$0xf] %v794
                  %v796 = vld [vmem:[%s518 + $0x428] sm:$0xf]
                  %797 = vst [vmem:[%s519 + $0x228] sm:$0xf] %v796
                  %v798 = vld [vmem:[%s518 + $0x42c] sm:$0xf]
                  %799 = vst [vmem:[%s519 + $0x22c] sm:$0xf] %v798
                  %v800 = vld [vmem:[%s518 + $0x430] sm:$0xf]
                  %801 = vst [vmem:[%s519 + $0x230] sm:$0xf] %v800
                  %v802 = vld [vmem:[%s518 + $0x434] sm:$0xf]
                  %803 = vst [vmem:[%s519 + $0x234] sm:$0xf] %v802
                  %v804 = vld [vmem:[%s518 + $0x438] sm:$0xf]
                  %805 = vst [vmem:[%s519 + $0x238] sm:$0xf] %v804
                  %v806 = vld [vmem:[%s518 + $0x43c] sm:$0xf]
                  %807 = vst [vmem:[%s519 + $0x23c] sm:$0xf] %v806
                  %v808 = vld [vmem:[%s518 + $0x440] sm:$0xf]
                  %809 = vst [vmem:[%s519 + $0x240] sm:$0xf] %v808
                  %v810 = vld [vmem:[%s518 + $0x444] sm:$0xf]
                  %811 = vst [vmem:[%s519 + $0x244] sm:$0xf] %v810
                  %v812 = vld [vmem:[%s518 + $0x448] sm:$0xf]
                  %813 = vst [vmem:[%s519 + $0x248] sm:$0xf] %v812
                  %v814 = vld [vmem:[%s518 + $0x44c] sm:$0xf]
                  %815 = vst [vmem:[%s519 + $0x24c] sm:$0xf] %v814
                  %v816 = vld [vmem:[%s518 + $0x450] sm:$0xf]
                  %817 = vst [vmem:[%s519 + $0x250] sm:$0xf] %v816
                  %v818 = vld [vmem:[%s518 + $0x454] sm:$0xf]
                  %819 = vst [vmem:[%s519 + $0x254] sm:$0xf] %v818
                  %v820 = vld [vmem:[%s518 + $0x458] sm:$0xf]
                  %821 = vst [vmem:[%s519 + $0x258] sm:$0xf] %v820
                  %v822 = vld [vmem:[%s518 + $0x45c] sm:$0xf]
                  %823 = vst [vmem:[%s519 + $0x25c] sm:$0xf] %v822
                  %v824 = vld [vmem:[%s518 + $0x460] sm:$0xf]
                  %825 = vst [vmem:[%s519 + $0x260] sm:$0xf] %v824
                  %v826 = vld [vmem:[%s518 + $0x464] sm:$0xf]
                  %827 = vst [vmem:[%s519 + $0x264] sm:$0xf] %v826
                  %v828 = vld [vmem:[%s518 + $0x468] sm:$0xf]
                  %829 = vst [vmem:[%s519 + $0x268] sm:$0xf] %v828
                  %v830 = vld [vmem:[%s518 + $0x46c] sm:$0xf]
                  %831 = vst [vmem:[%s519 + $0x26c] sm:$0xf] %v830
                  %v832 = vld [vmem:[%s518 + $0x470] sm:$0xf]
                  %833 = vst [vmem:[%s519 + $0x270] sm:$0xf] %v832
                  %v834 = vld [vmem:[%s518 + $0x474] sm:$0xf]
                  %835 = vst [vmem:[%s519 + $0x274] sm:$0xf] %v834
                  %v836 = vld [vmem:[%s518 + $0x478] sm:$0xf]
                  %837 = vst [vmem:[%s519 + $0x278] sm:$0xf] %v836
                  %v838 = vld [vmem:[%s518 + $0x47c] sm:$0xf]
                  %839 = vst [vmem:[%s519 + $0x27c] sm:$0xf] %v838
                $region67: #{_lambda_.5} parent=54 // loop_footer
                  %s517 = sadd.s32 1, %s513
                $region68: #{_lambda_.5} parent=54 // loop_footer_branch
                  %512 = sbr.rel target = $region64
                $region69: #{_lambda_.5} parent=54 // loop_exit
                  _
              $region55: #{_lambda_.5} parent=39 // pred_fallthru
                _
            $region40: #{_lambda_.5} parent=35 // pred_fallthru
              _
            // Predicated region
            $region41: #{_lambda_.5} parent=35 // pred_check
              _
            $region42: #{_lambda_.5} parent=35 // pred_check_branch
              %171 = sbr.rel (0) target = $region44
            $region43: #{_lambda_.5} parent=35 // pred_region
              loop: start=0, step=1, limit=1
              $region45: #{_lambda_.5} parent=43 // loop_pre_header
                _
              $region46: #{_lambda_.5} parent=43 // loop_header
                %s174 = sphi 0, %s178
                %p175 = scmp.ge.s32.totalorder %s174, 1
                %s179 = sphi %s165, %s165
                %s180 = sphi %s162, %s162
              $region47: #{_lambda_.5} parent=43 // loop_header_branch
                %177 = sbr.rel (%p175) target = $region51
              $region48: #{_lambda_.5} parent=43 // loop_body
                %v181 = vld [vmem:[%s179] sm:$0xf]
                %182 = vst [vmem:[%s180] sm:$0xf] %v181
                %v183 = vld [vmem:[%s179 + $0x4] sm:$0xf]
                %184 = vst [vmem:[%s180 + $0x4] sm:$0xf] %v183
                %v185 = vld [vmem:[%s179 + $0x8] sm:$0xf]
                %186 = vst [vmem:[%s180 + $0x8] sm:$0xf] %v185
                %v187 = vld [vmem:[%s179 + $0xc] sm:$0xf]
                %188 = vst [vmem:[%s180 + $0xc] sm:$0xf] %v187
                %v189 = vld [vmem:[%s179 + $0x10] sm:$0xf]
                %190 = vst [vmem:[%s180 + $0x10] sm:$0xf] %v189
                %v191 = vld [vmem:[%s179 + $0x14] sm:$0xf]
                %192 = vst [vmem:[%s180 + $0x14] sm:$0xf] %v191
                %v193 = vld [vmem:[%s179 + $0x18] sm:$0xf]
                %194 = vst [vmem:[%s180 + $0x18] sm:$0xf] %v193
                %v195 = vld [vmem:[%s179 + $0x1c] sm:$0xf]
                %196 = vst [vmem:[%s180 + $0x1c] sm:$0xf] %v195
                %v197 = vld [vmem:[%s179 + $0x20] sm:$0xf]
                %198 = vst [vmem:[%s180 + $0x20] sm:$0xf] %v197
                %v199 = vld [vmem:[%s179 + $0x24] sm:$0xf]
                %200 = vst [vmem:[%s180 + $0x24] sm:$0xf] %v199
                %v201 = vld [vmem:[%s179 + $0x28] sm:$0xf]
                %202 = vst [vmem:[%s180 + $0x28] sm:$0xf] %v201
                %v203 = vld [vmem:[%s179 + $0x2c] sm:$0xf]
                %204 = vst [vmem:[%s180 + $0x2c] sm:$0xf] %v203
                %v205 = vld [vmem:[%s179 + $0x30] sm:$0xf]
                %206 = vst [vmem:[%s180 + $0x30] sm:$0xf] %v205
                %v207 = vld [vmem:[%s179 + $0x34] sm:$0xf]
                %208 = vst [vmem:[%s180 + $0x34] sm:$0xf] %v207
                %v209 = vld [vmem:[%s179 + $0x38] sm:$0xf]
                %210 = vst [vmem:[%s180 + $0x38] sm:$0xf] %v209
                %v211 = vld [vmem:[%s179 + $0x3c] sm:$0xf]
                %212 = vst [vmem:[%s180 + $0x3c] sm:$0xf] %v211
                %v213 = vld [vmem:[%s179 + $0x40] sm:$0xf]
                %214 = vst [vmem:[%s180 + $0x40] sm:$0xf] %v213
                %v215 = vld [vmem:[%s179 + $0x44] sm:$0xf]
                %216 = vst [vmem:[%s180 + $0x44] sm:$0xf] %v215
                %v217 = vld [vmem:[%s179 + $0x48] sm:$0xf]
                %218 = vst [vmem:[%s180 + $0x48] sm:$0xf] %v217
                %v219 = vld [vmem:[%s179 + $0x4c] sm:$0xf]
                %220 = vst [vmem:[%s180 + $0x4c] sm:$0xf] %v219
                %v221 = vld [vmem:[%s179 + $0x50] sm:$0xf]
                %222 = vst [vmem:[%s180 + $0x50] sm:$0xf] %v221
                %v223 = vld [vmem:[%s179 + $0x54] sm:$0xf]
                %224 = vst [vmem:[%s180 + $0x54] sm:$0xf] %v223
                %v225 = vld [vmem:[%s179 + $0x58] sm:$0xf]
                %226 = vst [vmem:[%s180 + $0x58] sm:$0xf] %v225
                %v227 = vld [vmem:[%s179 + $0x5c] sm:$0xf]
                %228 = vst [vmem:[%s180 + $0x5c] sm:$0xf] %v227
                %v229 = vld [vmem:[%s179 + $0x60] sm:$0xf]
                %230 = vst [vmem:[%s180 + $0x60] sm:$0xf] %v229
                %v231 = vld [vmem:[%s179 + $0x64] sm:$0xf]
                %232 = vst [vmem:[%s180 + $0x64] sm:$0xf] %v231
                %v233 = vld [vmem:[%s179 + $0x68] sm:$0xf]
                %234 = vst [vmem:[%s180 + $0x68] sm:$0xf] %v233
                %v235 = vld [vmem:[%s179 + $0x6c] sm:$0xf]
                %236 = vst [vmem:[%s180 + $0x6c] sm:$0xf] %v235
                %v237 = vld [vmem:[%s179 + $0x70] sm:$0xf]
                %238 = vst [vmem:[%s180 + $0x70] sm:$0xf] %v237
                %v239 = vld [vmem:[%s179 + $0x74] sm:$0xf]
                %240 = vst [vmem:[%s180 + $0x74] sm:$0xf] %v239
                %v241 = vld [vmem:[%s179 + $0x78] sm:$0xf]
                %242 = vst [vmem:[%s180 + $0x78] sm:$0xf] %v241
                %v243 = vld [vmem:[%s179 + $0x7c] sm:$0xf]
                %244 = vst [vmem:[%s180 + $0x7c] sm:$0xf] %v243
                %v245 = vld [vmem:[%s179 + $0x100] sm:$0xf]
                %246 = vst [vmem:[%s180 + $0x80] sm:$0xf] %v245
                %v247 = vld [vmem:[%s179 + $0x104] sm:$0xf]
                %248 = vst [vmem:[%s180 + $0x84] sm:$0xf] %v247
                %v249 = vld [vmem:[%s179 + $0x108] sm:$0xf]
                %250 = vst [vmem:[%s180 + $0x88] sm:$0xf] %v249
                %v251 = vld [vmem:[%s179 + $0x10c] sm:$0xf]
                %252 = vst [vmem:[%s180 + $0x8c] sm:$0xf] %v251
                %v253 = vld [vmem:[%s179 + $0x110] sm:$0xf]
                %254 = vst [vmem:[%s180 + $0x90] sm:$0xf] %v253
                %v255 = vld [vmem:[%s179 + $0x114] sm:$0xf]
                %256 = vst [vmem:[%s180 + $0x94] sm:$0xf] %v255
                %v257 = vld [vmem:[%s179 + $0x118] sm:$0xf]
                %258 = vst [vmem:[%s180 + $0x98] sm:$0xf] %v257
                %v259 = vld [vmem:[%s179 + $0x11c] sm:$0xf]
                %260 = vst [vmem:[%s180 + $0x9c] sm:$0xf] %v259
                %v261 = vld [vmem:[%s179 + $0x120] sm:$0xf]
                %262 = vst [vmem:[%s180 + $0xa0] sm:$0xf] %v261
                %v263 = vld [vmem:[%s179 + $0x124] sm:$0xf]
                %264 = vst [vmem:[%s180 + $0xa4] sm:$0xf] %v263
                %v265 = vld [vmem:[%s179 + $0x128] sm:$0xf]
                %266 = vst [vmem:[%s180 + $0xa8] sm:$0xf] %v265
                %v267 = vld [vmem:[%s179 + $0x12c] sm:$0xf]
                %268 = vst [vmem:[%s180 + $0xac] sm:$0xf] %v267
                %v269 = vld [vmem:[%s179 + $0x130] sm:$0xf]
                %270 = vst [vmem:[%s180 + $0xb0] sm:$0xf] %v269
                %v271 = vld [vmem:[%s179 + $0x134] sm:$0xf]
                %272 = vst [vmem:[%s180 + $0xb4] sm:$0xf] %v271
                %v273 = vld [vmem:[%s179 + $0x138] sm:$0xf]
                %274 = vst [vmem:[%s180 + $0xb8] sm:$0xf] %v273
                %v275 = vld [vmem:[%s179 + $0x13c] sm:$0xf]
                %276 = vst [vmem:[%s180 + $0xbc] sm:$0xf] %v275
                %v277 = vld [vmem:[%s179 + $0x140] sm:$0xf]
                %278 = vst [vmem:[%s180 + $0xc0] sm:$0xf] %v277
                %v279 = vld [vmem:[%s179 + $0x144] sm:$0xf]
                %280 = vst [vmem:[%s180 + $0xc4] sm:$0xf] %v279
                %v281 = vld [vmem:[%s179 + $0x148] sm:$0xf]
                %282 = vst [vmem:[%s180 + $0xc8] sm:$0xf] %v281
                %v283 = vld [vmem:[%s179 + $0x14c] sm:$0xf]
                %284 = vst [vmem:[%s180 + $0xcc] sm:$0xf] %v283
                %v285 = vld [vmem:[%s179 + $0x150] sm:$0xf]
                %286 = vst [vmem:[%s180 + $0xd0] sm:$0xf] %v285
                %v287 = vld [vmem:[%s179 + $0x154] sm:$0xf]
                %288 = vst [vmem:[%s180 + $0xd4] sm:$0xf] %v287
                %v289 = vld [vmem:[%s179 + $0x158] sm:$0xf]
                %290 = vst [vmem:[%s180 + $0xd8] sm:$0xf] %v289
                %v291 = vld [vmem:[%s179 + $0x15c] sm:$0xf]
                %292 = vst [vmem:[%s180 + $0xdc] sm:$0xf] %v291
                %v293 = vld [vmem:[%s179 + $0x160] sm:$0xf]
                %294 = vst [vmem:[%s180 + $0xe0] sm:$0xf] %v293
                %v295 = vld [vmem:[%s179 + $0x164] sm:$0xf]
                %296 = vst [vmem:[%s180 + $0xe4] sm:$0xf] %v295
                %v297 = vld [vmem:[%s179 + $0x168] sm:$0xf]
                %298 = vst [vmem:[%s180 + $0xe8] sm:$0xf] %v297
                %v299 = vld [vmem:[%s179 + $0x16c] sm:$0xf]
                %300 = vst [vmem:[%s180 + $0xec] sm:$0xf] %v299
                %v301 = vld [vmem:[%s179 + $0x170] sm:$0xf]
                %302 = vst [vmem:[%s180 + $0xf0] sm:$0xf] %v301
                %v303 = vld [vmem:[%s179 + $0x174] sm:$0xf]
                %304 = vst [vmem:[%s180 + $0xf4] sm:$0xf] %v303
                %v305 = vld [vmem:[%s179 + $0x178] sm:$0xf]
                %306 = vst [vmem:[%s180 + $0xf8] sm:$0xf] %v305
                %v307 = vld [vmem:[%s179 + $0x17c] sm:$0xf]
                %308 = vst [vmem:[%s180 + $0xfc] sm:$0xf] %v307
                %v309 = vld [vmem:[%s179 + $0x200] sm:$0xf]
                %310 = vst [vmem:[%s180 + $0x100] sm:$0xf] %v309
                %v311 = vld [vmem:[%s179 + $0x204] sm:$0xf]
                %312 = vst [vmem:[%s180 + $0x104] sm:$0xf] %v311
                %v313 = vld [vmem:[%s179 + $0x208] sm:$0xf]
                %314 = vst [vmem:[%s180 + $0x108] sm:$0xf] %v313
                %v315 = vld [vmem:[%s179 + $0x20c] sm:$0xf]
                %316 = vst [vmem:[%s180 + $0x10c] sm:$0xf] %v315
                %v317 = vld [vmem:[%s179 + $0x210] sm:$0xf]
                %318 = vst [vmem:[%s180 + $0x110] sm:$0xf] %v317
                %v319 = vld [vmem:[%s179 + $0x214] sm:$0xf]
                %320 = vst [vmem:[%s180 + $0x114] sm:$0xf] %v319
                %v321 = vld [vmem:[%s179 + $0x218] sm:$0xf]
                %322 = vst [vmem:[%s180 + $0x118] sm:$0xf] %v321
                %v323 = vld [vmem:[%s179 + $0x21c] sm:$0xf]
                %324 = vst [vmem:[%s180 + $0x11c] sm:$0xf] %v323
                %v325 = vld [vmem:[%s179 + $0x220] sm:$0xf]
                %326 = vst [vmem:[%s180 + $0x120] sm:$0xf] %v325
                %v327 = vld [vmem:[%s179 + $0x224] sm:$0xf]
                %328 = vst [vmem:[%s180 + $0x124] sm:$0xf] %v327
                %v329 = vld [vmem:[%s179 + $0x228] sm:$0xf]
                %330 = vst [vmem:[%s180 + $0x128] sm:$0xf] %v329
                %v331 = vld [vmem:[%s179 + $0x22c] sm:$0xf]
                %332 = vst [vmem:[%s180 + $0x12c] sm:$0xf] %v331
                %v333 = vld [vmem:[%s179 + $0x230] sm:$0xf]
                %334 = vst [vmem:[%s180 + $0x130] sm:$0xf] %v333
                %v335 = vld [vmem:[%s179 + $0x234] sm:$0xf]
                %336 = vst [vmem:[%s180 + $0x134] sm:$0xf] %v335
                %v337 = vld [vmem:[%s179 + $0x238] sm:$0xf]
                %338 = vst [vmem:[%s180 + $0x138] sm:$0xf] %v337
                %v339 = vld [vmem:[%s179 + $0x23c] sm:$0xf]
                %340 = vst [vmem:[%s180 + $0x13c] sm:$0xf] %v339
                %v341 = vld [vmem:[%s179 + $0x240] sm:$0xf]
                %342 = vst [vmem:[%s180 + $0x140] sm:$0xf] %v341
                %v343 = vld [vmem:[%s179 + $0x244] sm:$0xf]
                %344 = vst [vmem:[%s180 + $0x144] sm:$0xf] %v343
                %v345 = vld [vmem:[%s179 + $0x248] sm:$0xf]
                %346 = vst [vmem:[%s180 + $0x148] sm:$0xf] %v345
                %v347 = vld [vmem:[%s179 + $0x24c] sm:$0xf]
                %348 = vst [vmem:[%s180 + $0x14c] sm:$0xf] %v347
                %v349 = vld [vmem:[%s179 + $0x250] sm:$0xf]
                %350 = vst [vmem:[%s180 + $0x150] sm:$0xf] %v349
                %v351 = vld [vmem:[%s179 + $0x254] sm:$0xf]
                %352 = vst [vmem:[%s180 + $0x154] sm:$0xf] %v351
                %v353 = vld [vmem:[%s179 + $0x258] sm:$0xf]
                %354 = vst [vmem:[%s180 + $0x158] sm:$0xf] %v353
                %v355 = vld [vmem:[%s179 + $0x25c] sm:$0xf]
                %356 = vst [vmem:[%s180 + $0x15c] sm:$0xf] %v355
                %v357 = vld [vmem:[%s179 + $0x260] sm:$0xf]
                %358 = vst [vmem:[%s180 + $0x160] sm:$0xf] %v357
                %v359 = vld [vmem:[%s179 + $0x264] sm:$0xf]
                %360 = vst [vmem:[%s180 + $0x164] sm:$0xf] %v359
                %v361 = vld [vmem:[%s179 + $0x268] sm:$0xf]
                %362 = vst [vmem:[%s180 + $0x168] sm:$0xf] %v361
                %v363 = vld [vmem:[%s179 + $0x26c] sm:$0xf]
                %364 = vst [vmem:[%s180 + $0x16c] sm:$0xf] %v363
                %v365 = vld [vmem:[%s179 + $0x270] sm:$0xf]
                %366 = vst [vmem:[%s180 + $0x170] sm:$0xf] %v365
                %v367 = vld [vmem:[%s179 + $0x274] sm:$0xf]
                %368 = vst [vmem:[%s180 + $0x174] sm:$0xf] %v367
                %v369 = vld [vmem:[%s179 + $0x278] sm:$0xf]
                %370 = vst [vmem:[%s180 + $0x178] sm:$0xf] %v369
                %v371 = vld [vmem:[%s179 + $0x27c] sm:$0xf]
                %372 = vst [vmem:[%s180 + $0x17c] sm:$0xf] %v371
                %v373 = vld [vmem:[%s179 + $0x300] sm:$0xf]
                %374 = vst [vmem:[%s180 + $0x180] sm:$0xf] %v373
                %v375 = vld [vmem:[%s179 + $0x304] sm:$0xf]
                %376 = vst [vmem:[%s180 + $0x184] sm:$0xf] %v375
                %v377 = vld [vmem:[%s179 + $0x308] sm:$0xf]
                %378 = vst [vmem:[%s180 + $0x188] sm:$0xf] %v377
                %v379 = vld [vmem:[%s179 + $0x30c] sm:$0xf]
                %380 = vst [vmem:[%s180 + $0x18c] sm:$0xf] %v379
                %v381 = vld [vmem:[%s179 + $0x310] sm:$0xf]
                %382 = vst [vmem:[%s180 + $0x190] sm:$0xf] %v381
                %v383 = vld [vmem:[%s179 + $0x314] sm:$0xf]
                %384 = vst [vmem:[%s180 + $0x194] sm:$0xf] %v383
                %v385 = vld [vmem:[%s179 + $0x318] sm:$0xf]
                %386 = vst [vmem:[%s180 + $0x198] sm:$0xf] %v385
                %v387 = vld [vmem:[%s179 + $0x31c] sm:$0xf]
                %388 = vst [vmem:[%s180 + $0x19c] sm:$0xf] %v387
                %v389 = vld [vmem:[%s179 + $0x320] sm:$0xf]
                %390 = vst [vmem:[%s180 + $0x1a0] sm:$0xf] %v389
                %v391 = vld [vmem:[%s179 + $0x324] sm:$0xf]
                %392 = vst [vmem:[%s180 + $0x1a4] sm:$0xf] %v391
                %v393 = vld [vmem:[%s179 + $0x328] sm:$0xf]
                %394 = vst [vmem:[%s180 + $0x1a8] sm:$0xf] %v393
                %v395 = vld [vmem:[%s179 + $0x32c] sm:$0xf]
                %396 = vst [vmem:[%s180 + $0x1ac] sm:$0xf] %v395
                %v397 = vld [vmem:[%s179 + $0x330] sm:$0xf]
                %398 = vst [vmem:[%s180 + $0x1b0] sm:$0xf] %v397
                %v399 = vld [vmem:[%s179 + $0x334] sm:$0xf]
                %400 = vst [vmem:[%s180 + $0x1b4] sm:$0xf] %v399
                %v401 = vld [vmem:[%s179 + $0x338] sm:$0xf]
                %402 = vst [vmem:[%s180 + $0x1b8] sm:$0xf] %v401
                %v403 = vld [vmem:[%s179 + $0x33c] sm:$0xf]
                %404 = vst [vmem:[%s180 + $0x1bc] sm:$0xf] %v403
                %v405 = vld [vmem:[%s179 + $0x340] sm:$0xf]
                %406 = vst [vmem:[%s180 + $0x1c0] sm:$0xf] %v405
                %v407 = vld [vmem:[%s179 + $0x344] sm:$0xf]
                %408 = vst [vmem:[%s180 + $0x1c4] sm:$0xf] %v407
                %v409 = vld [vmem:[%s179 + $0x348] sm:$0xf]
                %410 = vst [vmem:[%s180 + $0x1c8] sm:$0xf] %v409
                %v411 = vld [vmem:[%s179 + $0x34c] sm:$0xf]
                %412 = vst [vmem:[%s180 + $0x1cc] sm:$0xf] %v411
                %v413 = vld [vmem:[%s179 + $0x350] sm:$0xf]
                %414 = vst [vmem:[%s180 + $0x1d0] sm:$0xf] %v413
                %v415 = vld [vmem:[%s179 + $0x354] sm:$0xf]
                %416 = vst [vmem:[%s180 + $0x1d4] sm:$0xf] %v415
                %v417 = vld [vmem:[%s179 + $0x358] sm:$0xf]
                %418 = vst [vmem:[%s180 + $0x1d8] sm:$0xf] %v417
                %v419 = vld [vmem:[%s179 + $0x35c] sm:$0xf]
                %420 = vst [vmem:[%s180 + $0x1dc] sm:$0xf] %v419
                %v421 = vld [vmem:[%s179 + $0x360] sm:$0xf]
                %422 = vst [vmem:[%s180 + $0x1e0] sm:$0xf] %v421
                %v423 = vld [vmem:[%s179 + $0x364] sm:$0xf]
                %424 = vst [vmem:[%s180 + $0x1e4] sm:$0xf] %v423
                %v425 = vld [vmem:[%s179 + $0x368] sm:$0xf]
                %426 = vst [vmem:[%s180 + $0x1e8] sm:$0xf] %v425
                %v427 = vld [vmem:[%s179 + $0x36c] sm:$0xf]
                %428 = vst [vmem:[%s180 + $0x1ec] sm:$0xf] %v427
                %v429 = vld [vmem:[%s179 + $0x370] sm:$0xf]
                %430 = vst [vmem:[%s180 + $0x1f0] sm:$0xf] %v429
                %v431 = vld [vmem:[%s179 + $0x374] sm:$0xf]
                %432 = vst [vmem:[%s180 + $0x1f4] sm:$0xf] %v431
                %v433 = vld [vmem:[%s179 + $0x378] sm:$0xf]
                %434 = vst [vmem:[%s180 + $0x1f8] sm:$0xf] %v433
                %v435 = vld [vmem:[%s179 + $0x37c] sm:$0xf]
                %436 = vst [vmem:[%s180 + $0x1fc] sm:$0xf] %v435
                %v437 = vld [vmem:[%s179 + $0x400] sm:$0xf]
                %438 = vst [vmem:[%s180 + $0x200] sm:$0xf] %v437
                %v439 = vld [vmem:[%s179 + $0x404] sm:$0xf]
                %440 = vst [vmem:[%s180 + $0x204] sm:$0xf] %v439
                %v441 = vld [vmem:[%s179 + $0x408] sm:$0xf]
                %442 = vst [vmem:[%s180 + $0x208] sm:$0xf] %v441
                %v443 = vld [vmem:[%s179 + $0x40c] sm:$0xf]
                %444 = vst [vmem:[%s180 + $0x20c] sm:$0xf] %v443
                %v445 = vld [vmem:[%s179 + $0x410] sm:$0xf]
                %446 = vst [vmem:[%s180 + $0x210] sm:$0xf] %v445
                %v447 = vld [vmem:[%s179 + $0x414] sm:$0xf]
                %448 = vst [vmem:[%s180 + $0x214] sm:$0xf] %v447
                %v449 = vld [vmem:[%s179 + $0x418] sm:$0xf]
                %450 = vst [vmem:[%s180 + $0x218] sm:$0xf] %v449
                %v451 = vld [vmem:[%s179 + $0x41c] sm:$0xf]
                %452 = vst [vmem:[%s180 + $0x21c] sm:$0xf] %v451
                %v453 = vld [vmem:[%s179 + $0x420] sm:$0xf]
                %454 = vst [vmem:[%s180 + $0x220] sm:$0xf] %v453
                %v455 = vld [vmem:[%s179 + $0x424] sm:$0xf]
                %456 = vst [vmem:[%s180 + $0x224] sm:$0xf] %v455
                %v457 = vld [vmem:[%s179 + $0x428] sm:$0xf]
                %458 = vst [vmem:[%s180 + $0x228] sm:$0xf] %v457
                %v459 = vld [vmem:[%s179 + $0x42c] sm:$0xf]
                %460 = vst [vmem:[%s180 + $0x22c] sm:$0xf] %v459
                %v461 = vld [vmem:[%s179 + $0x430] sm:$0xf]
                %462 = vst [vmem:[%s180 + $0x230] sm:$0xf] %v461
                %v463 = vld [vmem:[%s179 + $0x434] sm:$0xf]
                %464 = vst [vmem:[%s180 + $0x234] sm:$0xf] %v463
                %v465 = vld [vmem:[%s179 + $0x438] sm:$0xf]
                %466 = vst [vmem:[%s180 + $0x238] sm:$0xf] %v465
                %v467 = vld [vmem:[%s179 + $0x43c] sm:$0xf]
                %468 = vst [vmem:[%s180 + $0x23c] sm:$0xf] %v467
                %v469 = vld [vmem:[%s179 + $0x440] sm:$0xf]
                %470 = vst [vmem:[%s180 + $0x240] sm:$0xf] %v469
                %v471 = vld [vmem:[%s179 + $0x444] sm:$0xf]
                %472 = vst [vmem:[%s180 + $0x244] sm:$0xf] %v471
                %v473 = vld [vmem:[%s179 + $0x448] sm:$0xf]
                %474 = vst [vmem:[%s180 + $0x248] sm:$0xf] %v473
                %v475 = vld [vmem:[%s179 + $0x44c] sm:$0xf]
                %476 = vst [vmem:[%s180 + $0x24c] sm:$0xf] %v475
                %v477 = vld [vmem:[%s179 + $0x450] sm:$0xf]
                %478 = vst [vmem:[%s180 + $0x250] sm:$0xf] %v477
                %v479 = vld [vmem:[%s179 + $0x454] sm:$0xf]
                %480 = vst [vmem:[%s180 + $0x254] sm:$0xf] %v479
                %v481 = vld [vmem:[%s179 + $0x458] sm:$0xf]
                %482 = vst [vmem:[%s180 + $0x258] sm:$0xf] %v481
                %v483 = vld [vmem:[%s179 + $0x45c] sm:$0xf]
                %484 = vst [vmem:[%s180 + $0x25c] sm:$0xf] %v483
                %v485 = vld [vmem:[%s179 + $0x460] sm:$0xf]
                %486 = vst [vmem:[%s180 + $0x260] sm:$0xf] %v485
                %v487 = vld [vmem:[%s179 + $0x464] sm:$0xf]
                %488 = vst [vmem:[%s180 + $0x264] sm:$0xf] %v487
                %v489 = vld [vmem:[%s179 + $0x468] sm:$0xf]
                %490 = vst [vmem:[%s180 + $0x268] sm:$0xf] %v489
                %v491 = vld [vmem:[%s179 + $0x46c] sm:$0xf]
                %492 = vst [vmem:[%s180 + $0x26c] sm:$0xf] %v491
                %v493 = vld [vmem:[%s179 + $0x470] sm:$0xf]
                %494 = vst [vmem:[%s180 + $0x270] sm:$0xf] %v493
                %v495 = vld [vmem:[%s179 + $0x474] sm:$0xf]
                %496 = vst [vmem:[%s180 + $0x274] sm:$0xf] %v495
                %v497 = vld [vmem:[%s179 + $0x478] sm:$0xf]
                %498 = vst [vmem:[%s180 + $0x278] sm:$0xf] %v497
                %v499 = vld [vmem:[%s179 + $0x47c] sm:$0xf]
                %500 = vst [vmem:[%s180 + $0x27c] sm:$0xf] %v499
              $region49: #{_lambda_.5} parent=43 // loop_footer
                %s178 = sadd.s32 1, %s174
              $region50: #{_lambda_.5} parent=43 // loop_footer_branch
                %173 = sbr.rel target = $region46
              $region51: #{_lambda_.5} parent=43 // loop_exit
                _
            $region44: #{_lambda_.5} parent=35 // pred_fallthru
              _
          $region36: #{_lambda_.5} parent=31 // pred_fallthru
            _
          %840 = vnop
        $region32: #{_lambda_.5} parent=27 // pred_fallthru
          _
      $region28: #{_lambda_.5} parent=5 // pred_fallthru
        _
      %p841 = scmp.le.s32.totalorder 1, %s13
      %p842 = scmp.lt.s32.totalorder %s13, 3
      %p843 = pnand %p841, %p842
      %p844 = pneg %p843
      // Predicated region
      $region70: #{_lambda_.5} parent=5 // pred_check
        _
      $region71: #{_lambda_.5} parent=5 // pred_check_branch
        %846 = sbr.rel (%p843) target = $region73
      $region72: #{_lambda_.5} parent=5 // pred_region
        %s847 = ssub.s32 %s13, 1
        %s848 = sand.u32 %s26, 1
        %s849 = sand.u32 %s26, 1
        %s850 = smul.addr %s849, 640
        %s851 = scalar_lea.vmem [#allocation2], %s850
        // Predicated region
        $region74: #{_lambda_.5} parent=72 // pred_check
          %p852 = pneg %p39
        $region75: #{_lambda_.5} parent=72 // pred_check_branch
          %854 = sbr.rel (%p852) target = $region77
        $region76: #{_lambda_.5} parent=72 // pred_region
          _
        $region77: #{_lambda_.5} parent=72 // pred_fallthru
          _
        %s855 = sand.u32 %s26, 1
        %s856 = sand.u32 %s26, 1
        %s857 = smul.addr %s856, 640
        %s858 = scalar_lea.vmem [#allocation2], %s857
        %p859 = pneg %p39
        %p860 = pneg %p36
        %p861 = pneg %p60
        %p862 = pneg %p57
        %p863 = pneg %p81
        %p864 = pneg %p78
        %p865 = pneg %p102
        %p866 = pneg %p99
        %p867 = pneg %p128
        %p868 = pneg %p125
        %s869 = sand.u32 %s115, 1
        %s870 = scalar_lea.sflag [#allocation4], %s869
        %s871 = sand.u32 %s115, 1
        %s872 = smul.addr %s871, 256
        %s873 = scalar_lea.vmem [#allocation3], %s872
        %s874 = smul.u32 32, %s18
        %s875 = smul.u32 32, %s18
        %v876 = vld [vmem:[%s851] sm:$0xf]
        %v877 = vld [vmem:[%s851 + $0x4] sm:$0xf]
        %v878 = vld [vmem:[%s851 + $0x8] sm:$0xf]
        %v879 = vld [vmem:[%s851 + $0xc] sm:$0xf]
        %v880 = vld [vmem:[%s851 + $0x10] sm:$0xf]
        %v881 = vld [vmem:[%s851 + $0x14] sm:$0xf]
        %v882 = vld [vmem:[%s851 + $0x18] sm:$0xf]
        %v883 = vld [vmem:[%s851 + $0x1c] sm:$0xf]
        %v884 = vld [vmem:[%s851 + $0x20] sm:$0xf]
        %v885 = vld [vmem:[%s851 + $0x24] sm:$0xf]
        %v886 = vld [vmem:[%s851 + $0x28] sm:$0xf]
        %v887 = vld [vmem:[%s851 + $0x2c] sm:$0xf]
        %v888 = vld [vmem:[%s851 + $0x30] sm:$0xf]
        %v889 = vld [vmem:[%s851 + $0x34] sm:$0xf]
        %v890 = vld [vmem:[%s851 + $0x38] sm:$0xf]
        %v891 = vld [vmem:[%s851 + $0x3c] sm:$0xf]
        %v892 = vld [vmem:[%s851 + $0x40] sm:$0xf]
        %v893 = vld [vmem:[%s851 + $0x44] sm:$0xf]
        %v894 = vld [vmem:[%s851 + $0x48] sm:$0xf]
        %v895 = vld [vmem:[%s851 + $0x4c] sm:$0xf]
        %v896 = vld [vmem:[%s851 + $0x50] sm:$0xf]
        %v897 = vld [vmem:[%s851 + $0x54] sm:$0xf]
        %v898 = vld [vmem:[%s851 + $0x58] sm:$0xf]
        %v899 = vld [vmem:[%s851 + $0x5c] sm:$0xf]
        %v900 = vld [vmem:[%s851 + $0x60] sm:$0xf]
        %v901 = vld [vmem:[%s851 + $0x64] sm:$0xf]
        %v902 = vld [vmem:[%s851 + $0x68] sm:$0xf]
        %v903 = vld [vmem:[%s851 + $0x6c] sm:$0xf]
        %v904 = vld [vmem:[%s851 + $0x70] sm:$0xf]
        %v905 = vld [vmem:[%s851 + $0x74] sm:$0xf]
        %v906 = vld [vmem:[%s851 + $0x78] sm:$0xf]
        %v907 = vld [vmem:[%s851 + $0x7c] sm:$0xf]
        %v908 = vld [vmem:[%s851 + $0x80] sm:$0xf]
        %v909 = vld [vmem:[%s851 + $0x84] sm:$0xf]
        %v910 = vld [vmem:[%s851 + $0x88] sm:$0xf]
        %v911 = vld [vmem:[%s851 + $0x8c] sm:$0xf]
        %v912 = vld [vmem:[%s851 + $0x90] sm:$0xf]
        %v913 = vld [vmem:[%s851 + $0x94] sm:$0xf]
        %v914 = vld [vmem:[%s851 + $0x98] sm:$0xf]
        %v915 = vld [vmem:[%s851 + $0x9c] sm:$0xf]
        %v916 = vld [vmem:[%s851 + $0xa0] sm:$0xf]
        %v917 = vld [vmem:[%s851 + $0xa4] sm:$0xf]
        %v918 = vld [vmem:[%s851 + $0xa8] sm:$0xf]
        %v919 = vld [vmem:[%s851 + $0xac] sm:$0xf]
        %v920 = vld [vmem:[%s851 + $0xb0] sm:$0xf]
        %v921 = vld [vmem:[%s851 + $0xb4] sm:$0xf]
        %v922 = vld [vmem:[%s851 + $0xb8] sm:$0xf]
        %v923 = vld [vmem:[%s851 + $0xbc] sm:$0xf]
        %v924 = vld [vmem:[%s851 + $0xc0] sm:$0xf]
        %v925 = vld [vmem:[%s851 + $0xc4] sm:$0xf]
        %v926 = vld [vmem:[%s851 + $0xc8] sm:$0xf]
        %v927 = vld [vmem:[%s851 + $0xcc] sm:$0xf]
        %v928 = vld [vmem:[%s851 + $0xd0] sm:$0xf]
        %v929 = vld [vmem:[%s851 + $0xd4] sm:$0xf]
        %v930 = vld [vmem:[%s851 + $0xd8] sm:$0xf]
        %v931 = vld [vmem:[%s851 + $0xdc] sm:$0xf]
        %v932 = vld [vmem:[%s851 + $0xe0] sm:$0xf]
        %v933 = vld [vmem:[%s851 + $0xe4] sm:$0xf]
        %v934 = vld [vmem:[%s851 + $0xe8] sm:$0xf]
        %v935 = vld [vmem:[%s851 + $0xec] sm:$0xf]
        %v936 = vld [vmem:[%s851 + $0xf0] sm:$0xf]
        %v937 = vld [vmem:[%s851 + $0xf4] sm:$0xf]
        %v938 = vld [vmem:[%s851 + $0xf8] sm:$0xf]
        %v939 = vld [vmem:[%s851 + $0xfc] sm:$0xf]
        %v940 = vld [vmem:[%s851 + $0x100] sm:$0xf]
        %v941 = vld [vmem:[%s851 + $0x104] sm:$0xf]
        %v942 = vld [vmem:[%s851 + $0x108] sm:$0xf]
        %v943 = vld [vmem:[%s851 + $0x10c] sm:$0xf]
        %v944 = vld [vmem:[%s851 + $0x110] sm:$0xf]
        %v945 = vld [vmem:[%s851 + $0x114] sm:$0xf]
        %v946 = vld [vmem:[%s851 + $0x118] sm:$0xf]
        %v947 = vld [vmem:[%s851 + $0x11c] sm:$0xf]
        %v948 = vld [vmem:[%s851 + $0x120] sm:$0xf]
        %v949 = vld [vmem:[%s851 + $0x124] sm:$0xf]
        %v950 = vld [vmem:[%s851 + $0x128] sm:$0xf]
        %v951 = vld [vmem:[%s851 + $0x12c] sm:$0xf]
        %v952 = vld [vmem:[%s851 + $0x130] sm:$0xf]
        %v953 = vld [vmem:[%s851 + $0x134] sm:$0xf]
        %v954 = vld [vmem:[%s851 + $0x138] sm:$0xf]
        %v955 = vld [vmem:[%s851 + $0x13c] sm:$0xf]
        %v956 = vld [vmem:[%s851 + $0x140] sm:$0xf]
        %v957 = vld [vmem:[%s851 + $0x144] sm:$0xf]
        %v958 = vld [vmem:[%s851 + $0x148] sm:$0xf]
        %v959 = vld [vmem:[%s851 + $0x14c] sm:$0xf]
        %v960 = vld [vmem:[%s851 + $0x150] sm:$0xf]
        %v961 = vld [vmem:[%s851 + $0x154] sm:$0xf]
        %v962 = vld [vmem:[%s851 + $0x158] sm:$0xf]
        %v963 = vld [vmem:[%s851 + $0x15c] sm:$0xf]
        %v964 = vld [vmem:[%s851 + $0x160] sm:$0xf]
        %v965 = vld [vmem:[%s851 + $0x164] sm:$0xf]
        %v966 = vld [vmem:[%s851 + $0x168] sm:$0xf]
        %v967 = vld [vmem:[%s851 + $0x16c] sm:$0xf]
        %v968 = vld [vmem:[%s851 + $0x170] sm:$0xf]
        %v969 = vld [vmem:[%s851 + $0x174] sm:$0xf]
        %v970 = vld [vmem:[%s851 + $0x178] sm:$0xf]
        %v971 = vld [vmem:[%s851 + $0x17c] sm:$0xf]
        %v972 = vld [vmem:[%s851 + $0x180] sm:$0xf]
        %v973 = vld [vmem:[%s851 + $0x184] sm:$0xf]
        %v974 = vld [vmem:[%s851 + $0x188] sm:$0xf]
        %v975 = vld [vmem:[%s851 + $0x18c] sm:$0xf]
        %v976 = vld [vmem:[%s851 + $0x190] sm:$0xf]
        %v977 = vld [vmem:[%s851 + $0x194] sm:$0xf]
        %v978 = vld [vmem:[%s851 + $0x198] sm:$0xf]
        %v979 = vld [vmem:[%s851 + $0x19c] sm:$0xf]
        %v980 = vld [vmem:[%s851 + $0x1a0] sm:$0xf]
        %v981 = vld [vmem:[%s851 + $0x1a4] sm:$0xf]
        %v982 = vld [vmem:[%s851 + $0x1a8] sm:$0xf]
        %v983 = vld [vmem:[%s851 + $0x1ac] sm:$0xf]
        %v984 = vld [vmem:[%s851 + $0x1b0] sm:$0xf]
        %v985 = vld [vmem:[%s851 + $0x1b4] sm:$0xf]
        %v986 = vld [vmem:[%s851 + $0x1b8] sm:$0xf]
        %v987 = vld [vmem:[%s851 + $0x1bc] sm:$0xf]
        %v988 = vld [vmem:[%s851 + $0x1c0] sm:$0xf]
        %v989 = vld [vmem:[%s851 + $0x1c4] sm:$0xf]
        %v990 = vld [vmem:[%s851 + $0x1c8] sm:$0xf]
        %v991 = vld [vmem:[%s851 + $0x1cc] sm:$0xf]
        %v992 = vld [vmem:[%s851 + $0x1d0] sm:$0xf]
        %v993 = vld [vmem:[%s851 + $0x1d4] sm:$0xf]
        %v994 = vld [vmem:[%s851 + $0x1d8] sm:$0xf]
        %v995 = vld [vmem:[%s851 + $0x1dc] sm:$0xf]
        %v996 = vld [vmem:[%s851 + $0x1e0] sm:$0xf]
        %v997 = vld [vmem:[%s851 + $0x1e4] sm:$0xf]
        %v998 = vld [vmem:[%s851 + $0x1e8] sm:$0xf]
        %v999 = vld [vmem:[%s851 + $0x1ec] sm:$0xf]
        %v1000 = vld [vmem:[%s851 + $0x1f0] sm:$0xf]
        %v1001 = vld [vmem:[%s851 + $0x1f4] sm:$0xf]
        %v1002 = vld [vmem:[%s851 + $0x1f8] sm:$0xf]
        %v1003 = vld [vmem:[%s851 + $0x1fc] sm:$0xf]
        %v1004 = vld [vmem:[%s851 + $0x200] sm:$0xf]
        %v1005 = vld [vmem:[%s851 + $0x204] sm:$0xf]
        %v1006 = vld [vmem:[%s851 + $0x208] sm:$0xf]
        %v1007 = vld [vmem:[%s851 + $0x20c] sm:$0xf]
        %v1008 = vld [vmem:[%s851 + $0x210] sm:$0xf]
        %v1009 = vld [vmem:[%s851 + $0x214] sm:$0xf]
        %v1010 = vld [vmem:[%s851 + $0x218] sm:$0xf]
        %v1011 = vld [vmem:[%s851 + $0x21c] sm:$0xf]
        %v1012 = vld [vmem:[%s851 + $0x220] sm:$0xf]
        %v1013 = vld [vmem:[%s851 + $0x224] sm:$0xf]
        %v1014 = vld [vmem:[%s851 + $0x228] sm:$0xf]
        %v1015 = vld [vmem:[%s851 + $0x22c] sm:$0xf]
        %v1016 = vld [vmem:[%s851 + $0x230] sm:$0xf]
        %v1017 = vld [vmem:[%s851 + $0x234] sm:$0xf]
        %v1018 = vld [vmem:[%s851 + $0x238] sm:$0xf]
        %v1019 = vld [vmem:[%s851 + $0x23c] sm:$0xf]
        %v1020 = vld [vmem:[%s851 + $0x240] sm:$0xf]
        %v1021 = vld [vmem:[%s851 + $0x244] sm:$0xf]
        %v1022 = vld [vmem:[%s851 + $0x248] sm:$0xf]
        %v1023 = vld [vmem:[%s851 + $0x24c] sm:$0xf]
        %v1024 = vld [vmem:[%s851 + $0x250] sm:$0xf]
        %v1025 = vld [vmem:[%s851 + $0x254] sm:$0xf]
        %v1026 = vld [vmem:[%s851 + $0x258] sm:$0xf]
        %v1027 = vld [vmem:[%s851 + $0x25c] sm:$0xf]
        %v1028 = vld [vmem:[%s851 + $0x260] sm:$0xf]
        %v1029 = vld [vmem:[%s851 + $0x264] sm:$0xf]
        %v1030 = vld [vmem:[%s851 + $0x268] sm:$0xf]
        %v1031 = vld [vmem:[%s851 + $0x26c] sm:$0xf]
        %v1032 = vld [vmem:[%s851 + $0x270] sm:$0xf]
        %v1033 = vld [vmem:[%s851 + $0x274] sm:$0xf]
        %v1034 = vld [vmem:[%s851 + $0x278] sm:$0xf]
        %v1035 = vld [vmem:[%s851 + $0x27c] sm:$0xf]
        %v1036 = vunpack.c.l.bf16 %v876
        %v1037 = vunpack.c.l.bf16 %v877
        %v1038 = vunpack.c.l.bf16 %v878
        %v1039 = vunpack.c.l.bf16 %v879
        %v1040 = vunpack.c.l.bf16 %v880
        %v1041 = vunpack.c.l.bf16 %v881
        %v1042 = vunpack.c.l.bf16 %v882
        %v1043 = vunpack.c.l.bf16 %v883
        %v1044 = vunpack.c.l.bf16 %v884
        %v1045 = vunpack.c.l.bf16 %v885
        %v1046 = vunpack.c.l.bf16 %v886
        %v1047 = vunpack.c.l.bf16 %v887
        %v1048 = vunpack.c.l.bf16 %v888
        %v1049 = vunpack.c.l.bf16 %v889
        %v1050 = vunpack.c.l.bf16 %v890
        %v1051 = vunpack.c.l.bf16 %v891
        %v1052 = vunpack.c.l.bf16 %v892
        %v1053 = vunpack.c.l.bf16 %v893
        %v1054 = vunpack.c.l.bf16 %v894
        %v1055 = vunpack.c.l.bf16 %v895
        %v1056 = vunpack.c.l.bf16 %v896
        %v1057 = vunpack.c.l.bf16 %v897
        %v1058 = vunpack.c.l.bf16 %v898
        %v1059 = vunpack.c.l.bf16 %v899
        %v1060 = vunpack.c.l.bf16 %v900
        %v1061 = vunpack.c.l.bf16 %v901
        %v1062 = vunpack.c.l.bf16 %v902
        %v1063 = vunpack.c.l.bf16 %v903
        %v1064 = vunpack.c.l.bf16 %v904
        %v1065 = vunpack.c.l.bf16 %v905
        %v1066 = vunpack.c.l.bf16 %v906
        %v1067 = vunpack.c.l.bf16 %v907
        %v1068 = vunpack.c.l.bf16 %v908
        %v1069 = vunpack.c.l.bf16 %v909
        %v1070 = vunpack.c.l.bf16 %v910
        %v1071 = vunpack.c.l.bf16 %v911
        %v1072 = vunpack.c.l.bf16 %v912
        %v1073 = vunpack.c.l.bf16 %v913
        %v1074 = vunpack.c.l.bf16 %v914
        %v1075 = vunpack.c.l.bf16 %v915
        %v1076 = vunpack.c.l.bf16 %v916
        %v1077 = vunpack.c.l.bf16 %v917
        %v1078 = vunpack.c.l.bf16 %v918
        %v1079 = vunpack.c.l.bf16 %v919
        %v1080 = vunpack.c.l.bf16 %v920
        %v1081 = vunpack.c.l.bf16 %v921
        %v1082 = vunpack.c.l.bf16 %v922
        %v1083 = vunpack.c.l.bf16 %v923
        %v1084 = vunpack.c.l.bf16 %v924
        %v1085 = vunpack.c.l.bf16 %v925
        %v1086 = vunpack.c.l.bf16 %v926
        %v1087 = vunpack.c.l.bf16 %v927
        %v1088 = vunpack.c.l.bf16 %v928
        %v1089 = vunpack.c.l.bf16 %v929
        %v1090 = vunpack.c.l.bf16 %v930
        %v1091 = vunpack.c.l.bf16 %v931
        %v1092 = vunpack.c.l.bf16 %v932
        %v1093 = vunpack.c.l.bf16 %v933
        %v1094 = vunpack.c.l.bf16 %v934
        %v1095 = vunpack.c.l.bf16 %v935
        %v1096 = vunpack.c.l.bf16 %v936
        %v1097 = vunpack.c.l.bf16 %v937
        %v1098 = vunpack.c.l.bf16 %v938
        %v1099 = vunpack.c.l.bf16 %v939
        %v1100 = vunpack.c.l.bf16 %v940
        %v1101 = vunpack.c.l.bf16 %v941
        %v1102 = vunpack.c.l.bf16 %v942
        %v1103 = vunpack.c.l.bf16 %v943
        %v1104 = vunpack.c.l.bf16 %v944
        %v1105 = vunpack.c.l.bf16 %v945
        %v1106 = vunpack.c.l.bf16 %v946
        %v1107 = vunpack.c.l.bf16 %v947
        %v1108 = vunpack.c.l.bf16 %v948
        %v1109 = vunpack.c.l.bf16 %v949
        %v1110 = vunpack.c.l.bf16 %v950
        %v1111 = vunpack.c.l.bf16 %v951
        %v1112 = vunpack.c.l.bf16 %v952
        %v1113 = vunpack.c.l.bf16 %v953
        %v1114 = vunpack.c.l.bf16 %v954
        %v1115 = vunpack.c.l.bf16 %v955
        %v1116 = vunpack.c.l.bf16 %v956
        %v1117 = vunpack.c.l.bf16 %v957
        %v1118 = vunpack.c.l.bf16 %v958
        %v1119 = vunpack.c.l.bf16 %v959
        %v1120 = vunpack.c.l.bf16 %v960
        %v1121 = vunpack.c.l.bf16 %v961
        %v1122 = vunpack.c.l.bf16 %v962
        %v1123 = vunpack.c.l.bf16 %v963
        %v1124 = vunpack.c.l.bf16 %v964
        %v1125 = vunpack.c.l.bf16 %v965
        %v1126 = vunpack.c.l.bf16 %v966
        %v1127 = vunpack.c.l.bf16 %v967
        %v1128 = vunpack.c.l.bf16 %v968
        %v1129 = vunpack.c.l.bf16 %v969
        %v1130 = vunpack.c.l.bf16 %v970
        %v1131 = vunpack.c.l.bf16 %v971
        %v1132 = vunpack.c.l.bf16 %v972
        %v1133 = vunpack.c.l.bf16 %v973
        %v1134 = vunpack.c.l.bf16 %v974
        %v1135 = vunpack.c.l.bf16 %v975
        %v1136 = vunpack.c.l.bf16 %v976
        %v1137 = vunpack.c.l.bf16 %v977
        %v1138 = vunpack.c.l.bf16 %v978
        %v1139 = vunpack.c.l.bf16 %v979
        %v1140 = vunpack.c.l.bf16 %v980
        %v1141 = vunpack.c.l.bf16 %v981
        %v1142 = vunpack.c.l.bf16 %v982
        %v1143 = vunpack.c.l.bf16 %v983
        %v1144 = vunpack.c.l.bf16 %v984
        %v1145 = vunpack.c.l.bf16 %v985
        %v1146 = vunpack.c.l.bf16 %v986
        %v1147 = vunpack.c.l.bf16 %v987
        %v1148 = vunpack.c.l.bf16 %v988
        %v1149 = vunpack.c.l.bf16 %v989
        %v1150 = vunpack.c.l.bf16 %v990
        %v1151 = vunpack.c.l.bf16 %v991
        %v1152 = vunpack.c.l.bf16 %v992
        %v1153 = vunpack.c.l.bf16 %v993
        %v1154 = vunpack.c.l.bf16 %v994
        %v1155 = vunpack.c.l.bf16 %v995
        %v1156 = vunpack.c.l.bf16 %v996
        %v1157 = vunpack.c.l.bf16 %v997
        %v1158 = vunpack.c.l.bf16 %v998
        %v1159 = vunpack.c.l.bf16 %v999
        %v1160 = vunpack.c.l.bf16 %v1000
        %v1161 = vunpack.c.l.bf16 %v1001
        %v1162 = vunpack.c.l.bf16 %v1002
        %v1163 = vunpack.c.l.bf16 %v1003
        %v1164 = vunpack.c.l.bf16 %v1004
        %v1165 = vunpack.c.l.bf16 %v1005
        %v1166 = vunpack.c.l.bf16 %v1006
        %v1167 = vunpack.c.l.bf16 %v1007
        %v1168 = vunpack.c.l.bf16 %v1008
        %v1169 = vunpack.c.l.bf16 %v1009
        %v1170 = vunpack.c.l.bf16 %v1010
        %v1171 = vunpack.c.l.bf16 %v1011
        %v1172 = vunpack.c.l.bf16 %v1012
        %v1173 = vunpack.c.l.bf16 %v1013
        %v1174 = vunpack.c.l.bf16 %v1014
        %v1175 = vunpack.c.l.bf16 %v1015
        %v1176 = vunpack.c.l.bf16 %v1016
        %v1177 = vunpack.c.l.bf16 %v1017
        %v1178 = vunpack.c.l.bf16 %v1018
        %v1179 = vunpack.c.l.bf16 %v1019
        %v1180 = vunpack.c.l.bf16 %v1020
        %v1181 = vunpack.c.l.bf16 %v1021
        %v1182 = vunpack.c.l.bf16 %v1022
        %v1183 = vunpack.c.l.bf16 %v1023
        %v1184 = vunpack.c.l.bf16 %v1024
        %v1185 = vunpack.c.l.bf16 %v1025
        %v1186 = vunpack.c.l.bf16 %v1026
        %v1187 = vunpack.c.l.bf16 %v1027
        %v1188 = vunpack.c.l.bf16 %v1028
        %v1189 = vunpack.c.l.bf16 %v1029
        %v1190 = vunpack.c.l.bf16 %v1030
        %v1191 = vunpack.c.l.bf16 %v1031
        %v1192 = vunpack.c.l.bf16 %v1032
        %v1193 = vunpack.c.l.bf16 %v1033
        %v1194 = vunpack.c.l.bf16 %v1034
        %v1195 = vunpack.c.l.bf16 %v1035
        %v1196 = vadd.f32 %v1068, %v1100
        %v1197 = vadd.f32 %v1069, %v1101
        %v1198 = vadd.f32 %v1070, %v1102
        %v1199 = vadd.f32 %v1071, %v1103
        %v1200 = vadd.f32 %v1072, %v1104
        %v1201 = vadd.f32 %v1073, %v1105
        %v1202 = vadd.f32 %v1074, %v1106
        %v1203 = vadd.f32 %v1075, %v1107
        %v1204 = vadd.f32 %v1076, %v1108
        %v1205 = vadd.f32 %v1077, %v1109
        %v1206 = vadd.f32 %v1078, %v1110
        %v1207 = vadd.f32 %v1079, %v1111
        %v1208 = vadd.f32 %v1080, %v1112
        %v1209 = vadd.f32 %v1081, %v1113
        %v1210 = vadd.f32 %v1082, %v1114
        %v1211 = vadd.f32 %v1083, %v1115
        %v1212 = vadd.f32 %v1084, %v1116
        %v1213 = vadd.f32 %v1085, %v1117
        %v1214 = vadd.f32 %v1086, %v1118
        %v1215 = vadd.f32 %v1087, %v1119
        %v1216 = vadd.f32 %v1088, %v1120
        %v1217 = vadd.f32 %v1089, %v1121
        %v1218 = vadd.f32 %v1090, %v1122
        %v1219 = vadd.f32 %v1091, %v1123
        %v1220 = vadd.f32 %v1092, %v1124
        %v1221 = vadd.f32 %v1093, %v1125
        %v1222 = vadd.f32 %v1094, %v1126
        %v1223 = vadd.f32 %v1095, %v1127
        %v1224 = vadd.f32 %v1096, %v1128
        %v1225 = vadd.f32 %v1097, %v1129
        %v1226 = vadd.f32 %v1098, %v1130
        %v1227 = vadd.f32 %v1099, %v1131
        %v1228 = vadd.f32 %v1196, %v1132
        %v1229 = vadd.f32 %v1197, %v1133
        %v1230 = vadd.f32 %v1198, %v1134
        %v1231 = vadd.f32 %v1199, %v1135
        %v1232 = vadd.f32 %v1200, %v1136
        %v1233 = vadd.f32 %v1201, %v1137
        %v1234 = vadd.f32 %v1202, %v1138
        %v1235 = vadd.f32 %v1203, %v1139
        %v1236 = vadd.f32 %v1204, %v1140
        %v1237 = vadd.f32 %v1205, %v1141
        %v1238 = vadd.f32 %v1206, %v1142
        %v1239 = vadd.f32 %v1207, %v1143
        %v1240 = vadd.f32 %v1208, %v1144
        %v1241 = vadd.f32 %v1209, %v1145
        %v1242 = vadd.f32 %v1210, %v1146
        %v1243 = vadd.f32 %v1211, %v1147
        %v1244 = vadd.f32 %v1212, %v1148
        %v1245 = vadd.f32 %v1213, %v1149
        %v1246 = vadd.f32 %v1214, %v1150
        %v1247 = vadd.f32 %v1215, %v1151
        %v1248 = vadd.f32 %v1216, %v1152
        %v1249 = vadd.f32 %v1217, %v1153
        %v1250 = vadd.f32 %v1218, %v1154
        %v1251 = vadd.f32 %v1219, %v1155
        %v1252 = vadd.f32 %v1220, %v1156
        %v1253 = vadd.f32 %v1221, %v1157
        %v1254 = vadd.f32 %v1222, %v1158
        %v1255 = vadd.f32 %v1223, %v1159
        %v1256 = vadd.f32 %v1224, %v1160
        %v1257 = vadd.f32 %v1225, %v1161
        %v1258 = vadd.f32 %v1226, %v1162
        %v1259 = vadd.f32 %v1227, %v1163
        %v1260 = vadd.f32 %v1228, %v1164
        %v1261 = vadd.f32 %v1229, %v1165
        %v1262 = vadd.f32 %v1230, %v1166
        %v1263 = vadd.f32 %v1231, %v1167
        %v1264 = vadd.f32 %v1232, %v1168
        %v1265 = vadd.f32 %v1233, %v1169
        %v1266 = vadd.f32 %v1234, %v1170
        %v1267 = vadd.f32 %v1235, %v1171
        %v1268 = vadd.f32 %v1236, %v1172
        %v1269 = vadd.f32 %v1237, %v1173
        %v1270 = vadd.f32 %v1238, %v1174
        %v1271 = vadd.f32 %v1239, %v1175
        %v1272 = vadd.f32 %v1240, %v1176
        %v1273 = vadd.f32 %v1241, %v1177
        %v1274 = vadd.f32 %v1242, %v1178
        %v1275 = vadd.f32 %v1243, %v1179
        %v1276 = vadd.f32 %v1244, %v1180
        %v1277 = vadd.f32 %v1245, %v1181
        %v1278 = vadd.f32 %v1246, %v1182
        %v1279 = vadd.f32 %v1247, %v1183
        %v1280 = vadd.f32 %v1248, %v1184
        %v1281 = vadd.f32 %v1249, %v1185
        %v1282 = vadd.f32 %v1250, %v1186
        %v1283 = vadd.f32 %v1251, %v1187
        %v1284 = vadd.f32 %v1252, %v1188
        %v1285 = vadd.f32 %v1253, %v1189
        %v1286 = vadd.f32 %v1254, %v1190
        %v1287 = vadd.f32 %v1255, %v1191
        %v1288 = vadd.f32 %v1256, %v1192
        %v1289 = vadd.f32 %v1257, %v1193
        %v1290 = vadd.f32 %v1258, %v1194
        %v1291 = vadd.f32 %v1259, %v1195
        %1324 = vrot.lane.b32.xlu0 %v1068, 8
        %v1325 = vpop.permute.xlu0 %1324
        %1326 = vrot.lane.b32.xlu0 %v1069, 8
        %v1327 = vpop.permute.xlu0 %1326
        %1328 = vrot.lane.b32.xlu0 %v1070, 8
        %v1329 = vpop.permute.xlu0 %1328
        %1330 = vrot.lane.b32.xlu0 %v1071, 8
        %v1331 = vpop.permute.xlu0 %1330
        %1332 = vrot.lane.b32.xlu0 %v1072, 8
        %v1333 = vpop.permute.xlu0 %1332
        %1334 = vrot.lane.b32.xlu0 %v1073, 8
        %v1335 = vpop.permute.xlu0 %1334
        %1336 = vrot.lane.b32.xlu0 %v1074, 8
        %v1337 = vpop.permute.xlu0 %1336
        %1338 = vrot.lane.b32.xlu0 %v1075, 8
        %v1339 = vpop.permute.xlu0 %1338
        %1340 = vrot.lane.b32.xlu0 %v1076, 8
        %v1341 = vpop.permute.xlu0 %1340
        %1342 = vrot.lane.b32.xlu0 %v1077, 8
        %v1343 = vpop.permute.xlu0 %1342
        %1344 = vrot.lane.b32.xlu0 %v1078, 8
        %v1345 = vpop.permute.xlu0 %1344
        %1346 = vrot.lane.b32.xlu0 %v1079, 8
        %v1347 = vpop.permute.xlu0 %1346
        %1348 = vrot.lane.b32.xlu0 %v1080, 8
        %v1349 = vpop.permute.xlu0 %1348
        %1350 = vrot.lane.b32.xlu0 %v1081, 8
        %v1351 = vpop.permute.xlu0 %1350
        %1352 = vrot.lane.b32.xlu0 %v1082, 8
        %v1353 = vpop.permute.xlu0 %1352
        %1354 = vrot.lane.b32.xlu0 %v1083, 8
        %v1355 = vpop.permute.xlu0 %1354
        %1356 = vrot.lane.b32.xlu0 %v1084, 8
        %v1357 = vpop.permute.xlu0 %1356
        %1358 = vrot.lane.b32.xlu0 %v1085, 8
        %v1359 = vpop.permute.xlu0 %1358
        %1360 = vrot.lane.b32.xlu0 %v1086, 8
        %v1361 = vpop.permute.xlu0 %1360
        %1362 = vrot.lane.b32.xlu0 %v1087, 8
        %v1363 = vpop.permute.xlu0 %1362
        %1364 = vrot.lane.b32.xlu0 %v1088, 8
        %v1365 = vpop.permute.xlu0 %1364
        %1366 = vrot.lane.b32.xlu0 %v1089, 8
        %v1367 = vpop.permute.xlu0 %1366
        %1368 = vrot.lane.b32.xlu0 %v1090, 8
        %v1369 = vpop.permute.xlu0 %1368
        %1370 = vrot.lane.b32.xlu0 %v1091, 8
        %v1371 = vpop.permute.xlu0 %1370
        %1372 = vrot.lane.b32.xlu0 %v1092, 8
        %v1373 = vpop.permute.xlu0 %1372
        %1374 = vrot.lane.b32.xlu0 %v1093, 8
        %v1375 = vpop.permute.xlu0 %1374
        %1376 = vrot.lane.b32.xlu0 %v1094, 8
        %v1377 = vpop.permute.xlu0 %1376
        %1378 = vrot.lane.b32.xlu0 %v1095, 8
        %v1379 = vpop.permute.xlu0 %1378
        %1380 = vrot.lane.b32.xlu0 %v1096, 8
        %v1381 = vpop.permute.xlu0 %1380
        %1382 = vrot.lane.b32.xlu0 %v1097, 8
        %v1383 = vpop.permute.xlu0 %1382
        %1384 = vrot.lane.b32.xlu0 %v1098, 8
        %v1385 = vpop.permute.xlu0 %1384
        %1386 = vrot.lane.b32.xlu0 %v1099, 8
        %v1387 = vpop.permute.xlu0 %1386
        %1452 = vrot.lane.b32.xlu0 %v1196, 16
        %v1453 = vpop.permute.xlu0 %1452
        %1454 = vrot.lane.b32.xlu0 %v1197, 16
        %v1455 = vpop.permute.xlu0 %1454
        %1456 = vrot.lane.b32.xlu0 %v1198, 16
        %v1457 = vpop.permute.xlu0 %1456
        %1458 = vrot.lane.b32.xlu0 %v1199, 16
        %v1459 = vpop.permute.xlu0 %1458
        %1460 = vrot.lane.b32.xlu0 %v1200, 16
        %v1461 = vpop.permute.xlu0 %1460
        %1462 = vrot.lane.b32.xlu0 %v1201, 16
        %v1463 = vpop.permute.xlu0 %1462
        %1464 = vrot.lane.b32.xlu0 %v1202, 16
        %v1465 = vpop.permute.xlu0 %1464
        %1466 = vrot.lane.b32.xlu0 %v1203, 16
        %v1467 = vpop.permute.xlu0 %1466
        %1468 = vrot.lane.b32.xlu0 %v1204, 16
        %v1469 = vpop.permute.xlu0 %1468
        %1470 = vrot.lane.b32.xlu0 %v1205, 16
        %v1471 = vpop.permute.xlu0 %1470
        %1472 = vrot.lane.b32.xlu0 %v1206, 16
        %v1473 = vpop.permute.xlu0 %1472
        %1474 = vrot.lane.b32.xlu0 %v1207, 16
        %v1475 = vpop.permute.xlu0 %1474
        %1476 = vrot.lane.b32.xlu0 %v1208, 16
        %v1477 = vpop.permute.xlu0 %1476
        %1478 = vrot.lane.b32.xlu0 %v1209, 16
        %v1479 = vpop.permute.xlu0 %1478
        %1480 = vrot.lane.b32.xlu0 %v1210, 16
        %v1481 = vpop.permute.xlu0 %1480
        %1482 = vrot.lane.b32.xlu0 %v1211, 16
        %v1483 = vpop.permute.xlu0 %1482
        %1484 = vrot.lane.b32.xlu0 %v1212, 16
        %v1485 = vpop.permute.xlu0 %1484
        %1486 = vrot.lane.b32.xlu0 %v1213, 16
        %v1487 = vpop.permute.xlu0 %1486
        %1488 = vrot.lane.b32.xlu0 %v1214, 16
        %v1489 = vpop.permute.xlu0 %1488
        %1490 = vrot.lane.b32.xlu0 %v1215, 16
        %v1491 = vpop.permute.xlu0 %1490
        %1492 = vrot.lane.b32.xlu0 %v1216, 16
        %v1493 = vpop.permute.xlu0 %1492
        %1494 = vrot.lane.b32.xlu0 %v1217, 16
        %v1495 = vpop.permute.xlu0 %1494
        %1496 = vrot.lane.b32.xlu0 %v1218, 16
        %v1497 = vpop.permute.xlu0 %1496
        %1498 = vrot.lane.b32.xlu0 %v1219, 16
        %v1499 = vpop.permute.xlu0 %1498
        %1500 = vrot.lane.b32.xlu0 %v1220, 16
        %v1501 = vpop.permute.xlu0 %1500
        %1502 = vrot.lane.b32.xlu0 %v1221, 16
        %v1503 = vpop.permute.xlu0 %1502
        %1504 = vrot.lane.b32.xlu0 %v1222, 16
        %v1505 = vpop.permute.xlu0 %1504
        %1506 = vrot.lane.b32.xlu0 %v1223, 16
        %v1507 = vpop.permute.xlu0 %1506
        %1508 = vrot.lane.b32.xlu0 %v1224, 16
        %v1509 = vpop.permute.xlu0 %1508
        %1510 = vrot.lane.b32.xlu0 %v1225, 16
        %v1511 = vpop.permute.xlu0 %1510
        %1512 = vrot.lane.b32.xlu0 %v1226, 16
        %v1513 = vpop.permute.xlu0 %1512
        %1514 = vrot.lane.b32.xlu0 %v1227, 16
        %v1515 = vpop.permute.xlu0 %1514
        %1580 = vrot.lane.b32.xlu0 %v1228, 24
        %v1581 = vpop.permute.xlu0 %1580
        %1582 = vrot.lane.b32.xlu0 %v1229, 24
        %v1583 = vpop.permute.xlu0 %1582
        %1584 = vrot.lane.b32.xlu0 %v1230, 24
        %v1585 = vpop.permute.xlu0 %1584
        %1586 = vrot.lane.b32.xlu0 %v1231, 24
        %v1587 = vpop.permute.xlu0 %1586
        %1588 = vrot.lane.b32.xlu0 %v1232, 24
        %v1589 = vpop.permute.xlu0 %1588
        %1590 = vrot.lane.b32.xlu0 %v1233, 24
        %v1591 = vpop.permute.xlu0 %1590
        %1592 = vrot.lane.b32.xlu0 %v1234, 24
        %v1593 = vpop.permute.xlu0 %1592
        %1594 = vrot.lane.b32.xlu0 %v1235, 24
        %v1595 = vpop.permute.xlu0 %1594
        %1596 = vrot.lane.b32.xlu0 %v1236, 24
        %v1597 = vpop.permute.xlu0 %1596
        %1598 = vrot.lane.b32.xlu0 %v1237, 24
        %v1599 = vpop.permute.xlu0 %1598
        %1600 = vrot.lane.b32.xlu0 %v1238, 24
        %v1601 = vpop.permute.xlu0 %1600
        %1602 = vrot.lane.b32.xlu0 %v1239, 24
        %v1603 = vpop.permute.xlu0 %1602
        %1604 = vrot.lane.b32.xlu0 %v1240, 24
        %v1605 = vpop.permute.xlu0 %1604
        %1606 = vrot.lane.b32.xlu0 %v1241, 24
        %v1607 = vpop.permute.xlu0 %1606
        %1608 = vrot.lane.b32.xlu0 %v1242, 24
        %v1609 = vpop.permute.xlu0 %1608
        %1610 = vrot.lane.b32.xlu0 %v1243, 24
        %v1611 = vpop.permute.xlu0 %1610
        %1612 = vrot.lane.b32.xlu0 %v1244, 24
        %v1613 = vpop.permute.xlu0 %1612
        %1614 = vrot.lane.b32.xlu0 %v1245, 24
        %v1615 = vpop.permute.xlu0 %1614
        %1616 = vrot.lane.b32.xlu0 %v1246, 24
        %v1617 = vpop.permute.xlu0 %1616
        %1618 = vrot.lane.b32.xlu0 %v1247, 24
        %v1619 = vpop.permute.xlu0 %1618
        %1620 = vrot.lane.b32.xlu0 %v1248, 24
        %v1621 = vpop.permute.xlu0 %1620
        %1622 = vrot.lane.b32.xlu0 %v1249, 24
        %v1623 = vpop.permute.xlu0 %1622
        %1624 = vrot.lane.b32.xlu0 %v1250, 24
        %v1625 = vpop.permute.xlu0 %1624
        %1626 = vrot.lane.b32.xlu0 %v1251, 24
        %v1627 = vpop.permute.xlu0 %1626
        %1628 = vrot.lane.b32.xlu0 %v1252, 24
        %v1629 = vpop.permute.xlu0 %1628
        %1630 = vrot.lane.b32.xlu0 %v1253, 24
        %v1631 = vpop.permute.xlu0 %1630
        %1632 = vrot.lane.b32.xlu0 %v1254, 24
        %v1633 = vpop.permute.xlu0 %1632
        %1634 = vrot.lane.b32.xlu0 %v1255, 24
        %v1635 = vpop.permute.xlu0 %1634
        %1636 = vrot.lane.b32.xlu0 %v1256, 24
        %v1637 = vpop.permute.xlu0 %1636
        %1638 = vrot.lane.b32.xlu0 %v1257, 24
        %v1639 = vpop.permute.xlu0 %1638
        %1640 = vrot.lane.b32.xlu0 %v1258, 24
        %v1641 = vpop.permute.xlu0 %1640
        %1642 = vrot.lane.b32.xlu0 %v1259, 24
        %v1643 = vpop.permute.xlu0 %1642
        %1708 = vrot.lane.b32.xlu0 %v1260, 32
        %v1709 = vpop.permute.xlu0 %1708
        %1710 = vrot.lane.b32.xlu0 %v1261, 32
        %v1711 = vpop.permute.xlu0 %1710
        %1712 = vrot.lane.b32.xlu0 %v1262, 32
        %v1713 = vpop.permute.xlu0 %1712
        %1714 = vrot.lane.b32.xlu0 %v1263, 32
        %v1715 = vpop.permute.xlu0 %1714
        %1716 = vrot.lane.b32.xlu0 %v1264, 32
        %v1717 = vpop.permute.xlu0 %1716
        %1718 = vrot.lane.b32.xlu0 %v1265, 32
        %v1719 = vpop.permute.xlu0 %1718
        %1720 = vrot.lane.b32.xlu0 %v1266, 32
        %v1721 = vpop.permute.xlu0 %1720
        %1722 = vrot.lane.b32.xlu0 %v1267, 32
        %v1723 = vpop.permute.xlu0 %1722
        %1724 = vrot.lane.b32.xlu0 %v1268, 32
        %v1725 = vpop.permute.xlu0 %1724
        %1726 = vrot.lane.b32.xlu0 %v1269, 32
        %v1727 = vpop.permute.xlu0 %1726
        %1728 = vrot.lane.b32.xlu0 %v1270, 32
        %v1729 = vpop.permute.xlu0 %1728
        %1730 = vrot.lane.b32.xlu0 %v1271, 32
        %v1731 = vpop.permute.xlu0 %1730
        %1732 = vrot.lane.b32.xlu0 %v1272, 32
        %v1733 = vpop.permute.xlu0 %1732
        %1734 = vrot.lane.b32.xlu0 %v1273, 32
        %v1735 = vpop.permute.xlu0 %1734
        %1736 = vrot.lane.b32.xlu0 %v1274, 32
        %v1737 = vpop.permute.xlu0 %1736
        %1738 = vrot.lane.b32.xlu0 %v1275, 32
        %v1739 = vpop.permute.xlu0 %1738
        %1740 = vrot.lane.b32.xlu0 %v1276, 32
        %v1741 = vpop.permute.xlu0 %1740
        %1742 = vrot.lane.b32.xlu0 %v1277, 32
        %v1743 = vpop.permute.xlu0 %1742
        %1744 = vrot.lane.b32.xlu0 %v1278, 32
        %v1745 = vpop.permute.xlu0 %1744
        %1746 = vrot.lane.b32.xlu0 %v1279, 32
        %v1747 = vpop.permute.xlu0 %1746
        %1748 = vrot.lane.b32.xlu0 %v1280, 32
        %v1749 = vpop.permute.xlu0 %1748
        %1750 = vrot.lane.b32.xlu0 %v1281, 32
        %v1751 = vpop.permute.xlu0 %1750
        %1752 = vrot.lane.b32.xlu0 %v1282, 32
        %v1753 = vpop.permute.xlu0 %1752
        %1754 = vrot.lane.b32.xlu0 %v1283, 32
        %v1755 = vpop.permute.xlu0 %1754
        %1756 = vrot.lane.b32.xlu0 %v1284, 32
        %v1757 = vpop.permute.xlu0 %1756
        %1758 = vrot.lane.b32.xlu0 %v1285, 32
        %v1759 = vpop.permute.xlu0 %1758
        %1760 = vrot.lane.b32.xlu0 %v1286, 32
        %v1761 = vpop.permute.xlu0 %1760
        %1762 = vrot.lane.b32.xlu0 %v1287, 32
        %v1763 = vpop.permute.xlu0 %1762
        %1764 = vrot.lane.b32.xlu0 %v1288, 32
        %v1765 = vpop.permute.xlu0 %1764
        %1766 = vrot.lane.b32.xlu0 %v1289, 32
        %v1767 = vpop.permute.xlu0 %1766
        %1768 = vrot.lane.b32.xlu0 %v1290, 32
        %v1769 = vpop.permute.xlu0 %1768
        %1770 = vrot.lane.b32.xlu0 %v1291, 32
        %v1771 = vpop.permute.xlu0 %1770
        %vm1804 = vcmask 64512
        %v1805 = vsel %vm1804, %v1036, %v1325
        %v1806 = vsel %vm1804, %v1037, %v1327
        %v1807 = vsel %vm1804, %v1038, %v1329
        %v1808 = vsel %vm1804, %v1039, %v1331
        %v1809 = vsel %vm1804, %v1040, %v1333
        %v1810 = vsel %vm1804, %v1041, %v1335
        %v1811 = vsel %vm1804, %v1042, %v1337
        %v1812 = vsel %vm1804, %v1043, %v1339
        %v1813 = vsel %vm1804, %v1044, %v1341
        %v1814 = vsel %vm1804, %v1045, %v1343
        %v1815 = vsel %vm1804, %v1046, %v1345
        %v1816 = vsel %vm1804, %v1047, %v1347
        %v1817 = vsel %vm1804, %v1048, %v1349
        %v1818 = vsel %vm1804, %v1049, %v1351
        %v1819 = vsel %vm1804, %v1050, %v1353
        %v1820 = vsel %vm1804, %v1051, %v1355
        %v1821 = vsel %vm1804, %v1052, %v1357
        %v1822 = vsel %vm1804, %v1053, %v1359
        %v1823 = vsel %vm1804, %v1054, %v1361
        %v1824 = vsel %vm1804, %v1055, %v1363
        %v1825 = vsel %vm1804, %v1056, %v1365
        %v1826 = vsel %vm1804, %v1057, %v1367
        %v1827 = vsel %vm1804, %v1058, %v1369
        %v1828 = vsel %vm1804, %v1059, %v1371
        %v1829 = vsel %vm1804, %v1060, %v1373
        %v1830 = vsel %vm1804, %v1061, %v1375
        %v1831 = vsel %vm1804, %v1062, %v1377
        %v1832 = vsel %vm1804, %v1063, %v1379
        %v1833 = vsel %vm1804, %v1064, %v1381
        %v1834 = vsel %vm1804, %v1065, %v1383
        %v1835 = vsel %vm1804, %v1066, %v1385
        %v1836 = vsel %vm1804, %v1067, %v1387
        %vm1837 = vcmask 130048
        %v1838 = vsel %vm1837, %v1805, %v1453
        %v1839 = vsel %vm1837, %v1806, %v1455
        %v1840 = vsel %vm1837, %v1807, %v1457
        %v1841 = vsel %vm1837, %v1808, %v1459
        %v1842 = vsel %vm1837, %v1809, %v1461
        %v1843 = vsel %vm1837, %v1810, %v1463
        %v1844 = vsel %vm1837, %v1811, %v1465
        %v1845 = vsel %vm1837, %v1812, %v1467
        %v1846 = vsel %vm1837, %v1813, %v1469
        %v1847 = vsel %vm1837, %v1814, %v1471
        %v1848 = vsel %vm1837, %v1815, %v1473
        %v1849 = vsel %vm1837, %v1816, %v1475
        %v1850 = vsel %vm1837, %v1817, %v1477
        %v1851 = vsel %vm1837, %v1818, %v1479
        %v1852 = vsel %vm1837, %v1819, %v1481
        %v1853 = vsel %vm1837, %v1820, %v1483
        %v1854 = vsel %vm1837, %v1821, %v1485
        %v1855 = vsel %vm1837, %v1822, %v1487
        %v1856 = vsel %vm1837, %v1823, %v1489
        %v1857 = vsel %vm1837, %v1824, %v1491
        %v1858 = vsel %vm1837, %v1825, %v1493
        %v1859 = vsel %vm1837, %v1826, %v1495
        %v1860 = vsel %vm1837, %v1827, %v1497
        %v1861 = vsel %vm1837, %v1828, %v1499
        %v1862 = vsel %vm1837, %v1829, %v1501
        %v1863 = vsel %vm1837, %v1830, %v1503
        %v1864 = vsel %vm1837, %v1831, %v1505
        %v1865 = vsel %vm1837, %v1832, %v1507
        %v1866 = vsel %vm1837, %v1833, %v1509
        %v1867 = vsel %vm1837, %v1834, %v1511
        %v1868 = vsel %vm1837, %v1835, %v1513
        %v1869 = vsel %vm1837, %v1836, %v1515
        %vm1870 = vcmask 195584
        %v1871 = vsel %vm1870, %v1838, %v1581
        %v1872 = vsel %vm1870, %v1839, %v1583
        %v1873 = vsel %vm1870, %v1840, %v1585
        %v1874 = vsel %vm1870, %v1841, %v1587
        %v1875 = vsel %vm1870, %v1842, %v1589
        %v1876 = vsel %vm1870, %v1843, %v1591
        %v1877 = vsel %vm1870, %v1844, %v1593
        %v1878 = vsel %vm1870, %v1845, %v1595
        %v1879 = vsel %vm1870, %v1846, %v1597
        %v1880 = vsel %vm1870, %v1847, %v1599
        %v1881 = vsel %vm1870, %v1848, %v1601
        %v1882 = vsel %vm1870, %v1849, %v1603
        %v1883 = vsel %vm1870, %v1850, %v1605
        %v1884 = vsel %vm1870, %v1851, %v1607
        %v1885 = vsel %vm1870, %v1852, %v1609
        %v1886 = vsel %vm1870, %v1853, %v1611
        %v1887 = vsel %vm1870, %v1854, %v1613
        %v1888 = vsel %vm1870, %v1855, %v1615
        %v1889 = vsel %vm1870, %v1856, %v1617
        %v1890 = vsel %vm1870, %v1857, %v1619
        %v1891 = vsel %vm1870, %v1858, %v1621
        %v1892 = vsel %vm1870, %v1859, %v1623
        %v1893 = vsel %vm1870, %v1860, %v1625
        %v1894 = vsel %vm1870, %v1861, %v1627
        %v1895 = vsel %vm1870, %v1862, %v1629
        %v1896 = vsel %vm1870, %v1863, %v1631
        %v1897 = vsel %vm1870, %v1864, %v1633
        %v1898 = vsel %vm1870, %v1865, %v1635
        %v1899 = vsel %vm1870, %v1866, %v1637
        %v1900 = vsel %vm1870, %v1867, %v1639
        %v1901 = vsel %vm1870, %v1868, %v1641
        %v1902 = vsel %vm1870, %v1869, %v1643
        %vm1903 = vcmask 261120
        %v1904 = vsel %vm1903, %v1871, %v1709
        %v1905 = vsel %vm1903, %v1872, %v1711
        %v1906 = vsel %vm1903, %v1873, %v1713
        %v1907 = vsel %vm1903, %v1874, %v1715
        %v1908 = vsel %vm1903, %v1875, %v1717
        %v1909 = vsel %vm1903, %v1876, %v1719
        %v1910 = vsel %vm1903, %v1877, %v1721
        %v1911 = vsel %vm1903, %v1878, %v1723
        %v1912 = vsel %vm1903, %v1879, %v1725
        %v1913 = vsel %vm1903, %v1880, %v1727
        %v1914 = vsel %vm1903, %v1881, %v1729
        %v1915 = vsel %vm1903, %v1882, %v1731
        %v1916 = vsel %vm1903, %v1883, %v1733
        %v1917 = vsel %vm1903, %v1884, %v1735
        %v1918 = vsel %vm1903, %v1885, %v1737
        %v1919 = vsel %vm1903, %v1886, %v1739
        %v1920 = vsel %vm1903, %v1887, %v1741
        %v1921 = vsel %vm1903, %v1888, %v1743
        %v1922 = vsel %vm1903, %v1889, %v1745
        %v1923 = vsel %vm1903, %v1890, %v1747
        %v1924 = vsel %vm1903, %v1891, %v1749
        %v1925 = vsel %vm1903, %v1892, %v1751
        %v1926 = vsel %vm1903, %v1893, %v1753
        %v1927 = vsel %vm1903, %v1894, %v1755
        %v1928 = vsel %vm1903, %v1895, %v1757
        %v1929 = vsel %vm1903, %v1896, %v1759
        %v1930 = vsel %vm1903, %v1897, %v1761
        %v1931 = vsel %vm1903, %v1898, %v1763
        %v1932 = vsel %vm1903, %v1899, %v1765
        %v1933 = vsel %vm1903, %v1900, %v1767
        %v1934 = vsel %vm1903, %v1901, %v1769
        %v1935 = vsel %vm1903, %v1902, %v1771
        %v1936 = vld [vmem:[%s1] sm:$0x1]
        %v1938 = vlaneseq
        %v1939 = vshrl.u32 %v1938, 7
        %v1940 = vsub.s32 0, %v1939
        %v1941 = vrot.slane %v1936, %v1940
        %v1943 = vmul.f32 %v1904, %v1941
        %v1944 = vmul.f32 %v1905, %v1941
        %v1945 = vmul.f32 %v1906, %v1941
        %v1946 = vmul.f32 %v1907, %v1941
        %v1947 = vmul.f32 %v1908, %v1941
        %v1948 = vmul.f32 %v1909, %v1941
        %v1949 = vmul.f32 %v1910, %v1941
        %v1950 = vmul.f32 %v1911, %v1941
        %v1951 = vmul.f32 %v1912, %v1941
        %v1952 = vmul.f32 %v1913, %v1941
        %v1953 = vmul.f32 %v1914, %v1941
        %v1954 = vmul.f32 %v1915, %v1941
        %v1955 = vmul.f32 %v1916, %v1941
        %v1956 = vmul.f32 %v1917, %v1941
        %v1957 = vmul.f32 %v1918, %v1941
        %v1958 = vmul.f32 %v1919, %v1941
        %v1959 = vmul.f32 %v1920, %v1941
        %v1960 = vmul.f32 %v1921, %v1941
        %v1961 = vmul.f32 %v1922, %v1941
        %v1962 = vmul.f32 %v1923, %v1941
        %v1963 = vmul.f32 %v1924, %v1941
        %v1964 = vmul.f32 %v1925, %v1941
        %v1965 = vmul.f32 %v1926, %v1941
        %v1966 = vmul.f32 %v1927, %v1941
        %v1967 = vmul.f32 %v1928, %v1941
        %v1968 = vmul.f32 %v1929, %v1941
        %v1969 = vmul.f32 %v1930, %v1941
        %v1970 = vmul.f32 %v1931, %v1941
        %v1971 = vmul.f32 %v1932, %v1941
        %v1972 = vmul.f32 %v1933, %v1941
        %v1973 = vmul.f32 %v1934, %v1941
        %v1974 = vmul.f32 %v1935, %v1941
        %v1975 = vld [vmem:[%s2] sm:$0x1]
        %v1977 = vlaneseq
        %v1978 = vshrl.u32 %v1977, 7
        %v1979 = vsub.s32 0, %v1978
        %v1980 = vrot.slane %v1975, %v1979
        %v1982 = vadd.f32 %v1943, %v1980
        %v1983 = vadd.f32 %v1944, %v1980
        %v1984 = vadd.f32 %v1945, %v1980
        %v1985 = vadd.f32 %v1946, %v1980
        %v1986 = vadd.f32 %v1947, %v1980
        %v1987 = vadd.f32 %v1948, %v1980
        %v1988 = vadd.f32 %v1949, %v1980
        %v1989 = vadd.f32 %v1950, %v1980
        %v1990 = vadd.f32 %v1951, %v1980
        %v1991 = vadd.f32 %v1952, %v1980
        %v1992 = vadd.f32 %v1953, %v1980
        %v1993 = vadd.f32 %v1954, %v1980
        %v1994 = vadd.f32 %v1955, %v1980
        %v1995 = vadd.f32 %v1956, %v1980
        %v1996 = vadd.f32 %v1957, %v1980
        %v1997 = vadd.f32 %v1958, %v1980
        %v1998 = vadd.f32 %v1959, %v1980
        %v1999 = vadd.f32 %v1960, %v1980
        %v2000 = vadd.f32 %v1961, %v1980
        %v2001 = vadd.f32 %v1962, %v1980
        %v2002 = vadd.f32 %v1963, %v1980
        %v2003 = vadd.f32 %v1964, %v1980
        %v2004 = vadd.f32 %v1965, %v1980
        %v2005 = vadd.f32 %v1966, %v1980
        %v2006 = vadd.f32 %v1967, %v1980
        %v2007 = vadd.f32 %v1968, %v1980
        %v2008 = vadd.f32 %v1969, %v1980
        %v2009 = vadd.f32 %v1970, %v1980
        %v2010 = vadd.f32 %v1971, %v1980
        %v2011 = vadd.f32 %v1972, %v1980
        %v2012 = vadd.f32 %v1973, %v1980
        %v2013 = vadd.f32 %v1974, %v1980
        %vm2014 = vcmp.ge.f32.partialorder %v1982, 0.0
        %vm2015 = vcmp.ge.f32.partialorder %v1983, 0.0
        %vm2016 = vcmp.ge.f32.partialorder %v1984, 0.0
        %vm2017 = vcmp.ge.f32.partialorder %v1985, 0.0
        %vm2018 = vcmp.ge.f32.partialorder %v1986, 0.0
        %vm2019 = vcmp.ge.f32.partialorder %v1987, 0.0
        %vm2020 = vcmp.ge.f32.partialorder %v1988, 0.0
        %vm2021 = vcmp.ge.f32.partialorder %v1989, 0.0
        %vm2022 = vcmp.ge.f32.partialorder %v1990, 0.0
        %vm2023 = vcmp.ge.f32.partialorder %v1991, 0.0
        %vm2024 = vcmp.ge.f32.partialorder %v1992, 0.0
        %vm2025 = vcmp.ge.f32.partialorder %v1993, 0.0
        %vm2026 = vcmp.ge.f32.partialorder %v1994, 0.0
        %vm2027 = vcmp.ge.f32.partialorder %v1995, 0.0
        %vm2028 = vcmp.ge.f32.partialorder %v1996, 0.0
        %vm2029 = vcmp.ge.f32.partialorder %v1997, 0.0
        %vm2030 = vcmp.ge.f32.partialorder %v1998, 0.0
        %vm2031 = vcmp.ge.f32.partialorder %v1999, 0.0
        %vm2032 = vcmp.ge.f32.partialorder %v2000, 0.0
        %vm2033 = vcmp.ge.f32.partialorder %v2001, 0.0
        %vm2034 = vcmp.ge.f32.partialorder %v2002, 0.0
        %vm2035 = vcmp.ge.f32.partialorder %v2003, 0.0
        %vm2036 = vcmp.ge.f32.partialorder %v2004, 0.0
        %vm2037 = vcmp.ge.f32.partialorder %v2005, 0.0
        %vm2038 = vcmp.ge.f32.partialorder %v2006, 0.0
        %vm2039 = vcmp.ge.f32.partialorder %v2007, 0.0
        %vm2040 = vcmp.ge.f32.partialorder %v2008, 0.0
        %vm2041 = vcmp.ge.f32.partialorder %v2009, 0.0
        %vm2042 = vcmp.ge.f32.partialorder %v2010, 0.0
        %vm2043 = vcmp.ge.f32.partialorder %v2011, 0.0
        %vm2044 = vcmp.ge.f32.partialorder %v2012, 0.0
        %vm2045 = vcmp.ge.f32.partialorder %v2013, 0.0
        %v2046 = vld [vmem:[%s3] sm:$0x1]
        %v2048 = vlaneseq
        %v2049 = vshrl.u32 %v2048, 7
        %v2050 = vsub.s32 0, %v2049
        %v2051 = vrot.slane %v2046, %v2050
        %v2053 = vmul.f32 %v1982, %v2051
        %v2054 = vmul.f32 %v1983, %v2051
        %v2055 = vmul.f32 %v1984, %v2051
        %v2056 = vmul.f32 %v1985, %v2051
        %v2057 = vmul.f32 %v1986, %v2051
        %v2058 = vmul.f32 %v1987, %v2051
        %v2059 = vmul.f32 %v1988, %v2051
        %v2060 = vmul.f32 %v1989, %v2051
        %v2061 = vmul.f32 %v1990, %v2051
        %v2062 = vmul.f32 %v1991, %v2051
        %v2063 = vmul.f32 %v1992, %v2051
        %v2064 = vmul.f32 %v1993, %v2051
        %v2065 = vmul.f32 %v1994, %v2051
        %v2066 = vmul.f32 %v1995, %v2051
        %v2067 = vmul.f32 %v1996, %v2051
        %v2068 = vmul.f32 %v1997, %v2051
        %v2069 = vmul.f32 %v1998, %v2051
        %v2070 = vmul.f32 %v1999, %v2051
        %v2071 = vmul.f32 %v2000, %v2051
        %v2072 = vmul.f32 %v2001, %v2051
        %v2073 = vmul.f32 %v2002, %v2051
        %v2074 = vmul.f32 %v2003, %v2051
        %v2075 = vmul.f32 %v2004, %v2051
        %v2076 = vmul.f32 %v2005, %v2051
        %v2077 = vmul.f32 %v2006, %v2051
        %v2078 = vmul.f32 %v2007, %v2051
        %v2079 = vmul.f32 %v2008, %v2051
        %v2080 = vmul.f32 %v2009, %v2051
        %v2081 = vmul.f32 %v2010, %v2051
        %v2082 = vmul.f32 %v2011, %v2051
        %v2083 = vmul.f32 %v2012, %v2051
        %v2084 = vmul.f32 %v2013, %v2051
        %v2085 = vsel %vm2014, %v1982, %v2053
        %v2086 = vsel %vm2015, %v1983, %v2054
        %v2087 = vsel %vm2016, %v1984, %v2055
        %v2088 = vsel %vm2017, %v1985, %v2056
        %v2089 = vsel %vm2018, %v1986, %v2057
        %v2090 = vsel %vm2019, %v1987, %v2058
        %v2091 = vsel %vm2020, %v1988, %v2059
        %v2092 = vsel %vm2021, %v1989, %v2060
        %v2093 = vsel %vm2022, %v1990, %v2061
        %v2094 = vsel %vm2023, %v1991, %v2062
        %v2095 = vsel %vm2024, %v1992, %v2063
        %v2096 = vsel %vm2025, %v1993, %v2064
        %v2097 = vsel %vm2026, %v1994, %v2065
        %v2098 = vsel %vm2027, %v1995, %v2066
        %v2099 = vsel %vm2028, %v1996, %v2067
        %v2100 = vsel %vm2029, %v1997, %v2068
        %v2101 = vsel %vm2030, %v1998, %v2069
        %v2102 = vsel %vm2031, %v1999, %v2070
        %v2103 = vsel %vm2032, %v2000, %v2071
        %v2104 = vsel %vm2033, %v2001, %v2072
        %v2105 = vsel %vm2034, %v2002, %v2073
        %v2106 = vsel %vm2035, %v2003, %v2074
        %v2107 = vsel %vm2036, %v2004, %v2075
        %v2108 = vsel %vm2037, %v2005, %v2076
        %v2109 = vsel %vm2038, %v2006, %v2077
        %v2110 = vsel %vm2039, %v2007, %v2078
        %v2111 = vsel %vm2040, %v2008, %v2079
        %v2112 = vsel %vm2041, %v2009, %v2080
        %v2113 = vsel %vm2042, %v2010, %v2081
        %v2114 = vsel %vm2043, %v2011, %v2082
        %v2115 = vsel %vm2044, %v2012, %v2083
        %v2116 = vsel %vm2045, %v2013, %v2084
        %vm2117 = vcmask 326656
        %2118 = vst.msk [vmem:[%s873] sm:$0xff] %vm2117, %v2085
        %2119 = vst.msk [vmem:[%s873 + $0x8] sm:$0xff] %vm2117, %v2086
        %2120 = vst.msk [vmem:[%s873 + $0x10] sm:$0xff] %vm2117, %v2087
        %2121 = vst.msk [vmem:[%s873 + $0x18] sm:$0xff] %vm2117, %v2088
        %2122 = vst.msk [vmem:[%s873 + $0x20] sm:$0xff] %vm2117, %v2089
        %2123 = vst.msk [vmem:[%s873 + $0x28] sm:$0xff] %vm2117, %v2090
        %2124 = vst.msk [vmem:[%s873 + $0x30] sm:$0xff] %vm2117, %v2091
        %2125 = vst.msk [vmem:[%s873 + $0x38] sm:$0xff] %vm2117, %v2092
        %2126 = vst.msk [vmem:[%s873 + $0x40] sm:$0xff] %vm2117, %v2093
        %2127 = vst.msk [vmem:[%s873 + $0x48] sm:$0xff] %vm2117, %v2094
        %2128 = vst.msk [vmem:[%s873 + $0x50] sm:$0xff] %vm2117, %v2095
        %2129 = vst.msk [vmem:[%s873 + $0x58] sm:$0xff] %vm2117, %v2096
        %2130 = vst.msk [vmem:[%s873 + $0x60] sm:$0xff] %vm2117, %v2097
        %2131 = vst.msk [vmem:[%s873 + $0x68] sm:$0xff] %vm2117, %v2098
        %2132 = vst.msk [vmem:[%s873 + $0x70] sm:$0xff] %vm2117, %v2099
        %2133 = vst.msk [vmem:[%s873 + $0x78] sm:$0xff] %vm2117, %v2100
        %2134 = vst.msk [vmem:[%s873 + $0x80] sm:$0xff] %vm2117, %v2101
        %2135 = vst.msk [vmem:[%s873 + $0x88] sm:$0xff] %vm2117, %v2102
        %2136 = vst.msk [vmem:[%s873 + $0x90] sm:$0xff] %vm2117, %v2103
        %2137 = vst.msk [vmem:[%s873 + $0x98] sm:$0xff] %vm2117, %v2104
        %2138 = vst.msk [vmem:[%s873 + $0xa0] sm:$0xff] %vm2117, %v2105
        %2139 = vst.msk [vmem:[%s873 + $0xa8] sm:$0xff] %vm2117, %v2106
        %2140 = vst.msk [vmem:[%s873 + $0xb0] sm:$0xff] %vm2117, %v2107
        %2141 = vst.msk [vmem:[%s873 + $0xb8] sm:$0xff] %vm2117, %v2108
        %2142 = vst.msk [vmem:[%s873 + $0xc0] sm:$0xff] %vm2117, %v2109
        %2143 = vst.msk [vmem:[%s873 + $0xc8] sm:$0xff] %vm2117, %v2110
        %2144 = vst.msk [vmem:[%s873 + $0xd0] sm:$0xff] %vm2117, %v2111
        %2145 = vst.msk [vmem:[%s873 + $0xd8] sm:$0xff] %vm2117, %v2112
        %2146 = vst.msk [vmem:[%s873 + $0xe0] sm:$0xff] %vm2117, %v2113
        %2147 = vst.msk [vmem:[%s873 + $0xe8] sm:$0xff] %vm2117, %v2114
        %2148 = vst.msk [vmem:[%s873 + $0xf0] sm:$0xff] %vm2117, %v2115
        %2149 = vst.msk [vmem:[%s873 + $0xf8] sm:$0xff] %vm2117, %v2116
        %s2150 = sand.u32 %s115, 1
        %s2151 = scalar_lea.sflag [#allocation4], %s2150
        %s2152 = sand.u32 %s115, 1
        %s2153 = smul.addr %s2152, 256
        %s2154 = scalar_lea.vmem [#allocation3], %s2153
        // Predicated region
        $region78: #{_lambda_.5} parent=72 // pred_check
          %p2155 = pneg %p125
        $region79: #{_lambda_.5} parent=72 // pred_check_branch
          %2157 = sbr.rel (%p2155) target = $region81
        $region80: #{_lambda_.5} parent=72 // pred_region
          %s2158 = smul.u32 32, %s18
          %s2160 = ssub.s32 4096, 4096
          %2161 = vsyncadd %s2151, %s2160
          %s2162 = smul.addr %s2158, 128
          %s2163 = scalar_lea.hbm %s4, %s2162
          %s2164 = sshll.u32 %s2154, 4
          %s2165 = int_to_ptr.vmem [resolvable:$true] %s2164
          %2170 = dma.vmem_to_hbm [thread:$0]  %s2165, 4096, %s2163, %s2151, 128, 128, 8
        $region81: #{_lambda_.5} parent=72 // pred_fallthru
          _
      $region73: #{_lambda_.5} parent=5 // pred_fallthru
        _
      %p2171 = scmp.le.s32.totalorder 2, %s13
      // Predicated region
      $region82: #{_lambda_.5} parent=5 // pred_check
        %p2172 = pneg %p2171
      $region83: #{_lambda_.5} parent=5 // pred_check_branch
        %2174 = sbr.rel (%p2172) target = $region85
      $region84: #{_lambda_.5} parent=5 // pred_region
        %s2175 = ssub.s32 %s13, 2
        // Predicated region
        $region86: #{_lambda_.5} parent=84 // pred_check
          %p2176 = pneg %p131
        $region87: #{_lambda_.5} parent=84 // pred_check_branch
          %2178 = sbr.rel (%p2176) target = $region89
        $region88: #{_lambda_.5} parent=84 // pred_region
          %s2179 = sand.u32 %s116, 1
          %s2180 = scalar_lea.sflag [#allocation4], %s2179
          %s2181 = sand.u32 %s116, 1
          %s2182 = smul.addr %s2181, 256
          %s2183 = scalar_lea.vmem [#allocation3], %s2182
          %2184 = dma.done %s2180, 4096
        $region89: #{_lambda_.5} parent=84 // pred_fallthru
          _
      $region85: #{_lambda_.5} parent=5 // pred_fallthru
        _
    $region6: #{_lambda_.5} parent=1 // loop_footer
      %s17 = sadd.s32 1, %s13
    $region7: #{_lambda_.5} parent=1 // loop_footer_branch
      %12 = sbr.rel target = $region3
    $region8: #{_lambda_.5} parent=1 // loop_exit
      _
    %2185 = vsyncpa [#allocation4], 1
    %s2186 = scalar_lea.sflag [#allocation4], 1
    %2187 = vsyncpa %s2186, 1

</llo_original>
